<compile_context>
chip_gen: v5e
topology: v5e:2x2
jax: 0.10.0
libtpu: 0.0.40
codegen_flags: <defaults>
</compile_context>

<pallas_src>
import math
import functools

import jax
import jax.numpy as jnp
from jax.experimental import pallas as pl
from jax.experimental.pallas import tpu as pltpu


# ----------------------------------------------------------------------------
# In-kernel helpers
# ----------------------------------------------------------------------------

def _layer_norm(v, g, b, eps=1e-5):
    # PyTorch nn.LayerNorm default eps=1e-5; math in f32.
    mean = jnp.mean(v, axis=-1, keepdims=True)
    var = jnp.mean((v - mean) ** 2, axis=-1, keepdims=True)
    return (v - mean) * jax.lax.rsqrt(var + eps) * g + b


# ----------------------------------------------------------------------------
# Fused whole-stack kernel: grid=(num_layers,), activation resident in VMEM
# ----------------------------------------------------------------------------

def _encoder_stack_kernel(x_ref, ln1_g_ref, ln1_b_ref,
                          wqkv_ref, bqkv_ref, wo_ref, bo_ref,
                          ln2_g_ref, ln2_b_ref,
                          w1_ref, b1_ref, w2_ref, b2_ref,
                          fin_g_ref, fin_b_ref,
                          o_ref, *, num_heads):
    layer = pl.program_id(0)
    n_layers = pl.num_programs(0)

    B, T, D = o_ref.shape
    H = num_heads
    dh = D // H
    BT = B * T

    # Seed the VMEM-resident activation (the output block) from HBM once.
    @pl.when(layer == 0)
    def _seed():
        o_ref[...] = x_ref[...]

    x = o_ref[...].reshape(BT, D)                       # (B*T, D), f32

    # ---------------- self-attention block (pre-norm) ------------------------
    x2 = _layer_norm(x, ln1_g_ref[0], ln1_b_ref[0])
    # Fused QKV projection, bf16 operands, f32 accumulation. 1/sqrt(dh) is
    # pre-folded into the Q columns of wqkv/bqkv at param-prep time.
    qkv = jnp.dot(x2.astype(jnp.bfloat16), wqkv_ref[0],
                  preferred_element_type=jnp.float32) + bqkv_ref[0]   # (BT, 3D)
    qkv3 = qkv.reshape(B, T, 3 * D)                     # tile-aligned row split
    wo = wo_ref[0]                                      # (D, D) f32 (tiny)

    attn = jnp.zeros((BT, D), jnp.float32)
    # TODO(synk): at larger H/dh replace the unrolled head loop with a single
    # head-batched einsum (kept batch-leading 3-D einsums here, which are the
    # Mosaic-supported pattern; H=4 so the loop is fully unrolled and small).
    for h in range(H):
        qh = qkv3[:, :, h * dh:(h + 1) * dh]                        # (B, T, dh)
        kh = qkv3[:, :, D + h * dh:D + (h + 1) * dh]
        vh = qkv3[:, :, 2 * D + h * dh:2 * D + (h + 1) * dh]
        s = jnp.einsum("bqd,bkd->bqk", qh, kh,
                       preferred_element_type=jnp.float32)          # (B, T, T)
        s = s - jnp.max(s, axis=-1, keepdims=True)
        p = jnp.exp(s)
        p = p / jnp.sum(p, axis=-1, keepdims=True)      # exact softmax (f32)
        ctx = jnp.einsum("bqk,bkd->bqd", p, vh,
                         preferred_element_type=jnp.float32)        # (B, T, dh)
        # Output projection accumulated per head via sublane-aligned row
        # slices of wo (no lane-dim concat).
        attn = attn + jnp.dot(ctx.reshape(BT, dh), wo[h * dh:(h + 1) * dh, :],
                              preferred_element_type=jnp.float32)
    x = x + attn + bo_ref[0]

    # ---------------- feed-forward block (pre-norm) --------------------------
    # The (BT, ff_dim) intermediate never leaves VMEM.
    x2 = _layer_norm(x, ln2_g_ref[0], ln2_b_ref[0])
    hmid = jnp.dot(x2.astype(jnp.bfloat16), w1_ref[0],
                   preferred_element_type=jnp.float32) + b1_ref[0]
    hmid = jnp.maximum(hmid, 0.0)
    y = jnp.dot(hmid.astype(jnp.bfloat16), w2_ref[0],
                preferred_element_type=jnp.float32) + b2_ref[0]
    x = x + y

    # Write back into the resident output block; apply the final LayerNorm on
    # the last layer (only then does the block flush to HBM).
    @pl.when(layer < n_layers - 1)
    def _store():
        o_ref[...] = x.reshape(B, T, D)

    @pl.when(layer == n_layers - 1)
    def _store_final():
        o_ref[...] = _layer_norm(x, fin_g_ref[...], fin_b_ref[...]).reshape(B, T, D)


def _prepare_stacked_params(params, num_heads):
    """Stack per-layer weights along a leading layer axis, fold the attention
    scale into the Q projection, and cast the DMA-heavy weights to bf16."""
    layers = params["layers"]
    D = layers[0]["wqkv"].shape[0]
    dh = D // num_heads
    scale = 1.0 / math.sqrt(dh)

    def stack(name):
        return jnp.stack([lp[name] for lp in layers])   # adds leading L axis

    wqkv = stack("wqkv")                                 # (L, D, 3D)
    bqkv = stack("bqkv")                                 # (L, 1, 3D)
    wqkv = wqkv.at[:, :, :D].multiply(scale)             # fold 1/sqrt(dh) into Q
    bqkv = bqkv.at[:, :, :D].multiply(scale)

    return dict(
        ln1_g=stack("ln1_g"), ln1_b=stack("ln1_b"),       # (L, 1, D) f32
        wqkv=wqkv.astype(jnp.bfloat16),                   # (L, D, 3D) bf16
        bqkv=bqkv,                                        # (L, 1, 3D) f32
        wo=stack("wo"),                                   # (L, D, D) f32 (tiny; keeps
        bo=stack("bo"),                                   #  row slices tile-aligned)
        ln2_g=stack("ln2_g"), ln2_b=stack("ln2_b"),
        ff_w1=stack("ff_w1").astype(jnp.bfloat16),        # (L, D, F) bf16
        ff_b1=stack("ff_b1"),                             # (L, 1, F) f32
        ff_w2=stack("ff_w2").astype(jnp.bfloat16),        # (L, F, D) bf16
        ff_b2=stack("ff_b2"),                             # (L, 1, D) f32
    )


def transformer_encoder_forward(src, params, num_heads):
    """Whole TransformerEncoder forward in ONE pallas_call."""
    B, T, D = src.shape
    L = len(params["layers"])
    F = params["layers"][0]["ff_w1"].shape[1]
    sp = _prepare_stacked_params(params, num_heads)
    kernel = functools.partial(_encoder_stack_kernel, num_heads=num_heads)

    return pl.pallas_call(
        kernel,
        out_shape=jax.ShapeDtypeStruct((B, T, D), src.dtype),
        grid=(L,),
        in_specs=[
            pl.BlockSpec((B, T, D), lambda l: (0, 0, 0)),       # src (fetched once)
            pl.BlockSpec((1, 1, D), lambda l: (l, 0, 0)),       # ln1_g
            pl.BlockSpec((1, 1, D), lambda l: (l, 0, 0)),       # ln1_b
            pl.BlockSpec((1, D, 3 * D), lambda l: (l, 0, 0)),   # wqkv
            pl.BlockSpec((1, 1, 3 * D), lambda l: (l, 0, 0)),   # bqkv
            pl.BlockSpec((1, D, D), lambda l: (l, 0, 0)),       # wo
            pl.BlockSpec((1, 1, D), lambda l: (l, 0, 0)),       # bo
            pl.BlockSpec((1, 1, D), lambda l: (l, 0, 0)),       # ln2_g
            pl.BlockSpec((1, 1, D), lambda l: (l, 0, 0)),       # ln2_b
            pl.BlockSpec((1, D, F), lambda l: (l, 0, 0)),       # ff_w1
            pl.BlockSpec((1, 1, F), lambda l: (l, 0, 0)),       # ff_b1
            pl.BlockSpec((1, F, D), lambda l: (l, 0, 0)),       # ff_w2
            pl.BlockSpec((1, 1, D), lambda l: (l, 0, 0)),       # ff_b2
            pl.BlockSpec((1, D), lambda l: (0, 0)),             # final LN gamma
            pl.BlockSpec((1, D), lambda l: (0, 0)),             # final LN beta
        ],
        # Same output block every step => activation stays VMEM-resident and
        # only flushes to HBM after the last layer.
        out_specs=pl.BlockSpec((B, T, D), lambda l: (0, 0, 0)),
        compiler_params=pltpu.CompilerParams(
            dimension_semantics=("arbitrary",)),
    )(src, sp["ln1_g"], sp["ln1_b"], sp["wqkv"], sp["bqkv"], sp["wo"], sp["bo"],
      sp["ln2_g"], sp["ln2_b"], sp["ff_w1"], sp["ff_b1"], sp["ff_w2"], sp["ff_b2"],
      params["final_ln_g"], params["final_ln_b"])


# ----------------------------------------------------------------------------
# Pure-JAX f32 reference (numerical sanity check vs the PyTorch semantics)
# ----------------------------------------------------------------------------

def _reference_forward(src, params, num_heads):
    HI = jax.lax.Precision.HIGHEST

    def ln(v, g, b):
        m = jnp.mean(v, axis=-1, keepdims=True)
        var = jnp.mean((v - m) ** 2, axis=-1, keepdims=True)
        return (v - m) / jnp.sqrt(var + 1e-5) * g + b

    x = src
    B, T, D = x.shape
    dh = D // num_heads
    for lp in params["layers"]:
        x2 = ln(x, lp["ln1_g"], lp["ln1_b"])
        qkv = jnp.einsum("btd,de->bte", x2, lp["wqkv"], precision=HI) + lp["bqkv"]
        q, k, v = jnp.split(qkv, 3, axis=-1)

        def heads(t):
            return t.reshape(B, T, num_heads, dh).transpose(0, 2, 1, 3)

        qh, kh, vh = heads(q), heads(k), heads(v)
        s = jnp.einsum("bhqd,bhkd->bhqk", qh / math.sqrt(dh), kh, precision=HI)
        p_attn = jax.nn.softmax(s, axis=-1)
        o = jnp.einsum("bhqk,bhkd->bhqd", p_attn, vh, precision=HI)
        o = o.transpose(0, 2, 1, 3).reshape(B, T, D)
        o = jnp.einsum("btd,de->bte", o, lp["wo"], precision=HI) + lp["bo"]
        x = x + o

        x2 = ln(x, lp["ln2_g"], lp["ln2_b"])
        hmid = jnp.maximum(
            jnp.einsum("btd,df->btf", x2, lp["ff_w1"], precision=HI) + lp["ff_b1"],
            0.0)
        y = jnp.einsum("btf,fd->btd", hmid, lp["ff_w2"], precision=HI) + lp["ff_b2"]
        x = x + y
    return ln(x, params["final_ln_g"], params["final_ln_b"])


# ----------------------------------------------------------------------------
# Deterministic parameter init
# ----------------------------------------------------------------------------

def _init_layer(key, d_model, dim_ff):
    ks = jax.random.split(key, 4)
    std = 0.02
    return dict(
        wqkv=std * jax.random.normal(ks[0], (d_model, 3 * d_model), jnp.float32),
        bqkv=jnp.zeros((1, 3 * d_model), jnp.float32),
        wo=std * jax.random.normal(ks[1], (d_model, d_model), jnp.float32),
        bo=jnp.zeros((1, d_model), jnp.float32),
        ff_w1=std * jax.random.normal(ks[2], (d_model, dim_ff), jnp.float32),
        ff_b1=jnp.zeros((1, dim_ff), jnp.float32),
        ff_w2=std * jax.random.normal(ks[3], (dim_ff, d_model), jnp.float32),
        ff_b2=jnp.zeros((1, d_model), jnp.float32),
        ln1_g=jnp.ones((1, d_model), jnp.float32),
        ln1_b=jnp.zeros((1, d_model), jnp.float32),
        ln2_g=jnp.ones((1, d_model), jnp.float32),
        ln2_b=jnp.zeros((1, d_model), jnp.float32),
    )


def init_encoder_params(key, num_layers, d_model, dim_ff):
    keys = jax.random.split(key, num_layers)
    return dict(
        layers=[_init_layer(keys[i], d_model, dim_ff) for i in range(num_layers)],
        final_ln_g=jnp.ones((1, d_model), jnp.float32),
        final_ln_b=jnp.zeros((1, d_model), jnp.float32),
    )


# ----------------------------------------------------------------------------
# Main
# ----------------------------------------------------------------------------

if __name__ == "__main__":
    # Config consistent with the module: d_model=32, nhead=4, ff_dim=2048
    # (hardcoded in TransformerEncoder), num_layers=2, B=2, T=8.
    d_model, nhead, dim_ff, num_layers = 32, 4, 2048, 2
    B, T = 2, 8

    key = jax.random.PRNGKey(0)
    k_src, k_params = jax.random.split(key, 2)

    src = jax.random.normal(k_src, (B, T, d_model), jnp.float32)
    params = init_encoder_params(k_params, num_layers, d_model, dim_ff)

    fwd = jax.jit(functools.partial(transformer_encoder_forward, num_heads=nhead))
    out = jax.block_until_ready(fwd(src, params))

    assert out.shape == (B, T, d_model)
    assert bool(jnp.all(jnp.isfinite(out)))

    ref = _reference_forward(src, params, nhead)
    max_err = float(jnp.max(jnp.abs(out - ref)))
    # bf16 weights / matmul operands (f32 accumulation) vs f32 reference.
    assert max_err < 2e-2, f"mismatch vs reference: {max_err}"

    print("KERNEL_OK")
</pallas_src>

<mosaic_0001>
module attributes {stable_mosaic.version = 11 : i64} {
  func.func @_encoder_stack_kernel(%arg0: i32, %arg1: memref<2x8x32xf32, #tpu.memory_space<vmem>>, %arg2: memref<1x1x32xf32, #tpu.memory_space<vmem>>, %arg3: memref<1x1x32xf32, #tpu.memory_space<vmem>>, %arg4: memref<1x32x96xbf16, #tpu.memory_space<vmem>>, %arg5: memref<1x1x96xf32, #tpu.memory_space<vmem>>, %arg6: memref<1x32x32xf32, #tpu.memory_space<vmem>>, %arg7: memref<1x1x32xf32, #tpu.memory_space<vmem>>, %arg8: memref<1x1x32xf32, #tpu.memory_space<vmem>>, %arg9: memref<1x1x32xf32, #tpu.memory_space<vmem>>, %arg10: memref<1x32x2048xbf16, #tpu.memory_space<vmem>>, %arg11: memref<1x1x2048xf32, #tpu.memory_space<vmem>>, %arg12: memref<1x2048x32xbf16, #tpu.memory_space<vmem>>, %arg13: memref<1x1x32xf32, #tpu.memory_space<vmem>>, %arg14: memref<1x32xf32, #tpu.memory_space<vmem>>, %arg15: memref<1x32xf32, #tpu.memory_space<vmem>>, %arg16: memref<2x8x32xf32, #tpu.memory_space<vmem>>) attributes {dimension_semantics = [#tpu.dimension_semantics<arbitrary>], iteration_bounds = array<i64: 2>, scalar_prefetch = 0 : i64, scratch_operands = 0 : i64, tpu.core_type = #tpu.core_type<tc>, window_params = [{pipeline_mode = #tpu.pipeline_mode<synchronous>, transform_indices = @transform_0, window_bounds = array<i64: 2, 8, 32>}, {transform_indices = @transform_1, window_bounds = array<i64: 1, 1, 32>}, {transform_indices = @transform_2, window_bounds = array<i64: 1, 1, 32>}, {transform_indices = @transform_3, window_bounds = array<i64: 1, 32, 96>}, {transform_indices = @transform_4, window_bounds = array<i64: 1, 1, 96>}, {transform_indices = @transform_5, window_bounds = array<i64: 1, 32, 32>}, {transform_indices = @transform_6, window_bounds = array<i64: 1, 1, 32>}, {transform_indices = @transform_7, window_bounds = array<i64: 1, 1, 32>}, {transform_indices = @transform_8, window_bounds = array<i64: 1, 1, 32>}, {transform_indices = @transform_9, window_bounds = array<i64: 1, 32, 2048>}, {transform_indices = @transform_10, window_bounds = array<i64: 1, 1, 2048>}, {transform_indices = @transform_11, window_bounds = array<i64: 1, 2048, 32>}, {transform_indices = @transform_12, window_bounds = array<i64: 1, 1, 32>}, {pipeline_mode = #tpu.pipeline_mode<synchronous>, transform_indices = @transform_13, window_bounds = array<i64: 1, 32>}, {pipeline_mode = #tpu.pipeline_mode<synchronous>, transform_indices = @transform_14, window_bounds = array<i64: 1, 32>}, {pipeline_mode = #tpu.pipeline_mode<synchronous>, transform_indices = @transform_15, window_bounds = array<i64: 2, 8, 32>}]} {
    %c0_i32 = arith.constant 0 : i32
    %0 = arith.cmpi eq, %arg0, %c0_i32 : i32
    %1 = arith.extui %0 : i1 to i32
    %c0_i32_0 = arith.constant 0 : i32
    %2 = arith.cmpi ne, %1, %c0_i32_0 : i32
    scf.if %2 {
      %c0_76 = arith.constant 0 : index
      %c0_77 = arith.constant 0 : index
      %c0_78 = arith.constant 0 : index
      %171 = vector.load %arg1[%c0_76, %c0_77, %c0_78] : memref<2x8x32xf32, #tpu.memory_space<vmem>>, vector<2x8x32xf32>
      %c0_79 = arith.constant 0 : index
      %c0_80 = arith.constant 0 : index
      %c0_81 = arith.constant 0 : index
      %172 = vector.load %arg16[%c0_79, %c0_80, %c0_81] : memref<2x8x32xf32, #tpu.memory_space<vmem>>, vector<2x8x32xf32>
      tpu.vector_store %arg16[%c0_79, %c0_80, %c0_81], %171 {strides = array<i32>} : memref<2x8x32xf32, #tpu.memory_space<vmem>>, vector<2x8x32xf32>,
    } else {
    }
    %c0 = arith.constant 0 : index
    %c0_1 = arith.constant 0 : index
    %c0_2 = arith.constant 0 : index
    %3 = vector.load %arg16[%c0, %c0_1, %c0_2] : memref<2x8x32xf32, #tpu.memory_space<vmem>>, vector<2x8x32xf32>
    %4 = vector.shape_cast %3 : vector<2x8x32xf32> to vector<16x32xf32>
    %c0_3 = arith.constant 0 : index
    %c0_4 = arith.constant 0 : index
    %c0_5 = arith.constant 0 : index
    %5 = vector.load %arg2[%c0_3, %c0_4, %c0_5] : memref<1x1x32xf32, #tpu.memory_space<vmem>>, vector<1x1x32xf32>
    %6 = vector.shape_cast %5 : vector<1x1x32xf32> to vector<1x32xf32>
    %c0_6 = arith.constant 0 : index
    %c0_7 = arith.constant 0 : index
    %c0_8 = arith.constant 0 : index
    %7 = vector.load %arg3[%c0_6, %c0_7, %c0_8] : memref<1x1x32xf32, #tpu.memory_space<vmem>>, vector<1x1x32xf32>
    %8 = vector.shape_cast %7 : vector<1x1x32xf32> to vector<1x32xf32>
    %cst = arith.constant dense<0.000000e+00> : vector<16xf32>
    %9 = vector.multi_reduction <add>, %4, %cst [1] : vector<16x32xf32> to vector<16xf32>
    %10 = vector.shape_cast %9 : vector<16xf32> to vector<16x1xf32>
    %cst_9 = arith.constant 3.200000e+01 : f32
    %11 = vector.broadcast %cst_9 : f32 to vector<16x1xf32>
    %12 = arith.divf %10, %11 : vector<16x1xf32>
    %13 = vector.broadcast %12 : vector<16x1xf32> to vector<16x32xf32>
    %14 = arith.subf %4, %13 : vector<16x32xf32>
    %15 = arith.mulf %14, %14 : vector<16x32xf32>
    %cst_10 = arith.constant dense<0.000000e+00> : vector<16xf32>
    %16 = vector.multi_reduction <add>, %15, %cst_10 [1] : vector<16x32xf32> to vector<16xf32>
    %17 = vector.shape_cast %16 : vector<16xf32> to vector<16x1xf32>
    %cst_11 = arith.constant 3.200000e+01 : f32
    %18 = vector.broadcast %cst_11 : f32 to vector<16x1xf32>
    %19 = arith.divf %17, %18 : vector<16x1xf32>
    %20 = vector.broadcast %12 : vector<16x1xf32> to vector<16x32xf32>
    %21 = arith.subf %4, %20 : vector<16x32xf32>
    %cst_12 = arith.constant 9.99999974E-6 : f32
    %22 = vector.broadcast %cst_12 : f32 to vector<16x1xf32>
    %23 = arith.addf %19, %22 : vector<16x1xf32>
    %24 = math.rsqrt %23 : vector<16x1xf32>
    %25 = vector.broadcast %24 : vector<16x1xf32> to vector<16x32xf32>
    %26 = arith.mulf %21, %25 : vector<16x32xf32>
    %27 = vector.broadcast %6 : vector<1x32xf32> to vector<16x32xf32>
    %28 = arith.mulf %26, %27 : vector<16x32xf32>
    %29 = vector.broadcast %8 : vector<1x32xf32> to vector<16x32xf32>
    %30 = arith.addf %28, %29 : vector<16x32xf32>
    %31 = arith.truncf %30 : vector<16x32xf32> to vector<16x32xbf16>
    %c0_13 = arith.constant 0 : index
    %c0_14 = arith.constant 0 : index
    %c0_15 = arith.constant 0 : index
    %32 = vector.load %arg4[%c0_13, %c0_14, %c0_15] : memref<1x32x96xbf16, #tpu.memory_space<vmem>>, vector<1x32x96xbf16>
    %33 = vector.shape_cast %32 : vector<1x32x96xbf16> to vector<32x96xbf16>
    %cst_16 = arith.constant dense<0.000000e+00> : vector<16x96xf32>
    %34 = tpu.matmul %31, %33, %cst_16 {dimension_numbers = #tpu.dot_dimension_numbers<[1], [0], [0], [1], [0, 0, 1, 1], [], []>} : vector<16x32xbf16>, vector<32x96xbf16>, vector<16x96xf32> -> vector<16x96xf32>
    %c0_17 = arith.constant 0 : index
    %c0_18 = arith.constant 0 : index
    %c0_19 = arith.constant 0 : index
    %35 = vector.load %arg5[%c0_17, %c0_18, %c0_19] : memref<1x1x96xf32, #tpu.memory_space<vmem>>, vector<1x1x96xf32>
    %36 = vector.shape_cast %35 : vector<1x1x96xf32> to vector<1x96xf32>
    %37 = vector.broadcast %36 : vector<1x96xf32> to vector<16x96xf32>
    %38 = arith.addf %34, %37 : vector<16x96xf32>
    %39 = vector.shape_cast %38 : vector<16x96xf32> to vector<2x8x96xf32>
    %c0_20 = arith.constant 0 : index
    %c0_21 = arith.constant 0 : index
    %c0_22 = arith.constant 0 : index
    %40 = vector.load %arg6[%c0_20, %c0_21, %c0_22] : memref<1x32x32xf32, #tpu.memory_space<vmem>>, vector<1x32x32xf32>
    %41 = vector.shape_cast %40 : vector<1x32x32xf32> to vector<32x32xf32>
    %cst_23 = arith.constant 0.000000e+00 : f32
    %42 = vector.broadcast %cst_23 : f32 to vector<16x32xf32>
    %43 = vector.extract_strided_slice %39 {offsets = [0, 0, 0], sizes = [2, 8, 8], strides = [1, 1, 1]} : vector<2x8x96xf32> to vector<2x8x8xf32>
    %44 = vector.extract_strided_slice %39 {offsets = [0, 0, 32], sizes = [2, 8, 8], strides = [1, 1, 1]} : vector<2x8x96xf32> to vector<2x8x8xf32>
    %45 = vector.extract_strided_slice %39 {offsets = [0, 0, 64], sizes = [2, 8, 8], strides = [1, 1, 1]} : vector<2x8x96xf32> to vector<2x8x8xf32>
    "tpu.trace_start"() <{level = 10 : i32, message = "bqd,bkd->bqk"}> : () -> ()
    %cst_24 = arith.constant dense<0.000000e+00> : vector<2x8x8xf32>
    %46 = tpu.matmul %43, %44, %cst_24 {dimension_numbers = #tpu.dot_dimension_numbers<[2], [2], [1], [1], [0, 0, 0, 1, 1, 1], [0], [0]>} : vector<2x8x8xf32>, vector<2x8x8xf32>, vector<2x8x8xf32> -> vector<2x8x8xf32>
    "tpu.trace_stop"() : () -> ()
    %cst_25 = arith.constant dense<0xFF800000> : vector<2x8xf32>
    %47 = vector.multi_reduction <maximumf>, %46, %cst_25 [2] : vector<2x8x8xf32> to vector<2x8xf32>
    %48 = vector.shape_cast %47 : vector<2x8xf32> to vector<2x8x1xf32>
    %49 = vector.broadcast %48 : vector<2x8x1xf32> to vector<2x8x8xf32>
    %50 = arith.subf %46, %49 : vector<2x8x8xf32>
    %51 = math.exp %50 : vector<2x8x8xf32>
    %cst_26 = arith.constant dense<0.000000e+00> : vector<2x8xf32>
    %52 = vector.multi_reduction <add>, %51, %cst_26 [2] : vector<2x8x8xf32> to vector<2x8xf32>
    %53 = vector.shape_cast %52 : vector<2x8xf32> to vector<2x8x1xf32>
    %54 = vector.broadcast %53 : vector<2x8x1xf32> to vector<2x8x8xf32>
    %55 = arith.divf %51, %54 : vector<2x8x8xf32>
    "tpu.trace_start"() <{level = 10 : i32, message = "bqk,bkd->bqd"}> : () -> ()
    %cst_27 = arith.constant dense<0.000000e+00> : vector<2x8x8xf32>
    %56 = tpu.matmul %55, %45, %cst_27 {dimension_numbers = #tpu.dot_dimension_numbers<[2], [1], [1], [2], [0, 0, 0, 1, 1, 2], [0], [0]>} : vector<2x8x8xf32>, vector<2x8x8xf32>, vector<2x8x8xf32> -> vector<2x8x8xf32>
    "tpu.trace_stop"() : () -> ()
    %57 = vector.shape_cast %56 : vector<2x8x8xf32> to vector<16x8xf32>
    %58 = vector.extract_strided_slice %41 {offsets = [0, 0], sizes = [8, 32], strides = [1, 1]} : vector<32x32xf32> to vector<8x32xf32>
    %cst_28 = arith.constant dense<0.000000e+00> : vector<16x32xf32>
    %59 = tpu.matmul %57, %58, %cst_28 {dimension_numbers = #tpu.dot_dimension_numbers<[1], [0], [0], [1], [0, 0, 1, 1], [], []>} : vector<16x8xf32>, vector<8x32xf32>, vector<16x32xf32> -> vector<16x32xf32>
    %60 = arith.addf %42, %59 : vector<16x32xf32>
    %61 = vector.extract_strided_slice %39 {offsets = [0, 0, 8], sizes = [2, 8, 8], strides = [1, 1, 1]} : vector<2x8x96xf32> to vector<2x8x8xf32>
    %62 = vector.extract_strided_slice %39 {offsets = [0, 0, 40], sizes = [2, 8, 8], strides = [1, 1, 1]} : vector<2x8x96xf32> to vector<2x8x8xf32>
    %63 = vector.extract_strided_slice %39 {offsets = [0, 0, 72], sizes = [2, 8, 8], strides = [1, 1, 1]} : vector<2x8x96xf32> to vector<2x8x8xf32>
    "tpu.trace_start"() <{level = 10 : i32, message = "bqd,bkd->bqk"}> : () -> ()
    %cst_29 = arith.constant dense<0.000000e+00> : vector<2x8x8xf32>
    %64 = tpu.matmul %61, %62, %cst_29 {dimension_numbers = #tpu.dot_dimension_numbers<[2], [2], [1], [1], [0, 0, 0, 1, 1, 1], [0], [0]>} : vector<2x8x8xf32>, vector<2x8x8xf32>, vector<2x8x8xf32> -> vector<2x8x8xf32>
    "tpu.trace_stop"() : () -> ()
    %cst_30 = arith.constant dense<0xFF800000> : vector<2x8xf32>
    %65 = vector.multi_reduction <maximumf>, %64, %cst_30 [2] : vector<2x8x8xf32> to vector<2x8xf32>
    %66 = vector.shape_cast %65 : vector<2x8xf32> to vector<2x8x1xf32>
    %67 = vector.broadcast %66 : vector<2x8x1xf32> to vector<2x8x8xf32>
    %68 = arith.subf %64, %67 : vector<2x8x8xf32>
    %69 = math.exp %68 : vector<2x8x8xf32>
    %cst_31 = arith.constant dense<0.000000e+00> : vector<2x8xf32>
    %70 = vector.multi_reduction <add>, %69, %cst_31 [2] : vector<2x8x8xf32> to vector<2x8xf32>
    %71 = vector.shape_cast %70 : vector<2x8xf32> to vector<2x8x1xf32>
    %72 = vector.broadcast %71 : vector<2x8x1xf32> to vector<2x8x8xf32>
    %73 = arith.divf %69, %72 : vector<2x8x8xf32>
    "tpu.trace_start"() <{level = 10 : i32, message = "bqk,bkd->bqd"}> : () -> ()
    %cst_32 = arith.constant dense<0.000000e+00> : vector<2x8x8xf32>
    %74 = tpu.matmul %73, %63, %cst_32 {dimension_numbers = #tpu.dot_dimension_numbers<[2], [1], [1], [2], [0, 0, 0, 1, 1, 2], [0], [0]>} : vector<2x8x8xf32>, vector<2x8x8xf32>, vector<2x8x8xf32> -> vector<2x8x8xf32>
    "tpu.trace_stop"() : () -> ()
    %75 = vector.shape_cast %74 : vector<2x8x8xf32> to vector<16x8xf32>
    %76 = vector.extract_strided_slice %41 {offsets = [8, 0], sizes = [8, 32], strides = [1, 1]} : vector<32x32xf32> to vector<8x32xf32>
    %cst_33 = arith.constant dense<0.000000e+00> : vector<16x32xf32>
    %77 = tpu.matmul %75, %76, %cst_33 {dimension_numbers = #tpu.dot_dimension_numbers<[1], [0], [0], [1], [0, 0, 1, 1], [], []>} : vector<16x8xf32>, vector<8x32xf32>, vector<16x32xf32> -> vector<16x32xf32>
    %78 = arith.addf %60, %77 : vector<16x32xf32>
    %79 = vector.extract_strided_slice %39 {offsets = [0, 0, 16], sizes = [2, 8, 8], strides = [1, 1, 1]} : vector<2x8x96xf32> to vector<2x8x8xf32>
    %80 = vector.extract_strided_slice %39 {offsets = [0, 0, 48], sizes = [2, 8, 8], strides = [1, 1, 1]} : vector<2x8x96xf32> to vector<2x8x8xf32>
    %81 = vector.extract_strided_slice %39 {offsets = [0, 0, 80], sizes = [2, 8, 8], strides = [1, 1, 1]} : vector<2x8x96xf32> to vector<2x8x8xf32>
    "tpu.trace_start"() <{level = 10 : i32, message = "bqd,bkd->bqk"}> : () -> ()
    %cst_34 = arith.constant dense<0.000000e+00> : vector<2x8x8xf32>
    %82 = tpu.matmul %79, %80, %cst_34 {dimension_numbers = #tpu.dot_dimension_numbers<[2], [2], [1], [1], [0, 0, 0, 1, 1, 1], [0], [0]>} : vector<2x8x8xf32>, vector<2x8x8xf32>, vector<2x8x8xf32> -> vector<2x8x8xf32>
    "tpu.trace_stop"() : () -> ()
    %cst_35 = arith.constant dense<0xFF800000> : vector<2x8xf32>
    %83 = vector.multi_reduction <maximumf>, %82, %cst_35 [2] : vector<2x8x8xf32> to vector<2x8xf32>
    %84 = vector.shape_cast %83 : vector<2x8xf32> to vector<2x8x1xf32>
    %85 = vector.broadcast %84 : vector<2x8x1xf32> to vector<2x8x8xf32>
    %86 = arith.subf %82, %85 : vector<2x8x8xf32>
    %87 = math.exp %86 : vector<2x8x8xf32>
    %cst_36 = arith.constant dense<0.000000e+00> : vector<2x8xf32>
    %88 = vector.multi_reduction <add>, %87, %cst_36 [2] : vector<2x8x8xf32> to vector<2x8xf32>
    %89 = vector.shape_cast %88 : vector<2x8xf32> to vector<2x8x1xf32>
    %90 = vector.broadcast %89 : vector<2x8x1xf32> to vector<2x8x8xf32>
    %91 = arith.divf %87, %90 : vector<2x8x8xf32>
    "tpu.trace_start"() <{level = 10 : i32, message = "bqk,bkd->bqd"}> : () -> ()
    %cst_37 = arith.constant dense<0.000000e+00> : vector<2x8x8xf32>
    %92 = tpu.matmul %91, %81, %cst_37 {dimension_numbers = #tpu.dot_dimension_numbers<[2], [1], [1], [2], [0, 0, 0, 1, 1, 2], [0], [0]>} : vector<2x8x8xf32>, vector<2x8x8xf32>, vector<2x8x8xf32> -> vector<2x8x8xf32>
    "tpu.trace_stop"() : () -> ()
    %93 = vector.shape_cast %92 : vector<2x8x8xf32> to vector<16x8xf32>
    %94 = vector.extract_strided_slice %41 {offsets = [16, 0], sizes = [8, 32], strides = [1, 1]} : vector<32x32xf32> to vector<8x32xf32>
    %cst_38 = arith.constant dense<0.000000e+00> : vector<16x32xf32>
    %95 = tpu.matmul %93, %94, %cst_38 {dimension_numbers = #tpu.dot_dimension_numbers<[1], [0], [0], [1], [0, 0, 1, 1], [], []>} : vector<16x8xf32>, vector<8x32xf32>, vector<16x32xf32> -> vector<16x32xf32>
    %96 = arith.addf %78, %95 : vector<16x32xf32>
    %97 = vector.extract_strided_slice %39 {offsets = [0, 0, 24], sizes = [2, 8, 8], strides = [1, 1, 1]} : vector<2x8x96xf32> to vector<2x8x8xf32>
    %98 = vector.extract_strided_slice %39 {offsets = [0, 0, 56], sizes = [2, 8, 8], strides = [1, 1, 1]} : vector<2x8x96xf32> to vector<2x8x8xf32>
    %99 = vector.extract_strided_slice %39 {offsets = [0, 0, 88], sizes = [2, 8, 8], strides = [1, 1, 1]} : vector<2x8x96xf32> to vector<2x8x8xf32>
    "tpu.trace_start"() <{level = 10 : i32, message = "bqd,bkd->bqk"}> : () -> ()
    %cst_39 = arith.constant dense<0.000000e+00> : vector<2x8x8xf32>
    %100 = tpu.matmul %97, %98, %cst_39 {dimension_numbers = #tpu.dot_dimension_numbers<[2], [2], [1], [1], [0, 0, 0, 1, 1, 1], [0], [0]>} : vector<2x8x8xf32>, vector<2x8x8xf32>, vector<2x8x8xf32> -> vector<2x8x8xf32>
    "tpu.trace_stop"() : () -> ()
    %cst_40 = arith.constant dense<0xFF800000> : vector<2x8xf32>
    %101 = vector.multi_reduction <maximumf>, %100, %cst_40 [2] : vector<2x8x8xf32> to vector<2x8xf32>
    %102 = vector.shape_cast %101 : vector<2x8xf32> to vector<2x8x1xf32>
    %103 = vector.broadcast %102 : vector<2x8x1xf32> to vector<2x8x8xf32>
    %104 = arith.subf %100, %103 : vector<2x8x8xf32>
    %105 = math.exp %104 : vector<2x8x8xf32>
    %cst_41 = arith.constant dense<0.000000e+00> : vector<2x8xf32>
    %106 = vector.multi_reduction <add>, %105, %cst_41 [2] : vector<2x8x8xf32> to vector<2x8xf32>
    %107 = vector.shape_cast %106 : vector<2x8xf32> to vector<2x8x1xf32>
    %108 = vector.broadcast %107 : vector<2x8x1xf32> to vector<2x8x8xf32>
    %109 = arith.divf %105, %108 : vector<2x8x8xf32>
    "tpu.trace_start"() <{level = 10 : i32, message = "bqk,bkd->bqd"}> : () -> ()
    %cst_42 = arith.constant dense<0.000000e+00> : vector<2x8x8xf32>
    %110 = tpu.matmul %109, %99, %cst_42 {dimension_numbers = #tpu.dot_dimension_numbers<[2], [1], [1], [2], [0, 0, 0, 1, 1, 2], [0], [0]>} : vector<2x8x8xf32>, vector<2x8x8xf32>, vector<2x8x8xf32> -> vector<2x8x8xf32>
    "tpu.trace_stop"() : () -> ()
    %111 = vector.shape_cast %110 : vector<2x8x8xf32> to vector<16x8xf32>
    %112 = vector.extract_strided_slice %41 {offsets = [24, 0], sizes = [8, 32], strides = [1, 1]} : vector<32x32xf32> to vector<8x32xf32>
    %cst_43 = arith.constant dense<0.000000e+00> : vector<16x32xf32>
    %113 = tpu.matmul %111, %112, %cst_43 {dimension_numbers = #tpu.dot_dimension_numbers<[1], [0], [0], [1], [0, 0, 1, 1], [], []>} : vector<16x8xf32>, vector<8x32xf32>, vector<16x32xf32> -> vector<16x32xf32>
    %114 = arith.addf %96, %113 : vector<16x32xf32>
    %115 = arith.addf %4, %114 : vector<16x32xf32>
    %c0_44 = arith.constant 0 : index
    %c0_45 = arith.constant 0 : index
    %c0_46 = arith.constant 0 : index
    %116 = vector.load %arg7[%c0_44, %c0_45, %c0_46] : memref<1x1x32xf32, #tpu.memory_space<vmem>>, vector<1x1x32xf32>
    %117 = vector.shape_cast %116 : vector<1x1x32xf32> to vector<1x32xf32>
    %118 = vector.broadcast %117 : vector<1x32xf32> to vector<16x32xf32>
    %119 = arith.addf %115, %118 : vector<16x32xf32>
    %c0_47 = arith.constant 0 : index
    %c0_48 = arith.constant 0 : index
    %c0_49 = arith.constant 0 : index
    %120 = vector.load %arg8[%c0_47, %c0_48, %c0_49] : memref<1x1x32xf32, #tpu.memory_space<vmem>>, vector<1x1x32xf32>
    %121 = vector.shape_cast %120 : vector<1x1x32xf32> to vector<1x32xf32>
    %c0_50 = arith.constant 0 : index
    %c0_51 = arith.constant 0 : index
    %c0_52 = arith.constant 0 : index
    %122 = vector.load %arg9[%c0_50, %c0_51, %c0_52] : memref<1x1x32xf32, #tpu.memory_space<vmem>>, vector<1x1x32xf32>
    %123 = vector.shape_cast %122 : vector<1x1x32xf32> to vector<1x32xf32>
    %cst_53 = arith.constant dense<0.000000e+00> : vector<16xf32>
    %124 = vector.multi_reduction <add>, %119, %cst_53 [1] : vector<16x32xf32> to vector<16xf32>
    %125 = vector.shape_cast %124 : vector<16xf32> to vector<16x1xf32>
    %cst_54 = arith.constant 3.200000e+01 : f32
    %126 = vector.broadcast %cst_54 : f32 to vector<16x1xf32>
    %127 = arith.divf %125, %126 : vector<16x1xf32>
    %128 = vector.broadcast %127 : vector<16x1xf32> to vector<16x32xf32>
    %129 = arith.subf %119, %128 : vector<16x32xf32>
    %130 = arith.mulf %129, %129 : vector<16x32xf32>
    %cst_55 = arith.constant dense<0.000000e+00> : vector<16xf32>
    %131 = vector.multi_reduction <add>, %130, %cst_55 [1] : vector<16x32xf32> to vector<16xf32>
    %132 = vector.shape_cast %131 : vector<16xf32> to vector<16x1xf32>
    %cst_56 = arith.constant 3.200000e+01 : f32
    %133 = vector.broadcast %cst_56 : f32 to vector<16x1xf32>
    %134 = arith.divf %132, %133 : vector<16x1xf32>
    %135 = vector.broadcast %127 : vector<16x1xf32> to vector<16x32xf32>
    %136 = arith.subf %119, %135 : vector<16x32xf32>
    %cst_57 = arith.constant 9.99999974E-6 : f32
    %137 = vector.broadcast %cst_57 : f32 to vector<16x1xf32>
    %138 = arith.addf %134, %137 : vector<16x1xf32>
    %139 = math.rsqrt %138 : vector<16x1xf32>
    %140 = vector.broadcast %139 : vector<16x1xf32> to vector<16x32xf32>
    %141 = arith.mulf %136, %140 : vector<16x32xf32>
    %142 = vector.broadcast %121 : vector<1x32xf32> to vector<16x32xf32>
    %143 = arith.mulf %141, %142 : vector<16x32xf32>
    %144 = vector.broadcast %123 : vector<1x32xf32> to vector<16x32xf32>
    %145 = arith.addf %143, %144 : vector<16x32xf32>
    %146 = arith.truncf %145 : vector<16x32xf32> to vector<16x32xbf16>
    %c0_58 = arith.constant 0 : index
    %c0_59 = arith.constant 0 : index
    %c0_60 = arith.constant 0 : index
    %147 = vector.load %arg10[%c0_58, %c0_59, %c0_60] : memref<1x32x2048xbf16, #tpu.memory_space<vmem>>, vector<1x32x2048xbf16>
    %148 = vector.shape_cast %147 : vector<1x32x2048xbf16> to vector<32x2048xbf16>
    %cst_61 = arith.constant dense<0.000000e+00> : vector<16x2048xf32>
    %149 = tpu.matmul %146, %148, %cst_61 {dimension_numbers = #tpu.dot_dimension_numbers<[1], [0], [0], [1], [0, 0, 1, 1], [], []>} : vector<16x32xbf16>, vector<32x2048xbf16>, vector<16x2048xf32> -> vector<16x2048xf32>
    %c0_62 = arith.constant 0 : index
    %c0_63 = arith.constant 0 : index
    %c0_64 = arith.constant 0 : index
    %150 = vector.load %arg11[%c0_62, %c0_63, %c0_64] : memref<1x1x2048xf32, #tpu.memory_space<vmem>>, vector<1x1x2048xf32>
    %151 = vector.shape_cast %150 : vector<1x1x2048xf32> to vector<1x2048xf32>
    %152 = vector.broadcast %151 : vector<1x2048xf32> to vector<16x2048xf32>
    %153 = arith.addf %149, %152 : vector<16x2048xf32>
    %cst_65 = arith.constant 0.000000e+00 : f32
    %154 = vector.broadcast %cst_65 : f32 to vector<16x2048xf32>
    %155 = arith.maximumf %153, %154 : vector<16x2048xf32>
    %156 = arith.truncf %155 : vector<16x2048xf32> to vector<16x2048xbf16>
    %c0_66 = arith.constant 0 : index
    %c0_67 = arith.constant 0 : index
    %c0_68 = arith.constant 0 : index
    %157 = vector.load %arg12[%c0_66, %c0_67, %c0_68] : memref<1x2048x32xbf16, #tpu.memory_space<vmem>>, vector<1x2048x32xbf16>
    %158 = vector.shape_cast %157 : vector<1x2048x32xbf16> to vector<2048x32xbf16>
    %cst_69 = arith.constant dense<0.000000e+00> : vector<16x32xf32>
    %159 = tpu.matmul %156, %158, %cst_69 {dimension_numbers = #tpu.dot_dimension_numbers<[1], [0], [0], [1], [0, 0, 1, 1], [], []>} : vector<16x2048xbf16>, vector<2048x32xbf16>, vector<16x32xf32> -> vector<16x32xf32>
    %c0_70 = arith.constant 0 : index
    %c0_71 = arith.constant 0 : index
    %c0_72 = arith.constant 0 : index
    %160 = vector.load %arg13[%c0_70, %c0_71, %c0_72] : memref<1x1x32xf32, #tpu.memory_space<vmem>>, vector<1x1x32xf32>
    %161 = vector.shape_cast %160 : vector<1x1x32xf32> to vector<1x32xf32>
    %162 = vector.broadcast %161 : vector<1x32xf32> to vector<16x32xf32>
    %163 = arith.addf %159, %162 : vector<16x32xf32>
    %164 = arith.addf %119, %163 : vector<16x32xf32>
    %c1_i32 = arith.constant 1 : i32
    %165 = arith.cmpi slt, %arg0, %c1_i32 : i32
    %166 = arith.extui %165 : i1 to i32
    %c0_i32_73 = arith.constant 0 : i32
    %167 = arith.cmpi ne, %166, %c0_i32_73 : i32
    scf.if %167 {
      %171 = vector.shape_cast %164 : vector<16x32xf32> to vector<2x8x32xf32>
      %c0_76 = arith.constant 0 : index
      %c0_77 = arith.constant 0 : index
      %c0_78 = arith.constant 0 : index
      %172 = vector.load %arg16[%c0_76, %c0_77, %c0_78] : memref<2x8x32xf32, #tpu.memory_space<vmem>>, vector<2x8x32xf32>
      tpu.vector_store %arg16[%c0_76, %c0_77, %c0_78], %171 {strides = array<i32>} : memref<2x8x32xf32, #tpu.memory_space<vmem>>, vector<2x8x32xf32>,
    } else {
    }
    %c1_i32_74 = arith.constant 1 : i32
    %168 = arith.cmpi eq, %arg0, %c1_i32_74 : i32
    %169 = arith.extui %168 : i1 to i32
    %c0_i32_75 = arith.constant 0 : i32
    %170 = arith.cmpi ne, %169, %c0_i32_75 : i32
    scf.if %170 {
      %c0_76 = arith.constant 0 : index
      %c0_77 = arith.constant 0 : index
      %171 = vector.load %arg14[%c0_76, %c0_77] : memref<1x32xf32, #tpu.memory_space<vmem>>, vector<1x32xf32>
      %c0_78 = arith.constant 0 : index
      %c0_79 = arith.constant 0 : index
      %172 = vector.load %arg15[%c0_78, %c0_79] : memref<1x32xf32, #tpu.memory_space<vmem>>, vector<1x32xf32>
      %cst_80 = arith.constant dense<0.000000e+00> : vector<16xf32>
      %173 = vector.multi_reduction <add>, %164, %cst_80 [1] : vector<16x32xf32> to vector<16xf32>
      %174 = vector.shape_cast %173 : vector<16xf32> to vector<16x1xf32>
      %cst_81 = arith.constant 3.200000e+01 : f32
      %175 = vector.broadcast %cst_81 : f32 to vector<16x1xf32>
      %176 = arith.divf %174, %175 : vector<16x1xf32>
      %177 = vector.broadcast %176 : vector<16x1xf32> to vector<16x32xf32>
      %178 = arith.subf %164, %177 : vector<16x32xf32>
      %179 = arith.mulf %178, %178 : vector<16x32xf32>
      %cst_82 = arith.constant dense<0.000000e+00> : vector<16xf32>
      %180 = vector.multi_reduction <add>, %179, %cst_82 [1] : vector<16x32xf32> to vector<16xf32>
      %181 = vector.shape_cast %180 : vector<16xf32> to vector<16x1xf32>
      %cst_83 = arith.constant 3.200000e+01 : f32
      %182 = vector.broadcast %cst_83 : f32 to vector<16x1xf32>
      %183 = arith.divf %181, %182 : vector<16x1xf32>
      %184 = vector.broadcast %176 : vector<16x1xf32> to vector<16x32xf32>
      %185 = arith.subf %164, %184 : vector<16x32xf32>
      %cst_84 = arith.constant 9.99999974E-6 : f32
      %186 = vector.broadcast %cst_84 : f32 to vector<16x1xf32>
      %187 = arith.addf %183, %186 : vector<16x1xf32>
      %188 = math.rsqrt %187 : vector<16x1xf32>
      %189 = vector.broadcast %188 : vector<16x1xf32> to vector<16x32xf32>
      %190 = arith.mulf %185, %189 : vector<16x32xf32>
      %191 = vector.broadcast %171 : vector<1x32xf32> to vector<16x32xf32>
      %192 = arith.mulf %190, %191 : vector<16x32xf32>
      %193 = vector.broadcast %172 : vector<1x32xf32> to vector<16x32xf32>
      %194 = arith.addf %192, %193 : vector<16x32xf32>
      %195 = vector.shape_cast %194 : vector<16x32xf32> to vector<2x8x32xf32>
      %c0_85 = arith.constant 0 : index
      %c0_86 = arith.constant 0 : index
      %c0_87 = arith.constant 0 : index
      %196 = vector.load %arg16[%c0_85, %c0_86, %c0_87] : memref<2x8x32xf32, #tpu.memory_space<vmem>>, vector<2x8x32xf32>
      tpu.vector_store %arg16[%c0_85, %c0_86, %c0_87], %195 {strides = array<i32>} : memref<2x8x32xf32, #tpu.memory_space<vmem>>, vector<2x8x32xf32>,
    } else {
    }
    return
  }
  func.func @transform_0(%arg0: i32) -> (i32, i32, i32) {
    %c0_i32 = arith.constant 0 : i32
    %c0_i32_0 = arith.constant 0 : i32
    %c0_i32_1 = arith.constant 0 : i32
    %c0_i32_2 = arith.constant 0 : i32
    return %c0_i32, %c0_i32_0, %c0_i32_1 : i32, i32, i32
  }
  func.func @transform_1(%arg0: i32) -> (i32, i32, i32) {
    %c0_i32 = arith.constant 0 : i32
    %c0_i32_0 = arith.constant 0 : i32
    %c0_i32_1 = arith.constant 0 : i32
    return %arg0, %c0_i32, %c0_i32_0 : i32, i32, i32
  }
  func.func @transform_2(%arg0: i32) -> (i32, i32, i32) {
    %c0_i32 = arith.constant 0 : i32
    %c0_i32_0 = arith.constant 0 : i32
    %c0_i32_1 = arith.constant 0 : i32
    return %arg0, %c0_i32, %c0_i32_0 : i32, i32, i32
  }
  func.func @transform_3(%arg0: i32) -> (i32, i32, i32) {
    %c0_i32 = arith.constant 0 : i32
    %c0_i32_0 = arith.constant 0 : i32
    %c0_i32_1 = arith.constant 0 : i32
    return %arg0, %c0_i32, %c0_i32_0 : i32, i32, i32
  }
  func.func @transform_4(%arg0: i32) -> (i32, i32, i32) {
    %c0_i32 = arith.constant 0 : i32
    %c0_i32_0 = arith.constant 0 : i32
    %c0_i32_1 = arith.constant 0 : i32
    return %arg0, %c0_i32, %c0_i32_0 : i32, i32, i32
  }
  func.func @transform_5(%arg0: i32) -> (i32, i32, i32) {
    %c0_i32 = arith.constant 0 : i32
    %c0_i32_0 = arith.constant 0 : i32
    %c0_i32_1 = arith.constant 0 : i32
    return %arg0, %c0_i32, %c0_i32_0 : i32, i32, i32
  }
  func.func @transform_6(%arg0: i32) -> (i32, i32, i32) {
    %c0_i32 = arith.constant 0 : i32
    %c0_i32_0 = arith.constant 0 : i32
    %c0_i32_1 = arith.constant 0 : i32
    return %arg0, %c0_i32, %c0_i32_0 : i32, i32, i32
  }
  func.func @transform_7(%arg0: i32) -> (i32, i32, i32) {
    %c0_i32 = arith.constant 0 : i32
    %c0_i32_0 = arith.constant 0 : i32
    %c0_i32_1 = arith.constant 0 : i32
    return %arg0, %c0_i32, %c0_i32_0 : i32, i32, i32
  }
  func.func @transform_8(%arg0: i32) -> (i32, i32, i32) {
    %c0_i32 = arith.constant 0 : i32
    %c0_i32_0 = arith.constant 0 : i32
    %c0_i32_1 = arith.constant 0 : i32
    return %arg0, %c0_i32, %c0_i32_0 : i32, i32, i32
  }
  func.func @transform_9(%arg0: i32) -> (i32, i32, i32) {
    %c0_i32 = arith.constant 0 : i32
    %c0_i32_0 = arith.constant 0 : i32
    %c0_i32_1 = arith.constant 0 : i32
    return %arg0, %c0_i32, %c0_i32_0 : i32, i32, i32
  }
  func.func @transform_10(%arg0: i32) -> (i32, i32, i32) {
    %c0_i32 = arith.constant 0 : i32
    %c0_i32_0 = arith.constant 0 : i32
    %c0_i32_1 = arith.constant 0 : i32
    return %arg0, %c0_i32, %c0_i32_0 : i32, i32, i32
  }
  func.func @transform_11(%arg0: i32) -> (i32, i32, i32) {
    %c0_i32 = arith.constant 0 : i32
    %c0_i32_0 = arith.constant 0 : i32
    %c0_i32_1 = arith.constant 0 : i32
    return %arg0, %c0_i32, %c0_i32_0 : i32, i32, i32
  }
  func.func @transform_12(%arg0: i32) -> (i32, i32, i32) {
    %c0_i32 = arith.constant 0 : i32
    %c0_i32_0 = arith.constant 0 : i32
    %c0_i32_1 = arith.constant 0 : i32
    return %arg0, %c0_i32, %c0_i32_0 : i32, i32, i32
  }
  func.func @transform_13(%arg0: i32) -> (i32, i32) {
    %c0_i32 = arith.constant 0 : i32
    %c0_i32_0 = arith.constant 0 : i32
    %c0_i32_1 = arith.constant 0 : i32
    return %c0_i32, %c0_i32_0 : i32, i32
  }
  func.func @transform_14(%arg0: i32) -> (i32, i32) {
    %c0_i32 = arith.constant 0 : i32
    %c0_i32_0 = arith.constant 0 : i32
    %c0_i32_1 = arith.constant 0 : i32
    return %c0_i32, %c0_i32_0 : i32, i32
  }
  func.func @transform_15(%arg0: i32) -> (i32, i32, i32) {
    %c0_i32 = arith.constant 0 : i32
    %c0_i32_0 = arith.constant 0 : i32
    %c0_i32_1 = arith.constant 0 : i32
    %c0_i32_2 = arith.constant 0 : i32
    return %c0_i32, %c0_i32_0, %c0_i32_1 : i32, i32, i32
  }
}

</mosaic_0001>

<llo_original>
// kernel: transformer_encoder_forward.1
$region0: #{transformer_encoder_forward.1}
  #allocation0 [shape = 'u32[]', space=smem, size = 0x4, offset = 0x4, fixed_abs, tag = 'smem constant byte address 0x4 - core index']
  #allocation1 [shape = 'u32[72,128]{1,0:T(1,128)}', space=vmem, size = 0x9000, scoped, tag = 'internal scratch']
  %s0 = inlined_call_operand.vmem [shape: f32[2,8,32], index: 0, kind: input, shape index: {}]
  %s1 = inlined_call_operand.vmem [shape: f32[2,1,32], index: 1, kind: input, shape index: {}]
  %s2 = inlined_call_operand.vmem [shape: f32[2,1,32], index: 2, kind: input, shape index: {}]
  %s3 = inlined_call_operand.vmem [shape: bf16[2,32,96], index: 3, kind: input, shape index: {}]
  %s4 = inlined_call_operand.vmem [shape: f32[2,1,96], index: 4, kind: input, shape index: {}]
  %s5 = inlined_call_operand.vmem [shape: f32[2,32,32], index: 5, kind: input, shape index: {}]
  %s6 = inlined_call_operand.vmem [shape: f32[2,1,32], index: 6, kind: input, shape index: {}]
  %s7 = inlined_call_operand.vmem [shape: f32[2,1,32], index: 7, kind: input, shape index: {}]
  %s8 = inlined_call_operand.vmem [shape: f32[2,1,32], index: 8, kind: input, shape index: {}]
  %s9 = inlined_call_operand.vmem [shape: bf16[2,32,2048], index: 9, kind: input, shape index: {}]
  %s10 = inlined_call_operand.vmem [shape: f32[2,1,2048], index: 10, kind: input, shape index: {}]
  %s11 = inlined_call_operand.vmem [shape: bf16[2,2048,32], index: 11, kind: input, shape index: {}]
  %s12 = inlined_call_operand.vmem [shape: f32[2,1,32], index: 12, kind: input, shape index: {}]
  %s13 = inlined_call_operand.vmem [shape: f32[1,32], index: 13, kind: input, shape index: {}]
  %s14 = inlined_call_operand.vmem [shape: f32[1,32], index: 14, kind: input, shape index: {}]
  %s15 = inlined_call_operand.hbm [shape: f32[2,8,32], index: 15, kind: output, shape index: {}]
  %s16 = sld [smem:[#allocation0]]
  $region105: #{transformer_encoder_forward.1} parent=0
    _
  %s18 = ssub.s32 1, %s16
  %s19 = scalar_select 0, %s18, %s16
  $region1: #{transformer_encoder_forward.1} parent=0
    #allocation2 [shape = 'u8[8192]{0}', space=vmem, size = 0x2000, scoped, tag = 'output window, operand 0, single buffered']
    #allocation3 [shape = 's32[2]{0}', space=sflag, size = 0x8, scoped, tag = 'scoped memory for transformer_encoder_forward.1']
    %20 = vsyncpa [#allocation3], 0
    loop: start=0, step=1, limit=4
    $region2: #{transformer_encoder_forward.1} parent=1 // loop_pre_header
      _
    $region3: #{transformer_encoder_forward.1} parent=1 // loop_header
      %s22 = sphi 0, %s26
      %p23 = scmp.ge.s32.totalorder %s22, 4
      %s30 = sphi 0, %s30
      %s32 = sphi 0, %s30
      %s33 = sphi 0, %s32
      %s47 = sphi 0, %s33
      %s53 = sphi 0, %s55
      %s56 = sphi 0, %s53
      %s57 = sphi 0, %s56
      %s73 = sphi 0, %s57
      %s79 = sphi 0, %s81
      %s82 = sphi 0, %s79
      %s83 = sphi 0, %s82
      %s99 = sphi 0, %s83
      %s105 = sphi 0, %s107
      %s108 = sphi 0, %s105
      %s109 = sphi 0, %s108
      %s125 = sphi 0, %s109
      %s131 = sphi 0, %s133
      %s134 = sphi 0, %s131
      %s135 = sphi 0, %s134
      %s151 = sphi 0, %s135
      %s157 = sphi 0, %s159
      %s160 = sphi 0, %s157
      %s161 = sphi 0, %s160
      %s177 = sphi 0, %s161
      %s183 = sphi 0, %s185
      %s186 = sphi 0, %s183
      %s187 = sphi 0, %s186
      %s203 = sphi 0, %s187
      %s209 = sphi 0, %s211
      %s212 = sphi 0, %s209
      %s213 = sphi 0, %s212
      %s229 = sphi 0, %s213
      %s235 = sphi 0, %s237
      %s238 = sphi 0, %s235
      %s239 = sphi 0, %s238
      %s255 = sphi 0, %s239
      %s261 = sphi 0, %s263
      %s264 = sphi 0, %s261
      %s265 = sphi 0, %s264
      %s281 = sphi 0, %s265
      %s287 = sphi 0, %s289
      %s290 = sphi 0, %s287
      %s291 = sphi 0, %s290
      %s307 = sphi 0, %s291
      %s313 = sphi 0, %s315
      %s316 = sphi 0, %s313
      %s317 = sphi 0, %s316
      %s333 = sphi 0, %s317
      %s339 = sphi 0, %s341
      %s342 = sphi 0, %s339
      %s343 = sphi 0, %s342
      %s359 = sphi 0, %s343
      %s363 = sphi 0, %s363
      %s365 = sphi 0, %s363
      %s366 = sphi 0, %s365
      %s380 = sphi 0, %s366
      %s384 = sphi 0, %s384
      %s386 = sphi 0, %s384
      %s387 = sphi 0, %s386
      %s401 = sphi 0, %s387
      %s405 = sphi 0, %s405
      %s407 = sphi 0, %s405
      %s408 = sphi 0, %s407
      %s422 = sphi 0, %s408
    $region4: #{transformer_encoder_forward.1} parent=1 // loop_header_branch
      %25 = sbr.rel (%p23) target = $region8
    $region5: #{transformer_encoder_forward.1} parent=1 // loop_body
      %s27 = ssub.s32 %s22, 1
      %s28 = ssub.s32 %s22, 2
      %s29 = sadd.s32 %s22, 1
      %s31 = sadd.s32 %s30, 1
      %p34 = scmp.eq.s32.totalorder %s22, 1
      %p35 = scmp.ne.s32.totalorder %s30, %s32
      %p36 = scmp.eq.s32.totalorder %s22, 0
      %p37 = por %p35, %p36
      %p38 = scmp.ne.s32.totalorder %s30, %s32
      %p39 = scmp.eq.s32.totalorder %s27, 1
      %p40 = por %p38, %p39
      %p41 = scmp.ne.s32.totalorder %s32, %s33
      %p42 = scmp.eq.s32.totalorder %s27, 0
      %p43 = por %p41, %p42
      %p44 = scmp.ne.s32.totalorder %s32, %s33
      %p45 = scmp.eq.s32.totalorder %s28, 1
      %p46 = por %p44, %p45
      %p48 = scmp.ne.s32.totalorder %s33, %s47
      %p49 = scmp.eq.s32.totalorder %s28, 0
      %p50 = por %p48, %p49
      %s51 = ssub.s32 %s22, %s29
      %p52 = scmp.eq.s32.totalorder %s51, 0
      %s54 = sadd.s32 %s53, 1
      %s55 = scalar_select %p52, %s53, %s54
      %p58 = pneg %p52
      %p59 = scmp.eq.s32.totalorder %s22, 1
      %p60 = por %p58, %p59
      %p61 = scmp.ne.s32.totalorder %s53, %s56
      %p62 = scmp.eq.s32.totalorder %s22, 0
      %p63 = por %p61, %p62
      %p64 = scmp.ne.s32.totalorder %s53, %s56
      %p65 = scmp.eq.s32.totalorder %s27, 1
      %p66 = por %p64, %p65
      %p67 = scmp.ne.s32.totalorder %s56, %s57
      %p68 = scmp.eq.s32.totalorder %s27, 0
      %p69 = por %p67, %p68
      %p70 = scmp.ne.s32.totalorder %s56, %s57
      %p71 = scmp.eq.s32.totalorder %s28, 1
      %p72 = por %p70, %p71
      %p74 = scmp.ne.s32.totalorder %s57, %s73
      %p75 = scmp.eq.s32.totalorder %s28, 0
      %p76 = por %p74, %p75
      %s77 = ssub.s32 %s22, %s29
      %p78 = scmp.eq.s32.totalorder %s77, 0
      %s80 = sadd.s32 %s79, 1
      %s81 = scalar_select %p78, %s79, %s80
      %p84 = pneg %p78
      %p85 = scmp.eq.s32.totalorder %s22, 1
      %p86 = por %p84, %p85
      %p87 = scmp.ne.s32.totalorder %s79, %s82
      %p88 = scmp.eq.s32.totalorder %s22, 0
      %p89 = por %p87, %p88
      %p90 = scmp.ne.s32.totalorder %s79, %s82
      %p91 = scmp.eq.s32.totalorder %s27, 1
      %p92 = por %p90, %p91
      %p93 = scmp.ne.s32.totalorder %s82, %s83
      %p94 = scmp.eq.s32.totalorder %s27, 0
      %p95 = por %p93, %p94
      %p96 = scmp.ne.s32.totalorder %s82, %s83
      %p97 = scmp.eq.s32.totalorder %s28, 1
      %p98 = por %p96, %p97
      %p100 = scmp.ne.s32.totalorder %s83, %s99
      %p101 = scmp.eq.s32.totalorder %s28, 0
      %p102 = por %p100, %p101
      %s103 = ssub.s32 %s22, %s29
      %p104 = scmp.eq.s32.totalorder %s103, 0
      %s106 = sadd.s32 %s105, 1
      %s107 = scalar_select %p104, %s105, %s106
      %p110 = pneg %p104
      %p111 = scmp.eq.s32.totalorder %s22, 1
      %p112 = por %p110, %p111
      %p113 = scmp.ne.s32.totalorder %s105, %s108
      %p114 = scmp.eq.s32.totalorder %s22, 0
      %p115 = por %p113, %p114
      %p116 = scmp.ne.s32.totalorder %s105, %s108
      %p117 = scmp.eq.s32.totalorder %s27, 1
      %p118 = por %p116, %p117
      %p119 = scmp.ne.s32.totalorder %s108, %s109
      %p120 = scmp.eq.s32.totalorder %s27, 0
      %p121 = por %p119, %p120
      %p122 = scmp.ne.s32.totalorder %s108, %s109
      %p123 = scmp.eq.s32.totalorder %s28, 1
      %p124 = por %p122, %p123
      %p126 = scmp.ne.s32.totalorder %s109, %s125
      %p127 = scmp.eq.s32.totalorder %s28, 0
      %p128 = por %p126, %p127
      %s129 = ssub.s32 %s22, %s29
      %p130 = scmp.eq.s32.totalorder %s129, 0
      %s132 = sadd.s32 %s131, 1
      %s133 = scalar_select %p130, %s131, %s132
      %p136 = pneg %p130
      %p137 = scmp.eq.s32.totalorder %s22, 1
      %p138 = por %p136, %p137
      %p139 = scmp.ne.s32.totalorder %s131, %s134
      %p140 = scmp.eq.s32.totalorder %s22, 0
      %p141 = por %p139, %p140
      %p142 = scmp.ne.s32.totalorder %s131, %s134
      %p143 = scmp.eq.s32.totalorder %s27, 1
      %p144 = por %p142, %p143
      %p145 = scmp.ne.s32.totalorder %s134, %s135
      %p146 = scmp.eq.s32.totalorder %s27, 0
      %p147 = por %p145, %p146
      %p148 = scmp.ne.s32.totalorder %s134, %s135
      %p149 = scmp.eq.s32.totalorder %s28, 1
      %p150 = por %p148, %p149
      %p152 = scmp.ne.s32.totalorder %s135, %s151
      %p153 = scmp.eq.s32.totalorder %s28, 0
      %p154 = por %p152, %p153
      %s155 = ssub.s32 %s22, %s29
      %p156 = scmp.eq.s32.totalorder %s155, 0
      %s158 = sadd.s32 %s157, 1
      %s159 = scalar_select %p156, %s157, %s158
      %p162 = pneg %p156
      %p163 = scmp.eq.s32.totalorder %s22, 1
      %p164 = por %p162, %p163
      %p165 = scmp.ne.s32.totalorder %s157, %s160
      %p166 = scmp.eq.s32.totalorder %s22, 0
      %p167 = por %p165, %p166
      %p168 = scmp.ne.s32.totalorder %s157, %s160
      %p169 = scmp.eq.s32.totalorder %s27, 1
      %p170 = por %p168, %p169
      %p171 = scmp.ne.s32.totalorder %s160, %s161
      %p172 = scmp.eq.s32.totalorder %s27, 0
      %p173 = por %p171, %p172
      %p174 = scmp.ne.s32.totalorder %s160, %s161
      %p175 = scmp.eq.s32.totalorder %s28, 1
      %p176 = por %p174, %p175
      %p178 = scmp.ne.s32.totalorder %s161, %s177
      %p179 = scmp.eq.s32.totalorder %s28, 0
      %p180 = por %p178, %p179
      %s181 = ssub.s32 %s22, %s29
      %p182 = scmp.eq.s32.totalorder %s181, 0
      %s184 = sadd.s32 %s183, 1
      %s185 = scalar_select %p182, %s183, %s184
      %p188 = pneg %p182
      %p189 = scmp.eq.s32.totalorder %s22, 1
      %p190 = por %p188, %p189
      %p191 = scmp.ne.s32.totalorder %s183, %s186
      %p192 = scmp.eq.s32.totalorder %s22, 0
      %p193 = por %p191, %p192
      %p194 = scmp.ne.s32.totalorder %s183, %s186
      %p195 = scmp.eq.s32.totalorder %s27, 1
      %p196 = por %p194, %p195
      %p197 = scmp.ne.s32.totalorder %s186, %s187
      %p198 = scmp.eq.s32.totalorder %s27, 0
      %p199 = por %p197, %p198
      %p200 = scmp.ne.s32.totalorder %s186, %s187
      %p201 = scmp.eq.s32.totalorder %s28, 1
      %p202 = por %p200, %p201
      %p204 = scmp.ne.s32.totalorder %s187, %s203
      %p205 = scmp.eq.s32.totalorder %s28, 0
      %p206 = por %p204, %p205
      %s207 = ssub.s32 %s22, %s29
      %p208 = scmp.eq.s32.totalorder %s207, 0
      %s210 = sadd.s32 %s209, 1
      %s211 = scalar_select %p208, %s209, %s210
      %p214 = pneg %p208
      %p215 = scmp.eq.s32.totalorder %s22, 1
      %p216 = por %p214, %p215
      %p217 = scmp.ne.s32.totalorder %s209, %s212
      %p218 = scmp.eq.s32.totalorder %s22, 0
      %p219 = por %p217, %p218
      %p220 = scmp.ne.s32.totalorder %s209, %s212
      %p221 = scmp.eq.s32.totalorder %s27, 1
      %p222 = por %p220, %p221
      %p223 = scmp.ne.s32.totalorder %s212, %s213
      %p224 = scmp.eq.s32.totalorder %s27, 0
      %p225 = por %p223, %p224
      %p226 = scmp.ne.s32.totalorder %s212, %s213
      %p227 = scmp.eq.s32.totalorder %s28, 1
      %p228 = por %p226, %p227
      %p230 = scmp.ne.s32.totalorder %s213, %s229
      %p231 = scmp.eq.s32.totalorder %s28, 0
      %p232 = por %p230, %p231
      %s233 = ssub.s32 %s22, %s29
      %p234 = scmp.eq.s32.totalorder %s233, 0
      %s236 = sadd.s32 %s235, 1
      %s237 = scalar_select %p234, %s235, %s236
      %p240 = pneg %p234
      %p241 = scmp.eq.s32.totalorder %s22, 1
      %p242 = por %p240, %p241
      %p243 = scmp.ne.s32.totalorder %s235, %s238
      %p244 = scmp.eq.s32.totalorder %s22, 0
      %p245 = por %p243, %p244
      %p246 = scmp.ne.s32.totalorder %s235, %s238
      %p247 = scmp.eq.s32.totalorder %s27, 1
      %p248 = por %p246, %p247
      %p249 = scmp.ne.s32.totalorder %s238, %s239
      %p250 = scmp.eq.s32.totalorder %s27, 0
      %p251 = por %p249, %p250
      %p252 = scmp.ne.s32.totalorder %s238, %s239
      %p253 = scmp.eq.s32.totalorder %s28, 1
      %p254 = por %p252, %p253
      %p256 = scmp.ne.s32.totalorder %s239, %s255
      %p257 = scmp.eq.s32.totalorder %s28, 0
      %p258 = por %p256, %p257
      %s259 = ssub.s32 %s22, %s29
      %p260 = scmp.eq.s32.totalorder %s259, 0
      %s262 = sadd.s32 %s261, 1
      %s263 = scalar_select %p260, %s261, %s262
      %p266 = pneg %p260
      %p267 = scmp.eq.s32.totalorder %s22, 1
      %p268 = por %p266, %p267
      %p269 = scmp.ne.s32.totalorder %s261, %s264
      %p270 = scmp.eq.s32.totalorder %s22, 0
      %p271 = por %p269, %p270
      %p272 = scmp.ne.s32.totalorder %s261, %s264
      %p273 = scmp.eq.s32.totalorder %s27, 1
      %p274 = por %p272, %p273
      %p275 = scmp.ne.s32.totalorder %s264, %s265
      %p276 = scmp.eq.s32.totalorder %s27, 0
      %p277 = por %p275, %p276
      %p278 = scmp.ne.s32.totalorder %s264, %s265
      %p279 = scmp.eq.s32.totalorder %s28, 1
      %p280 = por %p278, %p279
      %p282 = scmp.ne.s32.totalorder %s265, %s281
      %p283 = scmp.eq.s32.totalorder %s28, 0
      %p284 = por %p282, %p283
      %s285 = ssub.s32 %s22, %s29
      %p286 = scmp.eq.s32.totalorder %s285, 0
      %s288 = sadd.s32 %s287, 1
      %s289 = scalar_select %p286, %s287, %s288
      %p292 = pneg %p286
      %p293 = scmp.eq.s32.totalorder %s22, 1
      %p294 = por %p292, %p293
      %p295 = scmp.ne.s32.totalorder %s287, %s290
      %p296 = scmp.eq.s32.totalorder %s22, 0
      %p297 = por %p295, %p296
      %p298 = scmp.ne.s32.totalorder %s287, %s290
      %p299 = scmp.eq.s32.totalorder %s27, 1
      %p300 = por %p298, %p299
      %p301 = scmp.ne.s32.totalorder %s290, %s291
      %p302 = scmp.eq.s32.totalorder %s27, 0
      %p303 = por %p301, %p302
      %p304 = scmp.ne.s32.totalorder %s290, %s291
      %p305 = scmp.eq.s32.totalorder %s28, 1
      %p306 = por %p304, %p305
      %p308 = scmp.ne.s32.totalorder %s291, %s307
      %p309 = scmp.eq.s32.totalorder %s28, 0
      %p310 = por %p308, %p309
      %s311 = ssub.s32 %s22, %s29
      %p312 = scmp.eq.s32.totalorder %s311, 0
      %s314 = sadd.s32 %s313, 1
      %s315 = scalar_select %p312, %s313, %s314
      %p318 = pneg %p312
      %p319 = scmp.eq.s32.totalorder %s22, 1
      %p320 = por %p318, %p319
      %p321 = scmp.ne.s32.totalorder %s313, %s316
      %p322 = scmp.eq.s32.totalorder %s22, 0
      %p323 = por %p321, %p322
      %p324 = scmp.ne.s32.totalorder %s313, %s316
      %p325 = scmp.eq.s32.totalorder %s27, 1
      %p326 = por %p324, %p325
      %p327 = scmp.ne.s32.totalorder %s316, %s317
      %p328 = scmp.eq.s32.totalorder %s27, 0
      %p329 = por %p327, %p328
      %p330 = scmp.ne.s32.totalorder %s316, %s317
      %p331 = scmp.eq.s32.totalorder %s28, 1
      %p332 = por %p330, %p331
      %p334 = scmp.ne.s32.totalorder %s317, %s333
      %p335 = scmp.eq.s32.totalorder %s28, 0
      %p336 = por %p334, %p335
      %s337 = ssub.s32 %s22, %s29
      %p338 = scmp.eq.s32.totalorder %s337, 0
      %s340 = sadd.s32 %s339, 1
      %s341 = scalar_select %p338, %s339, %s340
      %p344 = pneg %p338
      %p345 = scmp.eq.s32.totalorder %s22, 1
      %p346 = por %p344, %p345
      %p347 = scmp.ne.s32.totalorder %s339, %s342
      %p348 = scmp.eq.s32.totalorder %s22, 0
      %p349 = por %p347, %p348
      %p350 = scmp.ne.s32.totalorder %s339, %s342
      %p351 = scmp.eq.s32.totalorder %s27, 1
      %p352 = por %p350, %p351
      %p353 = scmp.ne.s32.totalorder %s342, %s343
      %p354 = scmp.eq.s32.totalorder %s27, 0
      %p355 = por %p353, %p354
      %p356 = scmp.ne.s32.totalorder %s342, %s343
      %p357 = scmp.eq.s32.totalorder %s28, 1
      %p358 = por %p356, %p357
      %p360 = scmp.ne.s32.totalorder %s343, %s359
      %p361 = scmp.eq.s32.totalorder %s28, 0
      %p362 = por %p360, %p361
      %s364 = sadd.s32 %s363, 1
      %p367 = scmp.eq.s32.totalorder %s22, 1
      %p368 = scmp.ne.s32.totalorder %s363, %s365
      %p369 = scmp.eq.s32.totalorder %s22, 0
      %p370 = por %p368, %p369
      %p371 = scmp.ne.s32.totalorder %s363, %s365
      %p372 = scmp.eq.s32.totalorder %s27, 1
      %p373 = por %p371, %p372
      %p374 = scmp.ne.s32.totalorder %s365, %s366
      %p375 = scmp.eq.s32.totalorder %s27, 0
      %p376 = por %p374, %p375
      %p377 = scmp.ne.s32.totalorder %s365, %s366
      %p378 = scmp.eq.s32.totalorder %s28, 1
      %p379 = por %p377, %p378
      %p381 = scmp.ne.s32.totalorder %s366, %s380
      %p382 = scmp.eq.s32.totalorder %s28, 0
      %p383 = por %p381, %p382
      %s385 = sadd.s32 %s384, 1
      %p388 = scmp.eq.s32.totalorder %s22, 1
      %p389 = scmp.ne.s32.totalorder %s384, %s386
      %p390 = scmp.eq.s32.totalorder %s22, 0
      %p391 = por %p389, %p390
      %p392 = scmp.ne.s32.totalorder %s384, %s386
      %p393 = scmp.eq.s32.totalorder %s27, 1
      %p394 = por %p392, %p393
      %p395 = scmp.ne.s32.totalorder %s386, %s387
      %p396 = scmp.eq.s32.totalorder %s27, 0
      %p397 = por %p395, %p396
      %p398 = scmp.ne.s32.totalorder %s386, %s387
      %p399 = scmp.eq.s32.totalorder %s28, 1
      %p400 = por %p398, %p399
      %p402 = scmp.ne.s32.totalorder %s387, %s401
      %p403 = scmp.eq.s32.totalorder %s28, 0
      %p404 = por %p402, %p403
      %s406 = sadd.s32 %s405, 1
      %p409 = scmp.eq.s32.totalorder %s22, 1
      %p410 = scmp.ne.s32.totalorder %s405, %s407
      %p411 = scmp.eq.s32.totalorder %s22, 0
      %p412 = por %p410, %p411
      %p413 = scmp.ne.s32.totalorder %s405, %s407
      %p414 = scmp.eq.s32.totalorder %s27, 1
      %p415 = por %p413, %p414
      %p416 = scmp.ne.s32.totalorder %s407, %s408
      %p417 = scmp.eq.s32.totalorder %s27, 0
      %p418 = por %p416, %p417
      %p419 = scmp.ne.s32.totalorder %s407, %s408
      %p420 = scmp.eq.s32.totalorder %s28, 1
      %p421 = por %p419, %p420
      %p423 = scmp.ne.s32.totalorder %s408, %s422
      %p424 = scmp.eq.s32.totalorder %s28, 0
      %p425 = por %p423, %p424
      %p426 = scmp.le.s32.totalorder 1, %s22
      %p427 = scmp.lt.s32.totalorder %s22, 3
      %p428 = pnand %p426, %p427
      %p429 = pneg %p428
      // Predicated region
      $region9: #{transformer_encoder_forward.1} parent=5 // pred_check
        _
      $region10: #{transformer_encoder_forward.1} parent=5 // pred_check_branch
        %431 = sbr.rel (%p428) target = $region12
      $region11: #{transformer_encoder_forward.1} parent=5 // pred_region
        %s432 = ssub.s32 %s22, 1
        // Predicated region
        $region13: #{transformer_encoder_forward.1} parent=11 // pred_check
          %p433 = pneg %p43
        $region14: #{transformer_encoder_forward.1} parent=11 // pred_check_branch
          %435 = sbr.rel (%p433) target = $region16
        $region15: #{transformer_encoder_forward.1} parent=11 // pred_region
          _
        $region16: #{transformer_encoder_forward.1} parent=11 // pred_fallthru
          _
        // Predicated region
        $region17: #{transformer_encoder_forward.1} parent=11 // pred_check
          %p436 = pneg %p376
        $region18: #{transformer_encoder_forward.1} parent=11 // pred_check_branch
          %438 = sbr.rel (%p436) target = $region20
        $region19: #{transformer_encoder_forward.1} parent=11 // pred_region
          _
        $region20: #{transformer_encoder_forward.1} parent=11 // pred_fallthru
          _
        // Predicated region
        $region21: #{transformer_encoder_forward.1} parent=11 // pred_check
          %p439 = pneg %p397
        $region22: #{transformer_encoder_forward.1} parent=11 // pred_check_branch
          %441 = sbr.rel (%p439) target = $region24
        $region23: #{transformer_encoder_forward.1} parent=11 // pred_region
          _
        $region24: #{transformer_encoder_forward.1} parent=11 // pred_fallthru
          _
      $region12: #{transformer_encoder_forward.1} parent=5 // pred_fallthru
        _
      %p442 = scmp.lt.s32.totalorder %s22, 2
      // Predicated region
      $region25: #{transformer_encoder_forward.1} parent=5 // pred_check
        %p443 = pneg %p442
      $region26: #{transformer_encoder_forward.1} parent=5 // pred_check_branch
        %445 = sbr.rel (%p443) target = $region28
      $region27: #{transformer_encoder_forward.1} parent=5 // pred_region
        // Predicated region
        $region29: #{transformer_encoder_forward.1} parent=27 // pred_check
          %p446 = pneg %p63
        $region30: #{transformer_encoder_forward.1} parent=27 // pred_check_branch
          %448 = sbr.rel (%p446) target = $region32
        $region31: #{transformer_encoder_forward.1} parent=27 // pred_region
          %p449 = scmp.lt.s32.totalorder %s22, 1
          %s450 = scalar_select %p449, %s22, 1
          %s451 = scalar_lea.vmem %s1, %s450
        $region32: #{transformer_encoder_forward.1} parent=27 // pred_fallthru
          _
        // Predicated region
        $region33: #{transformer_encoder_forward.1} parent=27 // pred_check
          %p452 = pneg %p89
        $region34: #{transformer_encoder_forward.1} parent=27 // pred_check_branch
          %454 = sbr.rel (%p452) target = $region36
        $region35: #{transformer_encoder_forward.1} parent=27 // pred_region
          %p455 = scmp.lt.s32.totalorder %s22, 1
          %s456 = scalar_select %p455, %s22, 1
          %s457 = scalar_lea.vmem %s2, %s456
        $region36: #{transformer_encoder_forward.1} parent=27 // pred_fallthru
          _
        // Predicated region
        $region37: #{transformer_encoder_forward.1} parent=27 // pred_check
          %p458 = pneg %p115
        $region38: #{transformer_encoder_forward.1} parent=27 // pred_check_branch
          %460 = sbr.rel (%p458) target = $region40
        $region39: #{transformer_encoder_forward.1} parent=27 // pred_region
          %p461 = scmp.lt.s32.totalorder %s22, 1
          %s462 = scalar_select %p461, %s22, 1
          %s463 = smul.addr %s462, 4
          %s464 = smul.addr %s463, 4
          %s465 = scalar_lea.vmem %s3, %s464
        $region40: #{transformer_encoder_forward.1} parent=27 // pred_fallthru
          _
        // Predicated region
        $region41: #{transformer_encoder_forward.1} parent=27 // pred_check
          %p466 = pneg %p141
        $region42: #{transformer_encoder_forward.1} parent=27 // pred_check_branch
          %468 = sbr.rel (%p466) target = $region44
        $region43: #{transformer_encoder_forward.1} parent=27 // pred_region
          %p469 = scmp.lt.s32.totalorder %s22, 1
          %s470 = scalar_select %p469, %s22, 1
          %s471 = scalar_lea.vmem %s4, %s470
        $region44: #{transformer_encoder_forward.1} parent=27 // pred_fallthru
          _
        // Predicated region
        $region45: #{transformer_encoder_forward.1} parent=27 // pred_check
          %p472 = pneg %p167
        $region46: #{transformer_encoder_forward.1} parent=27 // pred_check_branch
          %474 = sbr.rel (%p472) target = $region48
        $region47: #{transformer_encoder_forward.1} parent=27 // pred_region
          %p475 = scmp.lt.s32.totalorder %s22, 1
          %s476 = scalar_select %p475, %s22, 1
          %s477 = smul.addr %s476, 4
          %s478 = smul.addr %s477, 8
          %s479 = scalar_lea.vmem %s5, %s478
        $region48: #{transformer_encoder_forward.1} parent=27 // pred_fallthru
          _
        // Predicated region
        $region49: #{transformer_encoder_forward.1} parent=27 // pred_check
          %p480 = pneg %p193
        $region50: #{transformer_encoder_forward.1} parent=27 // pred_check_branch
          %482 = sbr.rel (%p480) target = $region52
        $region51: #{transformer_encoder_forward.1} parent=27 // pred_region
          %p483 = scmp.lt.s32.totalorder %s22, 1
          %s484 = scalar_select %p483, %s22, 1
          %s485 = scalar_lea.vmem %s6, %s484
        $region52: #{transformer_encoder_forward.1} parent=27 // pred_fallthru
          _
        // Predicated region
        $region53: #{transformer_encoder_forward.1} parent=27 // pred_check
          %p486 = pneg %p219
        $region54: #{transformer_encoder_forward.1} parent=27 // pred_check_branch
          %488 = sbr.rel (%p486) target = $region56
        $region55: #{transformer_encoder_forward.1} parent=27 // pred_region
          %p489 = scmp.lt.s32.totalorder %s22, 1
          %s490 = scalar_select %p489, %s22, 1
          %s491 = scalar_lea.vmem %s7, %s490
        $region56: #{transformer_encoder_forward.1} parent=27 // pred_fallthru
          _
        // Predicated region
        $region57: #{transformer_encoder_forward.1} parent=27 // pred_check
          %p492 = pneg %p245
        $region58: #{transformer_encoder_forward.1} parent=27 // pred_check_branch
          %494 = sbr.rel (%p492) target = $region60
        $region59: #{transformer_encoder_forward.1} parent=27 // pred_region
          %p495 = scmp.lt.s32.totalorder %s22, 1
          %s496 = scalar_select %p495, %s22, 1
          %s497 = scalar_lea.vmem %s8, %s496
        $region60: #{transformer_encoder_forward.1} parent=27 // pred_fallthru
          _
        // Predicated region
        $region61: #{transformer_encoder_forward.1} parent=27 // pred_check
          %p498 = pneg %p271
        $region62: #{transformer_encoder_forward.1} parent=27 // pred_check_branch
          %500 = sbr.rel (%p498) target = $region64
        $region63: #{transformer_encoder_forward.1} parent=27 // pred_region
          %p501 = scmp.lt.s32.totalorder %s22, 1
          %s502 = scalar_select %p501, %s22, 1
          %s503 = smul.addr %s502, 64
          %s504 = smul.addr %s503, 4
          %s505 = scalar_lea.vmem %s9, %s504
        $region64: #{transformer_encoder_forward.1} parent=27 // pred_fallthru
          _
        // Predicated region
        $region65: #{transformer_encoder_forward.1} parent=27 // pred_check
          %p506 = pneg %p297
        $region66: #{transformer_encoder_forward.1} parent=27 // pred_check_branch
          %508 = sbr.rel (%p506) target = $region68
        $region67: #{transformer_encoder_forward.1} parent=27 // pred_region
          %p509 = scmp.lt.s32.totalorder %s22, 1
          %s510 = scalar_select %p509, %s22, 1
          %s511 = smul.addr %s510, 16
          %s512 = scalar_lea.vmem %s10, %s511
        $region68: #{transformer_encoder_forward.1} parent=27 // pred_fallthru
          _
        // Predicated region
        $region69: #{transformer_encoder_forward.1} parent=27 // pred_check
          %p513 = pneg %p323
        $region70: #{transformer_encoder_forward.1} parent=27 // pred_check_branch
          %515 = sbr.rel (%p513) target = $region72
        $region71: #{transformer_encoder_forward.1} parent=27 // pred_region
          %p516 = scmp.lt.s32.totalorder %s22, 1
          %s517 = scalar_select %p516, %s22, 1
          %s518 = smul.addr %s517, 256
          %s519 = smul.addr %s518, 4
          %s520 = scalar_lea.vmem %s11, %s519
        $region72: #{transformer_encoder_forward.1} parent=27 // pred_fallthru
          _
        // Predicated region
        $region73: #{transformer_encoder_forward.1} parent=27 // pred_check
          %p521 = pneg %p349
        $region74: #{transformer_encoder_forward.1} parent=27 // pred_check_branch
          %523 = sbr.rel (%p521) target = $region76
        $region75: #{transformer_encoder_forward.1} parent=27 // pred_region
          %p524 = scmp.lt.s32.totalorder %s22, 1
          %s525 = scalar_select %p524, %s22, 1
          %s526 = scalar_lea.vmem %s12, %s525
        $region76: #{transformer_encoder_forward.1} parent=27 // pred_fallthru
          _
      $region28: #{transformer_encoder_forward.1} parent=5 // pred_fallthru
        _
      %p527 = scmp.le.s32.totalorder 1, %s22
      %p528 = scmp.lt.s32.totalorder %s22, 3
      %p529 = pnand %p527, %p528
      %p530 = pneg %p529
      // Predicated region
      $region77: #{transformer_encoder_forward.1} parent=5 // pred_check
        _
      $region78: #{transformer_encoder_forward.1} parent=5 // pred_check_branch
        %532 = sbr.rel (%p529) target = $region80
      $region79: #{transformer_encoder_forward.1} parent=5 // pred_region
        %s533 = ssub.s32 %s22, 1
        %p534 = pneg %p43
        %p535 = pneg %p40
        %p536 = scmp.lt.s32.totalorder %s27, 1
        %s537 = scalar_select %p536, %s27, 1
        %s538 = scalar_lea.vmem %s1, %s537
        %p539 = pneg %p69
        %p540 = pneg %p66
        %p541 = scmp.lt.s32.totalorder %s27, 1
        %s542 = scalar_select %p541, %s27, 1
        %s543 = scalar_lea.vmem %s2, %s542
        %p544 = pneg %p95
        %p545 = pneg %p92
        %p546 = scmp.lt.s32.totalorder %s27, 1
        %s547 = scalar_select %p546, %s27, 1
        %s548 = smul.addr %s547, 4
        %s549 = smul.addr %s548, 4
        %s550 = scalar_lea.vmem %s3, %s549
        %p551 = pneg %p121
        %p552 = pneg %p118
        %p553 = scmp.lt.s32.totalorder %s27, 1
        %s554 = scalar_select %p553, %s27, 1
        %s555 = scalar_lea.vmem %s4, %s554
        %p556 = pneg %p147
        %p557 = pneg %p144
        %p558 = scmp.lt.s32.totalorder %s27, 1
        %s559 = scalar_select %p558, %s27, 1
        %s560 = smul.addr %s559, 4
        %s561 = smul.addr %s560, 8
        %s562 = scalar_lea.vmem %s5, %s561
        %p563 = pneg %p173
        %p564 = pneg %p170
        %p565 = scmp.lt.s32.totalorder %s27, 1
        %s566 = scalar_select %p565, %s27, 1
        %s567 = scalar_lea.vmem %s6, %s566
        %p568 = pneg %p199
        %p569 = pneg %p196
        %p570 = scmp.lt.s32.totalorder %s27, 1
        %s571 = scalar_select %p570, %s27, 1
        %s572 = scalar_lea.vmem %s7, %s571
        %p573 = pneg %p225
        %p574 = pneg %p222
        %p575 = scmp.lt.s32.totalorder %s27, 1
        %s576 = scalar_select %p575, %s27, 1
        %s577 = scalar_lea.vmem %s8, %s576
        %p578 = pneg %p251
        %p579 = pneg %p248
        %p580 = scmp.lt.s32.totalorder %s27, 1
        %s581 = scalar_select %p580, %s27, 1
        %s582 = smul.addr %s581, 64
        %s583 = smul.addr %s582, 4
        %s584 = scalar_lea.vmem %s9, %s583
        %p585 = pneg %p277
        %p586 = pneg %p274
        %p587 = scmp.lt.s32.totalorder %s27, 1
        %s588 = scalar_select %p587, %s27, 1
        %s589 = smul.addr %s588, 16
        %s590 = scalar_lea.vmem %s10, %s589
        %p591 = pneg %p303
        %p592 = pneg %p300
        %p593 = scmp.lt.s32.totalorder %s27, 1
        %s594 = scalar_select %p593, %s27, 1
        %s595 = smul.addr %s594, 256
        %s596 = smul.addr %s595, 4
        %s597 = scalar_lea.vmem %s11, %s596
        %p598 = pneg %p329
        %p599 = pneg %p326
        %p600 = scmp.lt.s32.totalorder %s27, 1
        %s601 = scalar_select %p600, %s27, 1
        %s602 = scalar_lea.vmem %s12, %s601
        %p603 = pneg %p355
        %p604 = pneg %p352
        %p605 = pneg %p376
        %p606 = pneg %p373
        %p607 = pneg %p397
        %p608 = pneg %p394
        %p609 = pneg %p418
        %p610 = pneg %p415
        %p611 = scmp.lt.s32.totalorder %s27, 1
        %s612 = scalar_select %p611, %s27, 1
        %s613 = scalar_lea.vmem %s1, %s612
        %p614 = scmp.lt.s32.totalorder %s27, 1
        %s615 = scalar_select %p614, %s27, 1
        %s616 = scalar_lea.vmem %s2, %s615
        %p617 = scmp.lt.s32.totalorder %s27, 1
        %s618 = scalar_select %p617, %s27, 1
        %s619 = smul.addr %s618, 4
        %s620 = smul.addr %s619, 4
        %s621 = scalar_lea.vmem %s3, %s620
        %p622 = scmp.lt.s32.totalorder %s27, 1
        %s623 = scalar_select %p622, %s27, 1
        %s624 = scalar_lea.vmem %s4, %s623
        %p625 = scmp.lt.s32.totalorder %s27, 1
        %s626 = scalar_select %p625, %s27, 1
        %s627 = smul.addr %s626, 4
        %s628 = smul.addr %s627, 8
        %s629 = scalar_lea.vmem %s5, %s628
        %p630 = scmp.lt.s32.totalorder %s27, 1
        %s631 = scalar_select %p630, %s27, 1
        %s632 = scalar_lea.vmem %s6, %s631
        %p633 = scmp.lt.s32.totalorder %s27, 1
        %s634 = scalar_select %p633, %s27, 1
        %s635 = scalar_lea.vmem %s7, %s634
        %p636 = scmp.lt.s32.totalorder %s27, 1
        %s637 = scalar_select %p636, %s27, 1
        %s638 = scalar_lea.vmem %s8, %s637
        %p639 = scmp.lt.s32.totalorder %s27, 1
        %s640 = scalar_select %p639, %s27, 1
        %s641 = smul.addr %s640, 64
        %s642 = smul.addr %s641, 4
        %s643 = scalar_lea.vmem %s9, %s642
        %p644 = scmp.lt.s32.totalorder %s27, 1
        %s645 = scalar_select %p644, %s27, 1
        %s646 = smul.addr %s645, 16
        %s647 = scalar_lea.vmem %s10, %s646
        %p648 = scmp.lt.s32.totalorder %s27, 1
        %s649 = scalar_select %p648, %s27, 1
        %s650 = smul.addr %s649, 256
        %s651 = smul.addr %s650, 4
        %s652 = scalar_lea.vmem %s11, %s651
        %p653 = scmp.lt.s32.totalorder %s27, 1
        %s654 = scalar_select %p653, %s27, 1
        %s655 = scalar_lea.vmem %s12, %s654
        %p657 = scmp.eq.s32.totalorder %s27, 0
        // Predicated region
        $region81: #{transformer_encoder_forward.1} parent=79 // pred_check
          %p658 = pneg %p657
        $region82: #{transformer_encoder_forward.1} parent=79 // pred_check_branch
          %660 = sbr.rel (%p658) target = $region84
        $region83: #{transformer_encoder_forward.1} parent=79 // pred_region
          %v661 = vld [vmem:[%s0] sm:$0xff]
          %v662 = vld [vmem:[%s0 + $0x8] sm:$0xff]
          %vm663 = vcmask 261120
          %664 = vst.msk [vmem:[#allocation2] sm:$0xff] %vm663, %v661
          %665 = vst.msk [vmem:[#allocation2 + $0x8] sm:$0xff] %vm663, %v662
        $region84: #{transformer_encoder_forward.1} parent=79 // pred_fallthru
          _
        %v666 = vld [vmem:[#allocation2] sm:$0xff]
        %v667 = vld [vmem:[#allocation2 + $0x8] sm:$0xff]
        %v668 = vld [vmem:[%s613] sm:$0x1]
        %v669 = vld [vmem:[%s616] sm:$0x1]
        %vm670 = vcmask 261120
        %v671 = vsel %vm670, %v666, 0.0
        %672 = vadd.xlane.f32.xlu0 %v671
        %v673 = vpop.xlane.xlu0 %672
        %v674 = vsel %vm670, %v667, 0.0
        %675 = vadd.xlane.f32.xlu0 %v674
        %v676 = vpop.xlane.xlu0 %675
        %v677 = vrcp.pop 32.0
        %v678 = vmul.f32 32.0, %v677
        %v679 = vsub.f32 1.0, %v678
        %v680 = vmul.f32 %v677, %v679
        %v681 = vadd.f32 %v677, %v680
        %vm682 = vweird.f32 %v677
        %v683 = vsel %vm682, %v677, %v681
        %v684 = vmul.f32 %v673, %v683
        %v685 = vmul.f32 %v676, %v683
        %v686 = vsub.f32 %v666, %v684
        %v687 = vsub.f32 %v667, %v685
        %v688 = vmul.f32 %v686, %v686
        %v689 = vmul.f32 %v687, %v687
        %v690 = vsel %vm670, %v688, 0.0
        %691 = vadd.xlane.f32.xlu0 %v690
        %v692 = vpop.xlane.xlu0 %691
        %v693 = vsel %vm670, %v689, 0.0
        %694 = vadd.xlane.f32.xlu0 %v693
        %v695 = vpop.xlane.xlu0 %694
        %v696 = vmul.f32 %v692, %v683
        %v697 = vmul.f32 %v695, %v683
        %v698 = vadd.f32 %v696, 1e-05
        %v699 = vadd.f32 %v697, 1e-05
        %v700 = vrsqrt.pop %v698
        %v701 = vmul.f32 %v700, %v698
        %v702 = vmul.f32 %v701, %v700
        %v703 = vmul.f32 0.5, %v702
        %v704 = vsub.f32 1.5, %v703
        %v705 = vmul.f32 %v700, %v704
        %vm706 = vweird.f32 %v698
        %vm707 = vweird.f32 %v700
        %vm708 = vmor %vm706, %vm707
        %v709 = vsel %vm708, %v700, %v705
        %v710 = vrsqrt.pop %v699
        %v711 = vmul.f32 %v710, %v699
        %v712 = vmul.f32 %v711, %v710
        %v713 = vmul.f32 0.5, %v712
        %v714 = vsub.f32 1.5, %v713
        %v715 = vmul.f32 %v710, %v714
        %vm716 = vweird.f32 %v699
        %vm717 = vweird.f32 %v710
        %vm718 = vmor %vm716, %vm717
        %v719 = vsel %vm718, %v710, %v715
        %v720 = vmul.f32 %v686, %v709
        %v721 = vmul.f32 %v687, %v719
        %v723 = vperm.slane %v668, 0
        %v725 = vmul.f32 %v720, %v723
        %v726 = vmul.f32 %v721, %v723
        %v728 = vperm.slane %v669, 0
        %v730 = vadd.f32 %v725, %v728
        %v731 = vadd.f32 %v726, %v728
        %v732 = vpack.c.bf16 %v731, %v730
        %v733 = vld [vmem:[%s621] sm:$0xf]
        %v734 = vld [vmem:[%s621 + $0x4] sm:$0xf]
        %v735 = vld [vmem:[%s621 + $0x8] sm:$0xf]
        %v736 = vld [vmem:[%s621 + $0xc] sm:$0xf]
        %v737 = vld [vmem:[%s624] sm:$0x1]
        %v739 = vperm.slane %v737, 0
        %v745 = vunpack.c.l.b16 %v733
        %v746 = vunpack.c.l.b16 %v734
        %v747 = vunpack.c.l.b16 %v735
        %v748 = vunpack.c.l.b16 %v736
        %v749 = vpack.c.b16 %v746, %v745
        %v750 = vpack.c.b16 %v748, %v747
        %v754 = vsel %vm670, %v732, 0
        %756 = vmatpush.bf16.msra.mxu0 0
        %757 = vmatpush.bf16.msra.mxu0 0
        %758 = vmatpush.bf16.msra.mxu0 0
        %759 = vmatpush.bf16.msra.mxu0 0
        %760 = vmatpush.bf16.msra.mxu0 0
        %761 = vmatpush.bf16.msra.mxu0 0
        %762 = vmatpush.bf16.msra.mxu0 %v750
        %763 = vmatpush.bf16.msra.mxu0 %v749
        %764 = vmatmul.bf16.gmra.mxu0 %v754
        %v765 = vpop.f32.mrf.mxu0
        %v766 = vadd.f32 %v739, %v765
        %v767 = vpop.f32.mrf.mxu0
        %v768 = vadd.f32 %v739, %v767
        %769 = vdwg.mxu0
        %v770 = vld [vmem:[%s629] sm:$0xff]
        %v771 = vld [vmem:[%s629 + $0x8] sm:$0xff]
        %v772 = vld [vmem:[%s629 + $0x10] sm:$0xff]
        %v773 = vld [vmem:[%s629 + $0x18] sm:$0xff]
        %775 = vrot.lane.b32.xlu0 %v766, 96
        %v776 = vpop.permute.xlu0 %775
        %vm777 = vcmask 64512
        %v778 = vsel %vm777, %v766, 0
        %v780 = vsel %vm777, %v776, 0
        %782 = vmatpush.xpose.msra.mxu0 0.0
        %783 = vmatpush.xpose.msra.mxu0 0.0
        %784 = vmatpush.xpose.msra.mxu0 0.0
        %785 = vmatpush.xpose.msra.mxu0 0.0
        %786 = vmatpush.xpose.msra.mxu0 0.0
        %787 = vmatpush.xpose.msra.mxu0 0.0
        %788 = vmatpush.xpose.msra.mxu0 0.0
        %789 = vmatpush.xpose.msra.mxu0 0.0
        %790 = vmatpush.xpose.msra.mxu0 0.0
        %791 = vmatpush.xpose.msra.mxu0 0.0
        %792 = vmatpush.xpose.msra.mxu0 0.0
        %793 = vmatpush.xpose.msra.mxu0 0.0
        %794 = vmatpush.xpose.msra.mxu0 0.0
        %795 = vmatpush.xpose.msra.mxu0 0.0
        %796 = vmatpush.xpose.msra.mxu0 0.0
        %797 = vmatpush.xpose.msra.mxu0 %v780
        %798 = vmatmul.f32.gmra.mxu0 %v778
        %v799 = vpop.f32.mrf.mxu0
        %v800 = vadd.f32 0.0, %v799
        %801 = vdwg.mxu0
        %803 = vrot.lane.b32.xlu0 %v768, 96
        %v804 = vpop.permute.xlu0 %803
        %v805 = vsel %vm777, %v768, 0
        %v807 = vsel %vm777, %v804, 0
        %809 = vmatpush.xpose.msra.mxu0 0.0
        %810 = vmatpush.xpose.msra.mxu0 0.0
        %811 = vmatpush.xpose.msra.mxu0 0.0
        %812 = vmatpush.xpose.msra.mxu0 0.0
        %813 = vmatpush.xpose.msra.mxu0 0.0
        %814 = vmatpush.xpose.msra.mxu0 0.0
        %815 = vmatpush.xpose.msra.mxu0 0.0
        %816 = vmatpush.xpose.msra.mxu0 0.0
        %817 = vmatpush.xpose.msra.mxu0 0.0
        %818 = vmatpush.xpose.msra.mxu0 0.0
        %819 = vmatpush.xpose.msra.mxu0 0.0
        %820 = vmatpush.xpose.msra.mxu0 0.0
        %821 = vmatpush.xpose.msra.mxu0 0.0
        %822 = vmatpush.xpose.msra.mxu0 0.0
        %823 = vmatpush.xpose.msra.mxu0 0.0
        %824 = vmatpush.xpose.msra.mxu0 %v807
        %825 = vmatmul.f32.gmra.mxu0 %v805
        %v826 = vpop.f32.mrf.mxu0
        %v827 = vadd.f32 0.0, %v826
        %828 = vdwg.mxu0
        %v829 = vsel %vm777, %v800, -inf
        %830 = vmax.xlane.f32.xlu0 %v829
        %v831 = vpop.xlane.xlu0 %830
        %v832 = vsel %vm777, %v827, -inf
        %833 = vmax.xlane.f32.xlu0 %v832
        %v834 = vpop.xlane.xlu0 %833
        %v835 = vsub.f32 %v800, %v831
        %v836 = vsub.f32 %v827, %v834
        %v837 = vmul.f32 %v835, 1.442695
        %v838 = vpow.pop %v837
        %v839 = vmul.f32 %v836, 1.442695
        %v840 = vpow.pop %v839
        %v841 = vsel %vm777, %v838, 0.0
        %842 = vadd.xlane.f32.xlu0 %v841
        %v843 = vpop.xlane.xlu0 %842
        %v844 = vsel %vm777, %v840, 0.0
        %845 = vadd.xlane.f32.xlu0 %v844
        %v846 = vpop.xlane.xlu0 %845
        %v847 = vrcp.pop %v843
        %v848 = vmul.f32 %v843, %v847
        %v849 = vsub.f32 1.0, %v848
        %v850 = vmul.f32 %v847, %v849
        %v851 = vadd.f32 %v847, %v850
        %vm852 = vweird.f32 %v843
        %vm853 = vweird.f32 %v847
        %vm854 = vmor %vm852, %vm853
        %v855 = vsel %vm854, %v847, %v851
        %v856 = vand.u32 2147483647, %v843
        %vm857 = vcmp.eq.f32.partialorder %v856, 8.507059e+37
        %v858 = vand.u32 %v843, 2147483648
        %v859 = vor.u32 1.1754944e-38, %v858
        %v860 = vsel %vm857, %v859, %v855
        %v861 = vmul.f32 %v838, %v860
        %v862 = vrcp.pop %v846
        %v863 = vmul.f32 %v846, %v862
        %v864 = vsub.f32 1.0, %v863
        %v865 = vmul.f32 %v862, %v864
        %v866 = vadd.f32 %v862, %v865
        %vm867 = vweird.f32 %v846
        %vm868 = vweird.f32 %v862
        %vm869 = vmor %vm867, %vm868
        %v870 = vsel %vm869, %v862, %v866
        %v871 = vand.u32 2147483647, %v846
        %vm872 = vcmp.eq.f32.partialorder %v871, 8.507059e+37
        %v873 = vand.u32 %v846, 2147483648
        %v874 = vor.u32 1.1754944e-38, %v873
        %v875 = vsel %vm872, %v874, %v870
        %v876 = vmul.f32 %v840, %v875
        %877 = vrot.lane.b32.xlu0 %v766, 64
        %v878 = vpop.permute.xlu0 %877
        %v881 = vsel %vm777, %v861, 0
        %883 = vmatpush.msra.mxu0 0.0
        %884 = vmatpush.msra.mxu0 0.0
        %885 = vmatpush.msra.mxu0 0.0
        %886 = vmatpush.msra.mxu0 0.0
        %887 = vmatpush.msra.mxu0 0.0
        %888 = vmatpush.msra.mxu0 0.0
        %889 = vmatpush.msra.mxu0 0.0
        %890 = vmatpush.msra.mxu0 0.0
        %891 = vmatpush.msra.mxu0 0.0
        %892 = vmatpush.msra.mxu0 0.0
        %893 = vmatpush.msra.mxu0 0.0
        %894 = vmatpush.msra.mxu0 0.0
        %895 = vmatpush.msra.mxu0 0.0
        %896 = vmatpush.msra.mxu0 0.0
        %897 = vmatpush.msra.mxu0 0.0
        %898 = vmatpush.msra.mxu0 %v878
        %899 = vmatmul.f32.gmra.mxu0 %v881
        %v900 = vpop.f32.mrf.mxu0
        %v901 = vadd.f32 0.0, %v900
        %902 = vdwg.mxu0
        %903 = vrot.lane.b32.xlu0 %v768, 64
        %v904 = vpop.permute.xlu0 %903
        %v907 = vsel %vm777, %v876, 0
        %909 = vmatpush.msra.mxu0 0.0
        %910 = vmatpush.msra.mxu0 0.0
        %911 = vmatpush.msra.mxu0 0.0
        %912 = vmatpush.msra.mxu0 0.0
        %913 = vmatpush.msra.mxu0 0.0
        %914 = vmatpush.msra.mxu0 0.0
        %915 = vmatpush.msra.mxu0 0.0
        %916 = vmatpush.msra.mxu0 0.0
        %917 = vmatpush.msra.mxu0 0.0
        %918 = vmatpush.msra.mxu0 0.0
        %919 = vmatpush.msra.mxu0 0.0
        %920 = vmatpush.msra.mxu0 0.0
        %921 = vmatpush.msra.mxu0 0.0
        %922 = vmatpush.msra.mxu0 0.0
        %923 = vmatpush.msra.mxu0 0.0
        %924 = vmatpush.msra.mxu0 %v904
        %925 = vmatmul.f32.gmra.mxu0 %v907
        %v926 = vpop.f32.mrf.mxu0
        %v927 = vadd.f32 0.0, %v926
        %928 = vdwg.mxu0
        %929 = vrot.lane.b32.xlu0 %v766, 120
        %v930 = vpop.permute.xlu0 %929
        %931 = vrot.lane.b32.xlu0 %v766, 88
        %v932 = vpop.permute.xlu0 %931
        %v933 = vsel %vm777, %v930, 0
        %v935 = vsel %vm777, %v932, 0
        %937 = vmatpush.xpose.msra.mxu0 0.0
        %938 = vmatpush.xpose.msra.mxu0 0.0
        %939 = vmatpush.xpose.msra.mxu0 0.0
        %940 = vmatpush.xpose.msra.mxu0 0.0
        %941 = vmatpush.xpose.msra.mxu0 0.0
        %942 = vmatpush.xpose.msra.mxu0 0.0
        %943 = vmatpush.xpose.msra.mxu0 0.0
        %944 = vmatpush.xpose.msra.mxu0 0.0
        %945 = vmatpush.xpose.msra.mxu0 0.0
        %946 = vmatpush.xpose.msra.mxu0 0.0
        %947 = vmatpush.xpose.msra.mxu0 0.0
        %948 = vmatpush.xpose.msra.mxu0 0.0
        %949 = vmatpush.xpose.msra.mxu0 0.0
        %950 = vmatpush.xpose.msra.mxu0 0.0
        %951 = vmatpush.xpose.msra.mxu0 0.0
        %952 = vmatpush.xpose.msra.mxu0 %v935
        %953 = vmatmul.f32.gmra.mxu0 %v933
        %v954 = vpop.f32.mrf.mxu0
        %v955 = vadd.f32 0.0, %v954
        %956 = vdwg.mxu0
        %957 = vrot.lane.b32.xlu0 %v768, 120
        %v958 = vpop.permute.xlu0 %957
        %959 = vrot.lane.b32.xlu0 %v768, 88
        %v960 = vpop.permute.xlu0 %959
        %v961 = vsel %vm777, %v958, 0
        %v963 = vsel %vm777, %v960, 0
        %965 = vmatpush.xpose.msra.mxu0 0.0
        %966 = vmatpush.xpose.msra.mxu0 0.0
        %967 = vmatpush.xpose.msra.mxu0 0.0
        %968 = vmatpush.xpose.msra.mxu0 0.0
        %969 = vmatpush.xpose.msra.mxu0 0.0
        %970 = vmatpush.xpose.msra.mxu0 0.0
        %971 = vmatpush.xpose.msra.mxu0 0.0
        %972 = vmatpush.xpose.msra.mxu0 0.0
        %973 = vmatpush.xpose.msra.mxu0 0.0
        %974 = vmatpush.xpose.msra.mxu0 0.0
        %975 = vmatpush.xpose.msra.mxu0 0.0
        %976 = vmatpush.xpose.msra.mxu0 0.0
        %977 = vmatpush.xpose.msra.mxu0 0.0
        %978 = vmatpush.xpose.msra.mxu0 0.0
        %979 = vmatpush.xpose.msra.mxu0 0.0
        %980 = vmatpush.xpose.msra.mxu0 %v963
        %981 = vmatmul.f32.gmra.mxu0 %v961
        %v982 = vpop.f32.mrf.mxu0
        %v983 = vadd.f32 0.0, %v982
        %984 = vdwg.mxu0
        %v985 = vsel %vm777, %v955, -inf
        %986 = vmax.xlane.f32.xlu0 %v985
        %v987 = vpop.xlane.xlu0 %986
        %v988 = vsel %vm777, %v983, -inf
        %989 = vmax.xlane.f32.xlu0 %v988
        %v990 = vpop.xlane.xlu0 %989
        %v991 = vsub.f32 %v955, %v987
        %v992 = vsub.f32 %v983, %v990
        %v993 = vmul.f32 %v991, 1.442695
        %v994 = vpow.pop %v993
        %v995 = vmul.f32 %v992, 1.442695
        %v996 = vpow.pop %v995
        %v997 = vsel %vm777, %v994, 0.0
        %998 = vadd.xlane.f32.xlu0 %v997
        %v999 = vpop.xlane.xlu0 %998
        %v1000 = vsel %vm777, %v996, 0.0
        %1001 = vadd.xlane.f32.xlu0 %v1000
        %v1002 = vpop.xlane.xlu0 %1001
        %v1003 = vrcp.pop %v999
        %v1004 = vmul.f32 %v999, %v1003
        %v1005 = vsub.f32 1.0, %v1004
        %v1006 = vmul.f32 %v1003, %v1005
        %v1007 = vadd.f32 %v1003, %v1006
        %vm1008 = vweird.f32 %v999
        %vm1009 = vweird.f32 %v1003
        %vm1010 = vmor %vm1008, %vm1009
        %v1011 = vsel %vm1010, %v1003, %v1007
        %v1012 = vand.u32 2147483647, %v999
        %vm1013 = vcmp.eq.f32.partialorder %v1012, 8.507059e+37
        %v1014 = vand.u32 %v999, 2147483648
        %v1015 = vor.u32 1.1754944e-38, %v1014
        %v1016 = vsel %vm1013, %v1015, %v1011
        %v1017 = vmul.f32 %v994, %v1016
        %v1018 = vrcp.pop %v1002
        %v1019 = vmul.f32 %v1002, %v1018
        %v1020 = vsub.f32 1.0, %v1019
        %v1021 = vmul.f32 %v1018, %v1020
        %v1022 = vadd.f32 %v1018, %v1021
        %vm1023 = vweird.f32 %v1002
        %vm1024 = vweird.f32 %v1018
        %vm1025 = vmor %vm1023, %vm1024
        %v1026 = vsel %vm1025, %v1018, %v1022
        %v1027 = vand.u32 2147483647, %v1002
        %vm1028 = vcmp.eq.f32.partialorder %v1027, 8.507059e+37
        %v1029 = vand.u32 %v1002, 2147483648
        %v1030 = vor.u32 1.1754944e-38, %v1029
        %v1031 = vsel %vm1028, %v1030, %v1026
        %v1032 = vmul.f32 %v996, %v1031
        %1033 = vrot.lane.b32.xlu0 %v766, 56
        %v1034 = vpop.permute.xlu0 %1033
        %v1037 = vsel %vm777, %v1017, 0
        %1039 = vmatpush.msra.mxu0 0.0
        %1040 = vmatpush.msra.mxu0 0.0
        %1041 = vmatpush.msra.mxu0 0.0
        %1042 = vmatpush.msra.mxu0 0.0
        %1043 = vmatpush.msra.mxu0 0.0
        %1044 = vmatpush.msra.mxu0 0.0
        %1045 = vmatpush.msra.mxu0 0.0
        %1046 = vmatpush.msra.mxu0 0.0
        %1047 = vmatpush.msra.mxu0 0.0
        %1048 = vmatpush.msra.mxu0 0.0
        %1049 = vmatpush.msra.mxu0 0.0
        %1050 = vmatpush.msra.mxu0 0.0
        %1051 = vmatpush.msra.mxu0 0.0
        %1052 = vmatpush.msra.mxu0 0.0
        %1053 = vmatpush.msra.mxu0 0.0
        %1054 = vmatpush.msra.mxu0 %v1034
        %1055 = vmatmul.f32.gmra.mxu0 %v1037
        %v1056 = vpop.f32.mrf.mxu0
        %v1057 = vadd.f32 0.0, %v1056
        %1058 = vdwg.mxu0
        %1059 = vrot.lane.b32.xlu0 %v768, 56
        %v1060 = vpop.permute.xlu0 %1059
        %v1063 = vsel %vm777, %v1032, 0
        %1065 = vmatpush.msra.mxu0 0.0
        %1066 = vmatpush.msra.mxu0 0.0
        %1067 = vmatpush.msra.mxu0 0.0
        %1068 = vmatpush.msra.mxu0 0.0
        %1069 = vmatpush.msra.mxu0 0.0
        %1070 = vmatpush.msra.mxu0 0.0
        %1071 = vmatpush.msra.mxu0 0.0
        %1072 = vmatpush.msra.mxu0 0.0
        %1073 = vmatpush.msra.mxu0 0.0
        %1074 = vmatpush.msra.mxu0 0.0
        %1075 = vmatpush.msra.mxu0 0.0
        %1076 = vmatpush.msra.mxu0 0.0
        %1077 = vmatpush.msra.mxu0 0.0
        %1078 = vmatpush.msra.mxu0 0.0
        %1079 = vmatpush.msra.mxu0 0.0
        %1080 = vmatpush.msra.mxu0 %v1060
        %1081 = vmatmul.f32.gmra.mxu0 %v1063
        %v1082 = vpop.f32.mrf.mxu0
        %v1083 = vadd.f32 0.0, %v1082
        %1084 = vdwg.mxu0
        %v1086 = vsel %vm777, %v1057, 0
        %v1089 = vsel %vm777, %v1083, 0
        %1091 = vmatpush.msra.mxu0 0.0
        %1092 = vmatpush.msra.mxu0 0.0
        %1093 = vmatpush.msra.mxu0 0.0
        %1094 = vmatpush.msra.mxu0 0.0
        %1095 = vmatpush.msra.mxu0 0.0
        %1096 = vmatpush.msra.mxu0 0.0
        %1097 = vmatpush.msra.mxu0 0.0
        %1098 = vmatpush.msra.mxu0 0.0
        %1099 = vmatpush.msra.mxu0 0.0
        %1100 = vmatpush.msra.mxu0 0.0
        %1101 = vmatpush.msra.mxu0 0.0
        %1102 = vmatpush.msra.mxu0 0.0
        %1103 = vmatpush.msra.mxu0 0.0
        %1104 = vmatpush.msra.mxu0 0.0
        %1105 = vmatpush.msra.mxu0 0.0
        %1106 = vmatpush.msra.mxu0 %v771
        %1107 = vmatmul.f32.gmra.mxu0 %v1086
        %v1108 = vpop.f32.mrf.mxu0
        %v1109 = vadd.f32 0.0, %v1108
        %1110 = vmatmul.f32.gmra.mxu0 %v1089
        %v1111 = vpop.f32.mrf.mxu0
        %v1112 = vadd.f32 0.0, %v1111
        %1113 = vdwg.mxu0
        %v1115 = vsel %vm777, %v901, 0
        %v1118 = vsel %vm777, %v927, 0
        %1120 = vmatpush.msra.mxu0 0.0
        %1121 = vmatpush.msra.mxu0 0.0
        %1122 = vmatpush.msra.mxu0 0.0
        %1123 = vmatpush.msra.mxu0 0.0
        %1124 = vmatpush.msra.mxu0 0.0
        %1125 = vmatpush.msra.mxu0 0.0
        %1126 = vmatpush.msra.mxu0 0.0
        %1127 = vmatpush.msra.mxu0 0.0
        %1128 = vmatpush.msra.mxu0 0.0
        %1129 = vmatpush.msra.mxu0 0.0
        %1130 = vmatpush.msra.mxu0 0.0
        %1131 = vmatpush.msra.mxu0 0.0
        %1132 = vmatpush.msra.mxu0 0.0
        %1133 = vmatpush.msra.mxu0 0.0
        %1134 = vmatpush.msra.mxu0 0.0
        %1135 = vmatpush.msra.mxu0 %v770
        %1136 = vmatmul.f32.gmra.mxu0 %v1115
        %v1137 = vpop.f32.mrf.mxu0
        %v1138 = vadd.f32 %v1109, %v1137
        %1139 = vmatmul.f32.gmra.mxu0 %v1118
        %v1140 = vpop.f32.mrf.mxu0
        %v1141 = vadd.f32 %v1112, %v1140
        %1142 = vdwg.mxu0
        %1143 = vrot.lane.b32.xlu0 %v766, 112
        %v1144 = vpop.permute.xlu0 %1143
        %1145 = vrot.lane.b32.xlu0 %v766, 80
        %v1146 = vpop.permute.xlu0 %1145
        %v1147 = vsel %vm777, %v1144, 0
        %v1149 = vsel %vm777, %v1146, 0
        %1151 = vmatpush.xpose.msra.mxu0 0.0
        %1152 = vmatpush.xpose.msra.mxu0 0.0
        %1153 = vmatpush.xpose.msra.mxu0 0.0
        %1154 = vmatpush.xpose.msra.mxu0 0.0
        %1155 = vmatpush.xpose.msra.mxu0 0.0
        %1156 = vmatpush.xpose.msra.mxu0 0.0
        %1157 = vmatpush.xpose.msra.mxu0 0.0
        %1158 = vmatpush.xpose.msra.mxu0 0.0
        %1159 = vmatpush.xpose.msra.mxu0 0.0
        %1160 = vmatpush.xpose.msra.mxu0 0.0
        %1161 = vmatpush.xpose.msra.mxu0 0.0
        %1162 = vmatpush.xpose.msra.mxu0 0.0
        %1163 = vmatpush.xpose.msra.mxu0 0.0
        %1164 = vmatpush.xpose.msra.mxu0 0.0
        %1165 = vmatpush.xpose.msra.mxu0 0.0
        %1166 = vmatpush.xpose.msra.mxu0 %v1149
        %1167 = vmatmul.f32.gmra.mxu0 %v1147
        %v1168 = vpop.f32.mrf.mxu0
        %v1169 = vadd.f32 0.0, %v1168
        %1170 = vdwg.mxu0
        %1171 = vrot.lane.b32.xlu0 %v768, 112
        %v1172 = vpop.permute.xlu0 %1171
        %1173 = vrot.lane.b32.xlu0 %v768, 80
        %v1174 = vpop.permute.xlu0 %1173
        %v1175 = vsel %vm777, %v1172, 0
        %v1177 = vsel %vm777, %v1174, 0
        %1179 = vmatpush.xpose.msra.mxu0 0.0
        %1180 = vmatpush.xpose.msra.mxu0 0.0
        %1181 = vmatpush.xpose.msra.mxu0 0.0
        %1182 = vmatpush.xpose.msra.mxu0 0.0
        %1183 = vmatpush.xpose.msra.mxu0 0.0
        %1184 = vmatpush.xpose.msra.mxu0 0.0
        %1185 = vmatpush.xpose.msra.mxu0 0.0
        %1186 = vmatpush.xpose.msra.mxu0 0.0
        %1187 = vmatpush.xpose.msra.mxu0 0.0
        %1188 = vmatpush.xpose.msra.mxu0 0.0
        %1189 = vmatpush.xpose.msra.mxu0 0.0
        %1190 = vmatpush.xpose.msra.mxu0 0.0
        %1191 = vmatpush.xpose.msra.mxu0 0.0
        %1192 = vmatpush.xpose.msra.mxu0 0.0
        %1193 = vmatpush.xpose.msra.mxu0 0.0
        %1194 = vmatpush.xpose.msra.mxu0 %v1177
        %1195 = vmatmul.f32.gmra.mxu0 %v1175
        %v1196 = vpop.f32.mrf.mxu0
        %v1197 = vadd.f32 0.0, %v1196
        %1198 = vdwg.mxu0
        %v1199 = vsel %vm777, %v1169, -inf
        %1200 = vmax.xlane.f32.xlu0 %v1199
        %v1201 = vpop.xlane.xlu0 %1200
        %v1202 = vsel %vm777, %v1197, -inf
        %1203 = vmax.xlane.f32.xlu0 %v1202
        %v1204 = vpop.xlane.xlu0 %1203
        %v1205 = vsub.f32 %v1169, %v1201
        %v1206 = vsub.f32 %v1197, %v1204
        %v1207 = vmul.f32 %v1205, 1.442695
        %v1208 = vpow.pop %v1207
        %v1209 = vmul.f32 %v1206, 1.442695
        %v1210 = vpow.pop %v1209
        %v1211 = vsel %vm777, %v1208, 0.0
        %1212 = vadd.xlane.f32.xlu0 %v1211
        %v1213 = vpop.xlane.xlu0 %1212
        %v1214 = vsel %vm777, %v1210, 0.0
        %1215 = vadd.xlane.f32.xlu0 %v1214
        %v1216 = vpop.xlane.xlu0 %1215
        %v1217 = vrcp.pop %v1213
        %v1218 = vmul.f32 %v1213, %v1217
        %v1219 = vsub.f32 1.0, %v1218
        %v1220 = vmul.f32 %v1217, %v1219
        %v1221 = vadd.f32 %v1217, %v1220
        %vm1222 = vweird.f32 %v1213
        %vm1223 = vweird.f32 %v1217
        %vm1224 = vmor %vm1222, %vm1223
        %v1225 = vsel %vm1224, %v1217, %v1221
        %v1226 = vand.u32 2147483647, %v1213
        %vm1227 = vcmp.eq.f32.partialorder %v1226, 8.507059e+37
        %v1228 = vand.u32 %v1213, 2147483648
        %v1229 = vor.u32 1.1754944e-38, %v1228
        %v1230 = vsel %vm1227, %v1229, %v1225
        %v1231 = vmul.f32 %v1208, %v1230
        %v1232 = vrcp.pop %v1216
        %v1233 = vmul.f32 %v1216, %v1232
        %v1234 = vsub.f32 1.0, %v1233
        %v1235 = vmul.f32 %v1232, %v1234
        %v1236 = vadd.f32 %v1232, %v1235
        %vm1237 = vweird.f32 %v1216
        %vm1238 = vweird.f32 %v1232
        %vm1239 = vmor %vm1237, %vm1238
        %v1240 = vsel %vm1239, %v1232, %v1236
        %v1241 = vand.u32 2147483647, %v1216
        %vm1242 = vcmp.eq.f32.partialorder %v1241, 8.507059e+37
        %v1243 = vand.u32 %v1216, 2147483648
        %v1244 = vor.u32 1.1754944e-38, %v1243
        %v1245 = vsel %vm1242, %v1244, %v1240
        %v1246 = vmul.f32 %v1210, %v1245
        %1247 = vrot.lane.b32.xlu0 %v766, 48
        %v1248 = vpop.permute.xlu0 %1247
        %v1251 = vsel %vm777, %v1231, 0
        %1253 = vmatpush.msra.mxu0 0.0
        %1254 = vmatpush.msra.mxu0 0.0
        %1255 = vmatpush.msra.mxu0 0.0
        %1256 = vmatpush.msra.mxu0 0.0
        %1257 = vmatpush.msra.mxu0 0.0
        %1258 = vmatpush.msra.mxu0 0.0
        %1259 = vmatpush.msra.mxu0 0.0
        %1260 = vmatpush.msra.mxu0 0.0
        %1261 = vmatpush.msra.mxu0 0.0
        %1262 = vmatpush.msra.mxu0 0.0
        %1263 = vmatpush.msra.mxu0 0.0
        %1264 = vmatpush.msra.mxu0 0.0
        %1265 = vmatpush.msra.mxu0 0.0
        %1266 = vmatpush.msra.mxu0 0.0
        %1267 = vmatpush.msra.mxu0 0.0
        %1268 = vmatpush.msra.mxu0 %v1248
        %1269 = vmatmul.f32.gmra.mxu0 %v1251
        %v1270 = vpop.f32.mrf.mxu0
        %v1271 = vadd.f32 0.0, %v1270
        %1272 = vdwg.mxu0
        %1273 = vrot.lane.b32.xlu0 %v768, 48
        %v1274 = vpop.permute.xlu0 %1273
        %v1277 = vsel %vm777, %v1246, 0
        %1279 = vmatpush.msra.mxu0 0.0
        %1280 = vmatpush.msra.mxu0 0.0
        %1281 = vmatpush.msra.mxu0 0.0
        %1282 = vmatpush.msra.mxu0 0.0
        %1283 = vmatpush.msra.mxu0 0.0
        %1284 = vmatpush.msra.mxu0 0.0
        %1285 = vmatpush.msra.mxu0 0.0
        %1286 = vmatpush.msra.mxu0 0.0
        %1287 = vmatpush.msra.mxu0 0.0
        %1288 = vmatpush.msra.mxu0 0.0
        %1289 = vmatpush.msra.mxu0 0.0
        %1290 = vmatpush.msra.mxu0 0.0
        %1291 = vmatpush.msra.mxu0 0.0
        %1292 = vmatpush.msra.mxu0 0.0
        %1293 = vmatpush.msra.mxu0 0.0
        %1294 = vmatpush.msra.mxu0 %v1274
        %1295 = vmatmul.f32.gmra.mxu0 %v1277
        %v1296 = vpop.f32.mrf.mxu0
        %v1297 = vadd.f32 0.0, %v1296
        %1298 = vdwg.mxu0
        %v1300 = vsel %vm777, %v1271, 0
        %v1303 = vsel %vm777, %v1297, 0
        %1305 = vmatpush.msra.mxu0 0.0
        %1306 = vmatpush.msra.mxu0 0.0
        %1307 = vmatpush.msra.mxu0 0.0
        %1308 = vmatpush.msra.mxu0 0.0
        %1309 = vmatpush.msra.mxu0 0.0
        %1310 = vmatpush.msra.mxu0 0.0
        %1311 = vmatpush.msra.mxu0 0.0
        %1312 = vmatpush.msra.mxu0 0.0
        %1313 = vmatpush.msra.mxu0 0.0
        %1314 = vmatpush.msra.mxu0 0.0
        %1315 = vmatpush.msra.mxu0 0.0
        %1316 = vmatpush.msra.mxu0 0.0
        %1317 = vmatpush.msra.mxu0 0.0
        %1318 = vmatpush.msra.mxu0 0.0
        %1319 = vmatpush.msra.mxu0 0.0
        %1320 = vmatpush.msra.mxu0 %v772
        %1321 = vmatmul.f32.gmra.mxu0 %v1300
        %v1322 = vpop.f32.mrf.mxu0
        %v1323 = vadd.f32 0.0, %v1322
        %1324 = vmatmul.f32.gmra.mxu0 %v1303
        %v1325 = vpop.f32.mrf.mxu0
        %v1326 = vadd.f32 0.0, %v1325
        %1327 = vdwg.mxu0
        %v1328 = vadd.f32 %v1138, %v1323
        %v1329 = vadd.f32 %v1141, %v1326
        %1330 = vrot.lane.b32.xlu0 %v766, 104
        %v1331 = vpop.permute.xlu0 %1330
        %1332 = vrot.lane.b32.xlu0 %v766, 72
        %v1333 = vpop.permute.xlu0 %1332
        %v1334 = vsel %vm777, %v1331, 0
        %v1336 = vsel %vm777, %v1333, 0
        %1338 = vmatpush.xpose.msra.mxu0 0.0
        %1339 = vmatpush.xpose.msra.mxu0 0.0
        %1340 = vmatpush.xpose.msra.mxu0 0.0
        %1341 = vmatpush.xpose.msra.mxu0 0.0
        %1342 = vmatpush.xpose.msra.mxu0 0.0
        %1343 = vmatpush.xpose.msra.mxu0 0.0
        %1344 = vmatpush.xpose.msra.mxu0 0.0
        %1345 = vmatpush.xpose.msra.mxu0 0.0
        %1346 = vmatpush.xpose.msra.mxu0 0.0
        %1347 = vmatpush.xpose.msra.mxu0 0.0
        %1348 = vmatpush.xpose.msra.mxu0 0.0
        %1349 = vmatpush.xpose.msra.mxu0 0.0
        %1350 = vmatpush.xpose.msra.mxu0 0.0
        %1351 = vmatpush.xpose.msra.mxu0 0.0
        %1352 = vmatpush.xpose.msra.mxu0 0.0
        %1353 = vmatpush.xpose.msra.mxu0 %v1336
        %1354 = vmatmul.f32.gmra.mxu0 %v1334
        %v1355 = vpop.f32.mrf.mxu0
        %v1356 = vadd.f32 0.0, %v1355
        %1357 = vdwg.mxu0
        %1358 = vrot.lane.b32.xlu0 %v768, 104
        %v1359 = vpop.permute.xlu0 %1358
        %1360 = vrot.lane.b32.xlu0 %v768, 72
        %v1361 = vpop.permute.xlu0 %1360
        %v1362 = vsel %vm777, %v1359, 0
        %v1364 = vsel %vm777, %v1361, 0
        %1366 = vmatpush.xpose.msra.mxu0 0.0
        %1367 = vmatpush.xpose.msra.mxu0 0.0
        %1368 = vmatpush.xpose.msra.mxu0 0.0
        %1369 = vmatpush.xpose.msra.mxu0 0.0
        %1370 = vmatpush.xpose.msra.mxu0 0.0
        %1371 = vmatpush.xpose.msra.mxu0 0.0
        %1372 = vmatpush.xpose.msra.mxu0 0.0
        %1373 = vmatpush.xpose.msra.mxu0 0.0
        %1374 = vmatpush.xpose.msra.mxu0 0.0
        %1375 = vmatpush.xpose.msra.mxu0 0.0
        %1376 = vmatpush.xpose.msra.mxu0 0.0
        %1377 = vmatpush.xpose.msra.mxu0 0.0
        %1378 = vmatpush.xpose.msra.mxu0 0.0
        %1379 = vmatpush.xpose.msra.mxu0 0.0
        %1380 = vmatpush.xpose.msra.mxu0 0.0
        %1381 = vmatpush.xpose.msra.mxu0 %v1364
        %1382 = vmatmul.f32.gmra.mxu0 %v1362
        %v1383 = vpop.f32.mrf.mxu0
        %v1384 = vadd.f32 0.0, %v1383
        %1385 = vdwg.mxu0
        %v1386 = vsel %vm777, %v1356, -inf
        %1387 = vmax.xlane.f32.xlu0 %v1386
        %v1388 = vpop.xlane.xlu0 %1387
        %v1389 = vsel %vm777, %v1384, -inf
        %1390 = vmax.xlane.f32.xlu0 %v1389
        %v1391 = vpop.xlane.xlu0 %1390
        %v1392 = vsub.f32 %v1356, %v1388
        %v1393 = vsub.f32 %v1384, %v1391
        %v1394 = vmul.f32 %v1392, 1.442695
        %v1395 = vpow.pop %v1394
        %v1396 = vmul.f32 %v1393, 1.442695
        %v1397 = vpow.pop %v1396
        %v1398 = vsel %vm777, %v1395, 0.0
        %1399 = vadd.xlane.f32.xlu0 %v1398
        %v1400 = vpop.xlane.xlu0 %1399
        %v1401 = vsel %vm777, %v1397, 0.0
        %1402 = vadd.xlane.f32.xlu0 %v1401
        %v1403 = vpop.xlane.xlu0 %1402
        %v1404 = vrcp.pop %v1400
        %v1405 = vmul.f32 %v1400, %v1404
        %v1406 = vsub.f32 1.0, %v1405
        %v1407 = vmul.f32 %v1404, %v1406
        %v1408 = vadd.f32 %v1404, %v1407
        %vm1409 = vweird.f32 %v1400
        %vm1410 = vweird.f32 %v1404
        %vm1411 = vmor %vm1409, %vm1410
        %v1412 = vsel %vm1411, %v1404, %v1408
        %v1413 = vand.u32 2147483647, %v1400
        %vm1414 = vcmp.eq.f32.partialorder %v1413, 8.507059e+37
        %v1415 = vand.u32 %v1400, 2147483648
        %v1416 = vor.u32 1.1754944e-38, %v1415
        %v1417 = vsel %vm1414, %v1416, %v1412
        %v1418 = vmul.f32 %v1395, %v1417
        %v1419 = vrcp.pop %v1403
        %v1420 = vmul.f32 %v1403, %v1419
        %v1421 = vsub.f32 1.0, %v1420
        %v1422 = vmul.f32 %v1419, %v1421
        %v1423 = vadd.f32 %v1419, %v1422
        %vm1424 = vweird.f32 %v1403
        %vm1425 = vweird.f32 %v1419
        %vm1426 = vmor %vm1424, %vm1425
        %v1427 = vsel %vm1426, %v1419, %v1423
        %v1428 = vand.u32 2147483647, %v1403
        %vm1429 = vcmp.eq.f32.partialorder %v1428, 8.507059e+37
        %v1430 = vand.u32 %v1403, 2147483648
        %v1431 = vor.u32 1.1754944e-38, %v1430
        %v1432 = vsel %vm1429, %v1431, %v1427
        %v1433 = vmul.f32 %v1397, %v1432
        %1434 = vrot.lane.b32.xlu0 %v766, 40
        %v1435 = vpop.permute.xlu0 %1434
        %v1438 = vsel %vm777, %v1418, 0
        %1440 = vmatpush.msra.mxu0 0.0
        %1441 = vmatpush.msra.mxu0 0.0
        %1442 = vmatpush.msra.mxu0 0.0
        %1443 = vmatpush.msra.mxu0 0.0
        %1444 = vmatpush.msra.mxu0 0.0
        %1445 = vmatpush.msra.mxu0 0.0
        %1446 = vmatpush.msra.mxu0 0.0
        %1447 = vmatpush.msra.mxu0 0.0
        %1448 = vmatpush.msra.mxu0 0.0
        %1449 = vmatpush.msra.mxu0 0.0
        %1450 = vmatpush.msra.mxu0 0.0
        %1451 = vmatpush.msra.mxu0 0.0
        %1452 = vmatpush.msra.mxu0 0.0
        %1453 = vmatpush.msra.mxu0 0.0
        %1454 = vmatpush.msra.mxu0 0.0
        %1455 = vmatpush.msra.mxu0 %v1435
        %1456 = vmatmul.f32.gmra.mxu0 %v1438
        %v1457 = vpop.f32.mrf.mxu0
        %v1458 = vadd.f32 0.0, %v1457
        %1459 = vdwg.mxu0
        %1460 = vrot.lane.b32.xlu0 %v768, 40
        %v1461 = vpop.permute.xlu0 %1460
        %v1464 = vsel %vm777, %v1433, 0
        %1466 = vmatpush.msra.mxu0 0.0
        %1467 = vmatpush.msra.mxu0 0.0
        %1468 = vmatpush.msra.mxu0 0.0
        %1469 = vmatpush.msra.mxu0 0.0
        %1470 = vmatpush.msra.mxu0 0.0
        %1471 = vmatpush.msra.mxu0 0.0
        %1472 = vmatpush.msra.mxu0 0.0
        %1473 = vmatpush.msra.mxu0 0.0
        %1474 = vmatpush.msra.mxu0 0.0
        %1475 = vmatpush.msra.mxu0 0.0
        %1476 = vmatpush.msra.mxu0 0.0
        %1477 = vmatpush.msra.mxu0 0.0
        %1478 = vmatpush.msra.mxu0 0.0
        %1479 = vmatpush.msra.mxu0 0.0
        %1480 = vmatpush.msra.mxu0 0.0
        %1481 = vmatpush.msra.mxu0 %v1461
        %1482 = vmatmul.f32.gmra.mxu0 %v1464
        %v1483 = vpop.f32.mrf.mxu0
        %v1484 = vadd.f32 0.0, %v1483
        %1485 = vdwg.mxu0
        %v1487 = vsel %vm777, %v1458, 0
        %v1490 = vsel %vm777, %v1484, 0
        %1492 = vmatpush.msra.mxu0 0.0
        %1493 = vmatpush.msra.mxu0 0.0
        %1494 = vmatpush.msra.mxu0 0.0
        %1495 = vmatpush.msra.mxu0 0.0
        %1496 = vmatpush.msra.mxu0 0.0
        %1497 = vmatpush.msra.mxu0 0.0
        %1498 = vmatpush.msra.mxu0 0.0
        %1499 = vmatpush.msra.mxu0 0.0
        %1500 = vmatpush.msra.mxu0 0.0
        %1501 = vmatpush.msra.mxu0 0.0
        %1502 = vmatpush.msra.mxu0 0.0
        %1503 = vmatpush.msra.mxu0 0.0
        %1504 = vmatpush.msra.mxu0 0.0
        %1505 = vmatpush.msra.mxu0 0.0
        %1506 = vmatpush.msra.mxu0 0.0
        %1507 = vmatpush.msra.mxu0 %v773
        %1508 = vmatmul.f32.gmra.mxu0 %v1487
        %v1509 = vpop.f32.mrf.mxu0
        %v1510 = vadd.f32 0.0, %v1509
        %1511 = vmatmul.f32.gmra.mxu0 %v1490
        %v1512 = vpop.f32.mrf.mxu0
        %v1513 = vadd.f32 0.0, %v1512
        %1514 = vdwg.mxu0
        %v1515 = vadd.f32 %v1328, %v1510
        %v1516 = vadd.f32 %v1329, %v1513
        %v1517 = vadd.f32 %v666, %v1515
        %v1518 = vadd.f32 %v667, %v1516
        %v1519 = vld [vmem:[%s632] sm:$0x1]
        %v1521 = vperm.slane %v1519, 0
        %v1523 = vadd.f32 %v1517, %v1521
        %v1524 = vadd.f32 %v1518, %v1521
        %v1525 = vld [vmem:[%s635] sm:$0x1]
        %v1526 = vld [vmem:[%s638] sm:$0x1]
        %v1527 = vsel %vm670, %v1523, 0.0
        %1528 = vadd.xlane.f32.xlu0 %v1527
        %v1529 = vpop.xlane.xlu0 %1528
        %v1530 = vsel %vm670, %v1524, 0.0
        %1531 = vadd.xlane.f32.xlu0 %v1530
        %v1532 = vpop.xlane.xlu0 %1531
        %v1533 = vmul.f32 %v1529, %v683
        %v1534 = vmul.f32 %v1532, %v683
        %v1535 = vsub.f32 %v1523, %v1533
        %v1536 = vsub.f32 %v1524, %v1534
        %v1537 = vmul.f32 %v1535, %v1535
        %v1538 = vmul.f32 %v1536, %v1536
        %v1539 = vsel %vm670, %v1537, 0.0
        %1540 = vadd.xlane.f32.xlu0 %v1539
        %v1541 = vpop.xlane.xlu0 %1540
        %v1542 = vsel %vm670, %v1538, 0.0
        %1543 = vadd.xlane.f32.xlu0 %v1542
        %v1544 = vpop.xlane.xlu0 %1543
        %v1545 = vmul.f32 %v1541, %v683
        %v1546 = vmul.f32 %v1544, %v683
        %v1547 = vadd.f32 %v1545, 1e-05
        %v1548 = vadd.f32 %v1546, 1e-05
        %v1549 = vrsqrt.pop %v1547
        %v1550 = vmul.f32 %v1549, %v1547
        %v1551 = vmul.f32 %v1550, %v1549
        %v1552 = vmul.f32 0.5, %v1551
        %v1553 = vsub.f32 1.5, %v1552
        %v1554 = vmul.f32 %v1549, %v1553
        %vm1555 = vweird.f32 %v1547
        %vm1556 = vweird.f32 %v1549
        %vm1557 = vmor %vm1555, %vm1556
        %v1558 = vsel %vm1557, %v1549, %v1554
        %v1559 = vrsqrt.pop %v1548
        %v1560 = vmul.f32 %v1559, %v1548
        %v1561 = vmul.f32 %v1560, %v1559
        %v1562 = vmul.f32 0.5, %v1561
        %v1563 = vsub.f32 1.5, %v1562
        %v1564 = vmul.f32 %v1559, %v1563
        %vm1565 = vweird.f32 %v1548
        %vm1566 = vweird.f32 %v1559
        %vm1567 = vmor %vm1565, %vm1566
        %v1568 = vsel %vm1567, %v1559, %v1564
        %v1569 = vmul.f32 %v1535, %v1558
        %v1570 = vmul.f32 %v1536, %v1568
        %v1572 = vperm.slane %v1525, 0
        %v1574 = vmul.f32 %v1569, %v1572
        %v1575 = vmul.f32 %v1570, %v1572
        %v1577 = vperm.slane %v1526, 0
        %v1579 = vadd.f32 %v1574, %v1577
        %v1580 = vadd.f32 %v1575, %v1577
        %v1581 = vpack.c.bf16 %v1580, %v1579
        %v1582 = vld [vmem:[%s643] sm:$0xff]
        %v1583 = vld [vmem:[%s643 + $0x8] sm:$0xff]
        %v1584 = vld [vmem:[%s643 + $0x10] sm:$0xff]
        %v1585 = vld [vmem:[%s643 + $0x18] sm:$0xff]
        %v1586 = vld [vmem:[%s643 + $0x20] sm:$0xff]
        %v1587 = vld [vmem:[%s643 + $0x28] sm:$0xff]
        %v1588 = vld [vmem:[%s643 + $0x30] sm:$0xff]
        %v1589 = vld [vmem:[%s643 + $0x38] sm:$0xff]
        %v1590 = vld [vmem:[%s643 + $0x40] sm:$0xff]
        %v1591 = vld [vmem:[%s643 + $0x48] sm:$0xff]
        %v1592 = vld [vmem:[%s643 + $0x50] sm:$0xff]
        %v1593 = vld [vmem:[%s643 + $0x58] sm:$0xff]
        %v1594 = vld [vmem:[%s643 + $0x60] sm:$0xff]
        %v1595 = vld [vmem:[%s643 + $0x68] sm:$0xff]
        %v1596 = vld [vmem:[%s643 + $0x70] sm:$0xff]
        %v1597 = vld [vmem:[%s643 + $0x78] sm:$0xff]
        %v1598 = vld [vmem:[%s643 + $0x80] sm:$0xff]
        %v1599 = vld [vmem:[%s643 + $0x88] sm:$0xff]
        %v1600 = vld [vmem:[%s643 + $0x90] sm:$0xff]
        %v1601 = vld [vmem:[%s643 + $0x98] sm:$0xff]
        %v1602 = vld [vmem:[%s643 + $0xa0] sm:$0xff]
        %v1603 = vld [vmem:[%s643 + $0xa8] sm:$0xff]
        %v1604 = vld [vmem:[%s643 + $0xb0] sm:$0xff]
        %v1605 = vld [vmem:[%s643 + $0xb8] sm:$0xff]
        %v1606 = vld [vmem:[%s643 + $0xc0] sm:$0xff]
        %v1607 = vld [vmem:[%s643 + $0xc8] sm:$0xff]
        %v1608 = vld [vmem:[%s643 + $0xd0] sm:$0xff]
        %v1609 = vld [vmem:[%s643 + $0xd8] sm:$0xff]
        %v1610 = vld [vmem:[%s643 + $0xe0] sm:$0xff]
        %v1611 = vld [vmem:[%s643 + $0xe8] sm:$0xff]
        %v1612 = vld [vmem:[%s643 + $0xf0] sm:$0xff]
        %v1613 = vld [vmem:[%s643 + $0xf8] sm:$0xff]
        %v1614 = vld [vmem:[%s647] sm:$0xff]
        %v1615 = vld [vmem:[%s647 + $0x8] sm:$0xff]
        %v1618 = vperm.slane %v1614, 0
        %v1619 = vperm.slane %v1614, 1
        %v1620 = vperm.slane %v1614, 2
        %v1621 = vperm.slane %v1614, 3
        %v1622 = vperm.slane %v1614, 4
        %v1623 = vperm.slane %v1614, 5
        %v1624 = vperm.slane %v1614, 6
        %v1625 = vperm.slane %v1614, 7
        %v1626 = vperm.slane %v1615, 0
        %v1627 = vperm.slane %v1615, 1
        %v1628 = vperm.slane %v1615, 2
        %v1629 = vperm.slane %v1615, 3
        %v1630 = vperm.slane %v1615, 4
        %v1631 = vperm.slane %v1615, 5
        %v1632 = vperm.slane %v1615, 6
        %v1633 = vperm.slane %v1615, 7
        %v1682 = vunpack.c.l.b16 %v1582
        %v1683 = vunpack.c.h.b16 %v1582
        %v1684 = vunpack.c.l.b16 %v1583
        %v1685 = vunpack.c.h.b16 %v1583
        %v1686 = vunpack.c.l.b16 %v1584
        %v1687 = vunpack.c.h.b16 %v1584
        %v1688 = vunpack.c.l.b16 %v1585
        %v1689 = vunpack.c.h.b16 %v1585
        %v1690 = vunpack.c.l.b16 %v1586
        %v1691 = vunpack.c.h.b16 %v1586
        %v1692 = vunpack.c.l.b16 %v1587
        %v1693 = vunpack.c.h.b16 %v1587
        %v1694 = vunpack.c.l.b16 %v1588
        %v1695 = vunpack.c.h.b16 %v1588
        %v1696 = vunpack.c.l.b16 %v1589
        %v1697 = vunpack.c.h.b16 %v1589
        %v1698 = vunpack.c.l.b16 %v1590
        %v1699 = vunpack.c.h.b16 %v1590
        %v1700 = vunpack.c.l.b16 %v1591
        %v1701 = vunpack.c.h.b16 %v1591
        %v1702 = vunpack.c.l.b16 %v1592
        %v1703 = vunpack.c.h.b16 %v1592
        %v1704 = vunpack.c.l.b16 %v1593
        %v1705 = vunpack.c.h.b16 %v1593
        %v1706 = vunpack.c.l.b16 %v1594
        %v1707 = vunpack.c.h.b16 %v1594
        %v1708 = vunpack.c.l.b16 %v1595
        %v1709 = vunpack.c.h.b16 %v1595
        %v1710 = vunpack.c.l.b16 %v1596
        %v1711 = vunpack.c.h.b16 %v1596
        %v1712 = vunpack.c.l.b16 %v1597
        %v1713 = vunpack.c.h.b16 %v1597
        %v1714 = vunpack.c.l.b16 %v1598
        %v1715 = vunpack.c.h.b16 %v1598
        %v1716 = vunpack.c.l.b16 %v1599
        %v1717 = vunpack.c.h.b16 %v1599
        %v1718 = vunpack.c.l.b16 %v1600
        %v1719 = vunpack.c.h.b16 %v1600
        %v1720 = vunpack.c.l.b16 %v1601
        %v1721 = vunpack.c.h.b16 %v1601
        %v1722 = vunpack.c.l.b16 %v1602
        %v1723 = vunpack.c.h.b16 %v1602
        %v1724 = vunpack.c.l.b16 %v1603
        %v1725 = vunpack.c.h.b16 %v1603
        %v1726 = vunpack.c.l.b16 %v1604
        %v1727 = vunpack.c.h.b16 %v1604
        %v1728 = vunpack.c.l.b16 %v1605
        %v1729 = vunpack.c.h.b16 %v1605
        %v1730 = vunpack.c.l.b16 %v1606
        %v1731 = vunpack.c.h.b16 %v1606
        %v1732 = vunpack.c.l.b16 %v1607
        %v1733 = vunpack.c.h.b16 %v1607
        %v1734 = vunpack.c.l.b16 %v1608
        %v1735 = vunpack.c.h.b16 %v1608
        %v1736 = vunpack.c.l.b16 %v1609
        %v1737 = vunpack.c.h.b16 %v1609
        %v1738 = vunpack.c.l.b16 %v1610
        %v1739 = vunpack.c.h.b16 %v1610
        %v1740 = vunpack.c.l.b16 %v1611
        %v1741 = vunpack.c.h.b16 %v1611
        %v1742 = vunpack.c.l.b16 %v1612
        %v1743 = vunpack.c.h.b16 %v1612
        %v1744 = vunpack.c.l.b16 %v1613
        %v1745 = vunpack.c.h.b16 %v1613
        %v1746 = vpack.c.b16 %v1698, %v1682
        %v1747 = vpack.c.b16 %v1699, %v1683
        %v1748 = vpack.c.b16 %v1700, %v1684
        %v1749 = vpack.c.b16 %v1701, %v1685
        %v1750 = vpack.c.b16 %v1702, %v1686
        %v1751 = vpack.c.b16 %v1703, %v1687
        %v1752 = vpack.c.b16 %v1704, %v1688
        %v1753 = vpack.c.b16 %v1705, %v1689
        %v1754 = vpack.c.b16 %v1706, %v1690
        %v1755 = vpack.c.b16 %v1707, %v1691
        %v1756 = vpack.c.b16 %v1708, %v1692
        %v1757 = vpack.c.b16 %v1709, %v1693
        %v1758 = vpack.c.b16 %v1710, %v1694
        %v1759 = vpack.c.b16 %v1711, %v1695
        %v1760 = vpack.c.b16 %v1712, %v1696
        %v1761 = vpack.c.b16 %v1713, %v1697
        %v1762 = vpack.c.b16 %v1730, %v1714
        %v1763 = vpack.c.b16 %v1731, %v1715
        %v1764 = vpack.c.b16 %v1732, %v1716
        %v1765 = vpack.c.b16 %v1733, %v1717
        %v1766 = vpack.c.b16 %v1734, %v1718
        %v1767 = vpack.c.b16 %v1735, %v1719
        %v1768 = vpack.c.b16 %v1736, %v1720
        %v1769 = vpack.c.b16 %v1737, %v1721
        %v1770 = vpack.c.b16 %v1738, %v1722
        %v1771 = vpack.c.b16 %v1739, %v1723
        %v1772 = vpack.c.b16 %v1740, %v1724
        %v1773 = vpack.c.b16 %v1741, %v1725
        %v1774 = vpack.c.b16 %v1742, %v1726
        %v1775 = vpack.c.b16 %v1743, %v1727
        %v1776 = vpack.c.b16 %v1744, %v1728
        %v1777 = vpack.c.b16 %v1745, %v1729
        %v1811 = vsel %vm670, %v1581, 0
        %1813 = vmatpush.bf16.msra.mxu0 0
        %1814 = vmatpush.bf16.msra.mxu0 0
        %1815 = vmatpush.bf16.msra.mxu0 0
        %1816 = vmatpush.bf16.msra.mxu0 0
        %1817 = vmatpush.bf16.msra.mxu0 0
        %1818 = vmatpush.bf16.msra.mxu0 0
        %1819 = vmatpush.bf16.msra.mxu0 %v1762
        %1820 = vmatpush.bf16.msra.mxu0 %v1746
        %1821 = vmatmul.bf16.gmra.mxu0 %v1811
        %v1822 = vpop.f32.mrf.mxu0
        %v1823 = vadd.f32 %v1618, %v1822
        %v1824 = vpop.f32.mrf.mxu0
        %v1825 = vadd.f32 %v1618, %v1824
        %1826 = vdwg.mxu0
        %1827 = vmatpush.bf16.msra.mxu0 0
        %1828 = vmatpush.bf16.msra.mxu0 0
        %1829 = vmatpush.bf16.msra.mxu0 0
        %1830 = vmatpush.bf16.msra.mxu0 0
        %1831 = vmatpush.bf16.msra.mxu0 0
        %1832 = vmatpush.bf16.msra.mxu0 0
        %1833 = vmatpush.bf16.msra.mxu0 %v1763
        %1834 = vmatpush.bf16.msra.mxu0 %v1747
        %1835 = vmatmul.bf16.gmra.mxu0 %v1811
        %v1836 = vpop.f32.mrf.mxu0
        %v1837 = vadd.f32 %v1619, %v1836
        %v1838 = vpop.f32.mrf.mxu0
        %v1839 = vadd.f32 %v1619, %v1838
        %1840 = vdwg.mxu0
        %1841 = vmatpush.bf16.msra.mxu0 0
        %1842 = vmatpush.bf16.msra.mxu0 0
        %1843 = vmatpush.bf16.msra.mxu0 0
        %1844 = vmatpush.bf16.msra.mxu0 0
        %1845 = vmatpush.bf16.msra.mxu0 0
        %1846 = vmatpush.bf16.msra.mxu0 0
        %1847 = vmatpush.bf16.msra.mxu0 %v1764
        %1848 = vmatpush.bf16.msra.mxu0 %v1748
        %1849 = vmatmul.bf16.gmra.mxu0 %v1811
        %v1850 = vpop.f32.mrf.mxu0
        %v1851 = vadd.f32 %v1620, %v1850
        %v1852 = vpop.f32.mrf.mxu0
        %v1853 = vadd.f32 %v1620, %v1852
        %1854 = vdwg.mxu0
        %1855 = vmatpush.bf16.msra.mxu0 0
        %1856 = vmatpush.bf16.msra.mxu0 0
        %1857 = vmatpush.bf16.msra.mxu0 0
        %1858 = vmatpush.bf16.msra.mxu0 0
        %1859 = vmatpush.bf16.msra.mxu0 0
        %1860 = vmatpush.bf16.msra.mxu0 0
        %1861 = vmatpush.bf16.msra.mxu0 %v1765
        %1862 = vmatpush.bf16.msra.mxu0 %v1749
        %1863 = vmatmul.bf16.gmra.mxu0 %v1811
        %v1864 = vpop.f32.mrf.mxu0
        %v1865 = vadd.f32 %v1621, %v1864
        %v1866 = vpop.f32.mrf.mxu0
        %v1867 = vadd.f32 %v1621, %v1866
        %1868 = vdwg.mxu0
        %1869 = vmatpush.bf16.msra.mxu0 0
        %1870 = vmatpush.bf16.msra.mxu0 0
        %1871 = vmatpush.bf16.msra.mxu0 0
        %1872 = vmatpush.bf16.msra.mxu0 0
        %1873 = vmatpush.bf16.msra.mxu0 0
        %1874 = vmatpush.bf16.msra.mxu0 0
        %1875 = vmatpush.bf16.msra.mxu0 %v1766
        %1876 = vmatpush.bf16.msra.mxu0 %v1750
        %1877 = vmatmul.bf16.gmra.mxu0 %v1811
        %v1878 = vpop.f32.mrf.mxu0
        %v1879 = vadd.f32 %v1622, %v1878
        %v1880 = vpop.f32.mrf.mxu0
        %v1881 = vadd.f32 %v1622, %v1880
        %1882 = vdwg.mxu0
        %1883 = vmatpush.bf16.msra.mxu0 0
        %1884 = vmatpush.bf16.msra.mxu0 0
        %1885 = vmatpush.bf16.msra.mxu0 0
        %1886 = vmatpush.bf16.msra.mxu0 0
        %1887 = vmatpush.bf16.msra.mxu0 0
        %1888 = vmatpush.bf16.msra.mxu0 0
        %1889 = vmatpush.bf16.msra.mxu0 %v1767
        %1890 = vmatpush.bf16.msra.mxu0 %v1751
        %1891 = vmatmul.bf16.gmra.mxu0 %v1811
        %v1892 = vpop.f32.mrf.mxu0
        %v1893 = vadd.f32 %v1623, %v1892
        %v1894 = vpop.f32.mrf.mxu0
        %v1895 = vadd.f32 %v1623, %v1894
        %1896 = vdwg.mxu0
        %1897 = vmatpush.bf16.msra.mxu0 0
        %1898 = vmatpush.bf16.msra.mxu0 0
        %1899 = vmatpush.bf16.msra.mxu0 0
        %1900 = vmatpush.bf16.msra.mxu0 0
        %1901 = vmatpush.bf16.msra.mxu0 0
        %1902 = vmatpush.bf16.msra.mxu0 0
        %1903 = vmatpush.bf16.msra.mxu0 %v1768
        %1904 = vmatpush.bf16.msra.mxu0 %v1752
        %1905 = vmatmul.bf16.gmra.mxu0 %v1811
        %v1906 = vpop.f32.mrf.mxu0
        %v1907 = vadd.f32 %v1624, %v1906
        %v1908 = vpop.f32.mrf.mxu0
        %v1909 = vadd.f32 %v1624, %v1908
        %1910 = vdwg.mxu0
        %1911 = vmatpush.bf16.msra.mxu0 0
        %1912 = vmatpush.bf16.msra.mxu0 0
        %1913 = vmatpush.bf16.msra.mxu0 0
        %1914 = vmatpush.bf16.msra.mxu0 0
        %1915 = vmatpush.bf16.msra.mxu0 0
        %1916 = vmatpush.bf16.msra.mxu0 0
        %1917 = vmatpush.bf16.msra.mxu0 %v1769
        %1918 = vmatpush.bf16.msra.mxu0 %v1753
        %1919 = vmatmul.bf16.gmra.mxu0 %v1811
        %v1920 = vpop.f32.mrf.mxu0
        %v1921 = vadd.f32 %v1625, %v1920
        %v1922 = vpop.f32.mrf.mxu0
        %v1923 = vadd.f32 %v1625, %v1922
        %1924 = vdwg.mxu0
        %1925 = vmatpush.bf16.msra.mxu0 0
        %1926 = vmatpush.bf16.msra.mxu0 0
        %1927 = vmatpush.bf16.msra.mxu0 0
        %1928 = vmatpush.bf16.msra.mxu0 0
        %1929 = vmatpush.bf16.msra.mxu0 0
        %1930 = vmatpush.bf16.msra.mxu0 0
        %1931 = vmatpush.bf16.msra.mxu0 %v1770
        %1932 = vmatpush.bf16.msra.mxu0 %v1754
        %1933 = vmatmul.bf16.gmra.mxu0 %v1811
        %v1934 = vpop.f32.mrf.mxu0
        %v1935 = vadd.f32 %v1626, %v1934
        %v1936 = vpop.f32.mrf.mxu0
        %v1937 = vadd.f32 %v1626, %v1936
        %1938 = vdwg.mxu0
        %1939 = vmatpush.bf16.msra.mxu0 0
        %1940 = vmatpush.bf16.msra.mxu0 0
        %1941 = vmatpush.bf16.msra.mxu0 0
        %1942 = vmatpush.bf16.msra.mxu0 0
        %1943 = vmatpush.bf16.msra.mxu0 0
        %1944 = vmatpush.bf16.msra.mxu0 0
        %1945 = vmatpush.bf16.msra.mxu0 %v1771
        %1946 = vmatpush.bf16.msra.mxu0 %v1755
        %1947 = vmatmul.bf16.gmra.mxu0 %v1811
        %v1948 = vpop.f32.mrf.mxu0
        %v1949 = vadd.f32 %v1627, %v1948
        %v1950 = vpop.f32.mrf.mxu0
        %v1951 = vadd.f32 %v1627, %v1950
        %1952 = vdwg.mxu0
        %1953 = vmatpush.bf16.msra.mxu0 0
        %1954 = vmatpush.bf16.msra.mxu0 0
        %1955 = vmatpush.bf16.msra.mxu0 0
        %1956 = vmatpush.bf16.msra.mxu0 0
        %1957 = vmatpush.bf16.msra.mxu0 0
        %1958 = vmatpush.bf16.msra.mxu0 0
        %1959 = vmatpush.bf16.msra.mxu0 %v1772
        %1960 = vmatpush.bf16.msra.mxu0 %v1756
        %1961 = vmatmul.bf16.gmra.mxu0 %v1811
        %v1962 = vpop.f32.mrf.mxu0
        %v1963 = vadd.f32 %v1628, %v1962
        %v1964 = vpop.f32.mrf.mxu0
        %v1965 = vadd.f32 %v1628, %v1964
        %1966 = vdwg.mxu0
        %1967 = vmatpush.bf16.msra.mxu0 0
        %1968 = vmatpush.bf16.msra.mxu0 0
        %1969 = vmatpush.bf16.msra.mxu0 0
        %1970 = vmatpush.bf16.msra.mxu0 0
        %1971 = vmatpush.bf16.msra.mxu0 0
        %1972 = vmatpush.bf16.msra.mxu0 0
        %1973 = vmatpush.bf16.msra.mxu0 %v1773
        %1974 = vmatpush.bf16.msra.mxu0 %v1757
        %1975 = vmatmul.bf16.gmra.mxu0 %v1811
        %v1976 = vpop.f32.mrf.mxu0
        %v1977 = vadd.f32 %v1629, %v1976
        %v1978 = vpop.f32.mrf.mxu0
        %v1979 = vadd.f32 %v1629, %v1978
        %1980 = vdwg.mxu0
        %1981 = vmatpush.bf16.msra.mxu0 0
        %1982 = vmatpush.bf16.msra.mxu0 0
        %1983 = vmatpush.bf16.msra.mxu0 0
        %1984 = vmatpush.bf16.msra.mxu0 0
        %1985 = vmatpush.bf16.msra.mxu0 0
        %1986 = vmatpush.bf16.msra.mxu0 0
        %1987 = vmatpush.bf16.msra.mxu0 %v1774
        %1988 = vmatpush.bf16.msra.mxu0 %v1758
        %1989 = vmatmul.bf16.gmra.mxu0 %v1811
        %v1990 = vpop.f32.mrf.mxu0
        %v1991 = vadd.f32 %v1630, %v1990
        %v1992 = vpop.f32.mrf.mxu0
        %v1993 = vadd.f32 %v1630, %v1992
        %1994 = vdwg.mxu0
        %1995 = vmatpush.bf16.msra.mxu0 0
        %1996 = vmatpush.bf16.msra.mxu0 0
        %1997 = vmatpush.bf16.msra.mxu0 0
        %1998 = vmatpush.bf16.msra.mxu0 0
        %1999 = vmatpush.bf16.msra.mxu0 0
        %2000 = vmatpush.bf16.msra.mxu0 0
        %2001 = vmatpush.bf16.msra.mxu0 %v1775
        %2002 = vmatpush.bf16.msra.mxu0 %v1759
        %2003 = vmatmul.bf16.gmra.mxu0 %v1811
        %v2004 = vpop.f32.mrf.mxu0
        %v2005 = vadd.f32 %v1631, %v2004
        %v2006 = vpop.f32.mrf.mxu0
        %v2007 = vadd.f32 %v1631, %v2006
        %2008 = vdwg.mxu0
        %2009 = vmatpush.bf16.msra.mxu0 0
        %2010 = vmatpush.bf16.msra.mxu0 0
        %2011 = vmatpush.bf16.msra.mxu0 0
        %2012 = vmatpush.bf16.msra.mxu0 0
        %2013 = vmatpush.bf16.msra.mxu0 0
        %2014 = vmatpush.bf16.msra.mxu0 0
        %2015 = vmatpush.bf16.msra.mxu0 %v1776
        %2016 = vmatpush.bf16.msra.mxu0 %v1760
        %2017 = vmatmul.bf16.gmra.mxu0 %v1811
        %v2018 = vpop.f32.mrf.mxu0
        %v2019 = vadd.f32 %v1632, %v2018
        %v2020 = vpop.f32.mrf.mxu0
        %v2021 = vadd.f32 %v1632, %v2020
        %2022 = vdwg.mxu0
        %2023 = vmatpush.bf16.msra.mxu0 0
        %2024 = vmatpush.bf16.msra.mxu0 0
        %2025 = vmatpush.bf16.msra.mxu0 0
        %2026 = vmatpush.bf16.msra.mxu0 0
        %2027 = vmatpush.bf16.msra.mxu0 0
        %2028 = vmatpush.bf16.msra.mxu0 0
        %2029 = vmatpush.bf16.msra.mxu0 %v1777
        %2030 = vmatpush.bf16.msra.mxu0 %v1761
        %2031 = vmatmul.bf16.gmra.mxu0 %v1811
        %v2032 = vpop.f32.mrf.mxu0
        %v2033 = vadd.f32 %v1633, %v2032
        %v2034 = vpop.f32.mrf.mxu0
        %v2035 = vadd.f32 %v1633, %v2034
        %2036 = vdwg.mxu0
        %v2037 = vmax.f32 %v1823, 0.0
        %v2038 = vmax.f32 %v1837, 0.0
        %v2039 = vmax.f32 %v1851, 0.0
        %v2040 = vmax.f32 %v1865, 0.0
        %v2041 = vmax.f32 %v1879, 0.0
        %v2042 = vmax.f32 %v1893, 0.0
        %v2043 = vmax.f32 %v1907, 0.0
        %v2044 = vmax.f32 %v1921, 0.0
        %v2045 = vmax.f32 %v1935, 0.0
        %v2046 = vmax.f32 %v1949, 0.0
        %v2047 = vmax.f32 %v1963, 0.0
        %v2048 = vmax.f32 %v1977, 0.0
        %v2049 = vmax.f32 %v1991, 0.0
        %v2050 = vmax.f32 %v2005, 0.0
        %v2051 = vmax.f32 %v2019, 0.0
        %v2052 = vmax.f32 %v2033, 0.0
        %v2053 = vmax.f32 %v1825, 0.0
        %v2054 = vmax.f32 %v1839, 0.0
        %v2055 = vmax.f32 %v1853, 0.0
        %v2056 = vmax.f32 %v1867, 0.0
        %v2057 = vmax.f32 %v1881, 0.0
        %v2058 = vmax.f32 %v1895, 0.0
        %v2059 = vmax.f32 %v1909, 0.0
        %v2060 = vmax.f32 %v1923, 0.0
        %v2061 = vmax.f32 %v1937, 0.0
        %v2062 = vmax.f32 %v1951, 0.0
        %v2063 = vmax.f32 %v1965, 0.0
        %v2064 = vmax.f32 %v1979, 0.0
        %v2065 = vmax.f32 %v1993, 0.0
        %v2066 = vmax.f32 %v2007, 0.0
        %v2067 = vmax.f32 %v2021, 0.0
        %v2068 = vmax.f32 %v2035, 0.0
        %v2069 = vpack.c.bf16 %v2053, %v2037
        %v2070 = vpack.c.bf16 %v2054, %v2038
        %v2071 = vpack.c.bf16 %v2055, %v2039
        %v2072 = vpack.c.bf16 %v2056, %v2040
        %v2073 = vpack.c.bf16 %v2057, %v2041
        %v2074 = vpack.c.bf16 %v2058, %v2042
        %v2075 = vpack.c.bf16 %v2059, %v2043
        %v2076 = vpack.c.bf16 %v2060, %v2044
        %v2077 = vpack.c.bf16 %v2061, %v2045
        %v2078 = vpack.c.bf16 %v2062, %v2046
        %v2079 = vpack.c.bf16 %v2063, %v2047
        %v2080 = vpack.c.bf16 %v2064, %v2048
        %v2081 = vpack.c.bf16 %v2065, %v2049
        %v2082 = vpack.c.bf16 %v2066, %v2050
        %v2083 = vpack.c.bf16 %v2067, %v2051
        %v2084 = vpack.c.bf16 %v2068, %v2052
        %v2085 = vld [vmem:[%s652] sm:$0xf]
        %v2086 = vld [vmem:[%s652 + $0x4] sm:$0xf]
        %v2087 = vld [vmem:[%s652 + $0x8] sm:$0xf]
        %v2088 = vld [vmem:[%s652 + $0xc] sm:$0xf]
        %v2089 = vld [vmem:[%s652 + $0x10] sm:$0xf]
        %v2090 = vld [vmem:[%s652 + $0x14] sm:$0xf]
        %v2091 = vld [vmem:[%s652 + $0x18] sm:$0xf]
        %v2092 = vld [vmem:[%s652 + $0x1c] sm:$0xf]
        %v2093 = vld [vmem:[%s652 + $0x20] sm:$0xf]
        %v2094 = vld [vmem:[%s652 + $0x24] sm:$0xf]
        %v2095 = vld [vmem:[%s652 + $0x28] sm:$0xf]
        %v2096 = vld [vmem:[%s652 + $0x2c] sm:$0xf]
        %v2097 = vld [vmem:[%s652 + $0x30] sm:$0xf]
        %v2098 = vld [vmem:[%s652 + $0x34] sm:$0xf]
        %v2099 = vld [vmem:[%s652 + $0x38] sm:$0xf]
        %v2100 = vld [vmem:[%s652 + $0x3c] sm:$0xf]
        %v2101 = vld [vmem:[%s652 + $0x40] sm:$0xf]
        %v2102 = vld [vmem:[%s652 + $0x44] sm:$0xf]
        %v2103 = vld [vmem:[%s652 + $0x48] sm:$0xf]
        %v2104 = vld [vmem:[%s652 + $0x4c] sm:$0xf]
        %v2105 = vld [vmem:[%s652 + $0x50] sm:$0xf]
        %v2106 = vld [vmem:[%s652 + $0x54] sm:$0xf]
        %v2107 = vld [vmem:[%s652 + $0x58] sm:$0xf]
        %v2108 = vld [vmem:[%s652 + $0x5c] sm:$0xf]
        %v2109 = vld [vmem:[%s652 + $0x60] sm:$0xf]
        %v2110 = vld [vmem:[%s652 + $0x64] sm:$0xf]
        %v2111 = vld [vmem:[%s652 + $0x68] sm:$0xf]
        %v2112 = vld [vmem:[%s652 + $0x6c] sm:$0xf]
        %v2113 = vld [vmem:[%s652 + $0x70] sm:$0xf]
        %v2114 = vld [vmem:[%s652 + $0x74] sm:$0xf]
        %v2115 = vld [vmem:[%s652 + $0x78] sm:$0xf]
        %v2116 = vld [vmem:[%s652 + $0x7c] sm:$0xf]
        %v2117 = vld [vmem:[%s652 + $0x80] sm:$0xf]
        %v2118 = vld [vmem:[%s652 + $0x84] sm:$0xf]
        %v2119 = vld [vmem:[%s652 + $0x88] sm:$0xf]
        %v2120 = vld [vmem:[%s652 + $0x8c] sm:$0xf]
        %v2121 = vld [vmem:[%s652 + $0x90] sm:$0xf]
        %v2122 = vld [vmem:[%s652 + $0x94] sm:$0xf]
        %v2123 = vld [vmem:[%s652 + $0x98] sm:$0xf]
        %v2124 = vld [vmem:[%s652 + $0x9c] sm:$0xf]
        %v2125 = vld [vmem:[%s652 + $0xa0] sm:$0xf]
        %v2126 = vld [vmem:[%s652 + $0xa4] sm:$0xf]
        %v2127 = vld [vmem:[%s652 + $0xa8] sm:$0xf]
        %v2128 = vld [vmem:[%s652 + $0xac] sm:$0xf]
        %v2129 = vld [vmem:[%s652 + $0xb0] sm:$0xf]
        %v2130 = vld [vmem:[%s652 + $0xb4] sm:$0xf]
        %v2131 = vld [vmem:[%s652 + $0xb8] sm:$0xf]
        %v2132 = vld [vmem:[%s652 + $0xbc] sm:$0xf]
        %v2133 = vld [vmem:[%s652 + $0xc0] sm:$0xf]
        %v2134 = vld [vmem:[%s652 + $0xc4] sm:$0xf]
        %v2135 = vld [vmem:[%s652 + $0xc8] sm:$0xf]
        %v2136 = vld [vmem:[%s652 + $0xcc] sm:$0xf]
        %v2137 = vld [vmem:[%s652 + $0xd0] sm:$0xf]
        %v2138 = vld [vmem:[%s652 + $0xd4] sm:$0xf]
        %v2139 = vld [vmem:[%s652 + $0xd8] sm:$0xf]
        %v2140 = vld [vmem:[%s652 + $0xdc] sm:$0xf]
        %v2141 = vld [vmem:[%s652 + $0xe0] sm:$0xf]
        %v2142 = vld [vmem:[%s652 + $0xe4] sm:$0xf]
        %v2143 = vld [vmem:[%s652 + $0xe8] sm:$0xf]
        %v2144 = vld [vmem:[%s652 + $0xec] sm:$0xf]
        %v2145 = vld [vmem:[%s652 + $0xf0] sm:$0xf]
        %v2146 = vld [vmem:[%s652 + $0xf4] sm:$0xf]
        %v2147 = vld [vmem:[%s652 + $0xf8] sm:$0xf]
        %v2148 = vld [vmem:[%s652 + $0xfc] sm:$0xf]
        %v2149 = vld [vmem:[%s652 + $0x100] sm:$0xf]
        %v2150 = vld [vmem:[%s652 + $0x104] sm:$0xf]
        %v2151 = vld [vmem:[%s652 + $0x108] sm:$0xf]
        %v2152 = vld [vmem:[%s652 + $0x10c] sm:$0xf]
        %v2153 = vld [vmem:[%s652 + $0x110] sm:$0xf]
        %v2154 = vld [vmem:[%s652 + $0x114] sm:$0xf]
        %v2155 = vld [vmem:[%s652 + $0x118] sm:$0xf]
        %v2156 = vld [vmem:[%s652 + $0x11c] sm:$0xf]
        %v2157 = vld [vmem:[%s652 + $0x120] sm:$0xf]
        %v2158 = vld [vmem:[%s652 + $0x124] sm:$0xf]
        %v2159 = vld [vmem:[%s652 + $0x128] sm:$0xf]
        %v2160 = vld [vmem:[%s652 + $0x12c] sm:$0xf]
        %v2161 = vld [vmem:[%s652 + $0x130] sm:$0xf]
        %v2162 = vld [vmem:[%s652 + $0x134] sm:$0xf]
        %v2163 = vld [vmem:[%s652 + $0x138] sm:$0xf]
        %v2164 = vld [vmem:[%s652 + $0x13c] sm:$0xf]
        %v2165 = vld [vmem:[%s652 + $0x140] sm:$0xf]
        %v2166 = vld [vmem:[%s652 + $0x144] sm:$0xf]
        %v2167 = vld [vmem:[%s652 + $0x148] sm:$0xf]
        %v2168 = vld [vmem:[%s652 + $0x14c] sm:$0xf]
        %v2169 = vld [vmem:[%s652 + $0x150] sm:$0xf]
        %v2170 = vld [vmem:[%s652 + $0x154] sm:$0xf]
        %v2171 = vld [vmem:[%s652 + $0x158] sm:$0xf]
        %v2172 = vld [vmem:[%s652 + $0x15c] sm:$0xf]
        %v2173 = vld [vmem:[%s652 + $0x160] sm:$0xf]
        %v2174 = vld [vmem:[%s652 + $0x164] sm:$0xf]
        %v2175 = vld [vmem:[%s652 + $0x168] sm:$0xf]
        %v2176 = vld [vmem:[%s652 + $0x16c] sm:$0xf]
        %v2177 = vld [vmem:[%s652 + $0x170] sm:$0xf]
        %v2178 = vld [vmem:[%s652 + $0x174] sm:$0xf]
        %v2179 = vld [vmem:[%s652 + $0x178] sm:$0xf]
        %v2180 = vld [vmem:[%s652 + $0x17c] sm:$0xf]
        %v2181 = vld [vmem:[%s652 + $0x180] sm:$0xf]
        %v2182 = vld [vmem:[%s652 + $0x184] sm:$0xf]
        %v2183 = vld [vmem:[%s652 + $0x188] sm:$0xf]
        %v2184 = vld [vmem:[%s652 + $0x18c] sm:$0xf]
        %v2185 = vld [vmem:[%s652 + $0x190] sm:$0xf]
        %v2186 = vld [vmem:[%s652 + $0x194] sm:$0xf]
        %v2187 = vld [vmem:[%s652 + $0x198] sm:$0xf]
        %v2188 = vld [vmem:[%s652 + $0x19c] sm:$0xf]
        %v2189 = vld [vmem:[%s652 + $0x1a0] sm:$0xf]
        %v2190 = vld [vmem:[%s652 + $0x1a4] sm:$0xf]
        %v2191 = vld [vmem:[%s652 + $0x1a8] sm:$0xf]
        %v2192 = vld [vmem:[%s652 + $0x1ac] sm:$0xf]
        %v2193 = vld [vmem:[%s652 + $0x1b0] sm:$0xf]
        %v2194 = vld [vmem:[%s652 + $0x1b4] sm:$0xf]
        %v2195 = vld [vmem:[%s652 + $0x1b8] sm:$0xf]
        %v2196 = vld [vmem:[%s652 + $0x1bc] sm:$0xf]
        %v2197 = vld [vmem:[%s652 + $0x1c0] sm:$0xf]
        %v2198 = vld [vmem:[%s652 + $0x1c4] sm:$0xf]
        %v2199 = vld [vmem:[%s652 + $0x1c8] sm:$0xf]
        %v2200 = vld [vmem:[%s652 + $0x1cc] sm:$0xf]
        %v2201 = vld [vmem:[%s652 + $0x1d0] sm:$0xf]
        %v2202 = vld [vmem:[%s652 + $0x1d4] sm:$0xf]
        %v2203 = vld [vmem:[%s652 + $0x1d8] sm:$0xf]
        %v2204 = vld [vmem:[%s652 + $0x1dc] sm:$0xf]
        %v2205 = vld [vmem:[%s652 + $0x1e0] sm:$0xf]
        %v2206 = vld [vmem:[%s652 + $0x1e4] sm:$0xf]
        %v2207 = vld [vmem:[%s652 + $0x1e8] sm:$0xf]
        %v2208 = vld [vmem:[%s652 + $0x1ec] sm:$0xf]
        %v2209 = vld [vmem:[%s652 + $0x1f0] sm:$0xf]
        %v2210 = vld [vmem:[%s652 + $0x1f4] sm:$0xf]
        %v2211 = vld [vmem:[%s652 + $0x1f8] sm:$0xf]
        %v2212 = vld [vmem:[%s652 + $0x1fc] sm:$0xf]
        %v2213 = vld [vmem:[%s652 + $0x200] sm:$0xf]
        %v2214 = vld [vmem:[%s652 + $0x204] sm:$0xf]
        %v2215 = vld [vmem:[%s652 + $0x208] sm:$0xf]
        %v2216 = vld [vmem:[%s652 + $0x20c] sm:$0xf]
        %v2217 = vld [vmem:[%s652 + $0x210] sm:$0xf]
        %v2218 = vld [vmem:[%s652 + $0x214] sm:$0xf]
        %v2219 = vld [vmem:[%s652 + $0x218] sm:$0xf]
        %v2220 = vld [vmem:[%s652 + $0x21c] sm:$0xf]
        %v2221 = vld [vmem:[%s652 + $0x220] sm:$0xf]
        %v2222 = vld [vmem:[%s652 + $0x224] sm:$0xf]
        %v2223 = vld [vmem:[%s652 + $0x228] sm:$0xf]
        %v2224 = vld [vmem:[%s652 + $0x22c] sm:$0xf]
        %v2225 = vld [vmem:[%s652 + $0x230] sm:$0xf]
        %v2226 = vld [vmem:[%s652 + $0x234] sm:$0xf]
        %v2227 = vld [vmem:[%s652 + $0x238] sm:$0xf]
        %v2228 = vld [vmem:[%s652 + $0x23c] sm:$0xf]
        %v2229 = vld [vmem:[%s652 + $0x240] sm:$0xf]
        %v2230 = vld [vmem:[%s652 + $0x244] sm:$0xf]
        %v2231 = vld [vmem:[%s652 + $0x248] sm:$0xf]
        %v2232 = vld [vmem:[%s652 + $0x24c] sm:$0xf]
        %v2233 = vld [vmem:[%s652 + $0x250] sm:$0xf]
        %v2234 = vld [vmem:[%s652 + $0x254] sm:$0xf]
        %v2235 = vld [vmem:[%s652 + $0x258] sm:$0xf]
        %v2236 = vld [vmem:[%s652 + $0x25c] sm:$0xf]
        %v2237 = vld [vmem:[%s652 + $0x260] sm:$0xf]
        %v2238 = vld [vmem:[%s652 + $0x264] sm:$0xf]
        %v2239 = vld [vmem:[%s652 + $0x268] sm:$0xf]
        %v2240 = vld [vmem:[%s652 + $0x26c] sm:$0xf]
        %v2241 = vld [vmem:[%s652 + $0x270] sm:$0xf]
        %v2242 = vld [vmem:[%s652 + $0x274] sm:$0xf]
        %v2243 = vld [vmem:[%s652 + $0x278] sm:$0xf]
        %v2244 = vld [vmem:[%s652 + $0x27c] sm:$0xf]
        %v2245 = vld [vmem:[%s652 + $0x280] sm:$0xf]
        %v2246 = vld [vmem:[%s652 + $0x284] sm:$0xf]
        %v2247 = vld [vmem:[%s652 + $0x288] sm:$0xf]
        %v2248 = vld [vmem:[%s652 + $0x28c] sm:$0xf]
        %v2249 = vld [vmem:[%s652 + $0x290] sm:$0xf]
        %v2250 = vld [vmem:[%s652 + $0x294] sm:$0xf]
        %v2251 = vld [vmem:[%s652 + $0x298] sm:$0xf]
        %v2252 = vld [vmem:[%s652 + $0x29c] sm:$0xf]
        %v2253 = vld [vmem:[%s652 + $0x2a0] sm:$0xf]
        %v2254 = vld [vmem:[%s652 + $0x2a4] sm:$0xf]
        %v2255 = vld [vmem:[%s652 + $0x2a8] sm:$0xf]
        %v2256 = vld [vmem:[%s652 + $0x2ac] sm:$0xf]
        %v2257 = vld [vmem:[%s652 + $0x2b0] sm:$0xf]
        %v2258 = vld [vmem:[%s652 + $0x2b4] sm:$0xf]
        %v2259 = vld [vmem:[%s652 + $0x2b8] sm:$0xf]
        %v2260 = vld [vmem:[%s652 + $0x2bc] sm:$0xf]
        %v2261 = vld [vmem:[%s652 + $0x2c0] sm:$0xf]
        %v2262 = vld [vmem:[%s652 + $0x2c4] sm:$0xf]
        %v2263 = vld [vmem:[%s652 + $0x2c8] sm:$0xf]
        %v2264 = vld [vmem:[%s652 + $0x2cc] sm:$0xf]
        %v2265 = vld [vmem:[%s652 + $0x2d0] sm:$0xf]
        %v2266 = vld [vmem:[%s652 + $0x2d4] sm:$0xf]
        %v2267 = vld [vmem:[%s652 + $0x2d8] sm:$0xf]
        %v2268 = vld [vmem:[%s652 + $0x2dc] sm:$0xf]
        %v2269 = vld [vmem:[%s652 + $0x2e0] sm:$0xf]
        %v2270 = vld [vmem:[%s652 + $0x2e4] sm:$0xf]
        %v2271 = vld [vmem:[%s652 + $0x2e8] sm:$0xf]
        %v2272 = vld [vmem:[%s652 + $0x2ec] sm:$0xf]
        %v2273 = vld [vmem:[%s652 + $0x2f0] sm:$0xf]
        %v2274 = vld [vmem:[%s652 + $0x2f4] sm:$0xf]
        %v2275 = vld [vmem:[%s652 + $0x2f8] sm:$0xf]
        %v2276 = vld [vmem:[%s652 + $0x2fc] sm:$0xf]
        %v2277 = vld [vmem:[%s652 + $0x300] sm:$0xf]
        %v2278 = vld [vmem:[%s652 + $0x304] sm:$0xf]
        %v2279 = vld [vmem:[%s652 + $0x308] sm:$0xf]
        %v2280 = vld [vmem:[%s652 + $0x30c] sm:$0xf]
        %v2281 = vld [vmem:[%s652 + $0x310] sm:$0xf]
        %v2282 = vld [vmem:[%s652 + $0x314] sm:$0xf]
        %v2283 = vld [vmem:[%s652 + $0x318] sm:$0xf]
        %v2284 = vld [vmem:[%s652 + $0x31c] sm:$0xf]
        %v2285 = vld [vmem:[%s652 + $0x320] sm:$0xf]
        %v2286 = vld [vmem:[%s652 + $0x324] sm:$0xf]
        %v2287 = vld [vmem:[%s652 + $0x328] sm:$0xf]
        %v2288 = vld [vmem:[%s652 + $0x32c] sm:$0xf]
        %v2289 = vld [vmem:[%s652 + $0x330] sm:$0xf]
        %v2290 = vld [vmem:[%s652 + $0x334] sm:$0xf]
        %v2291 = vld [vmem:[%s652 + $0x338] sm:$0xf]
        %v2292 = vld [vmem:[%s652 + $0x33c] sm:$0xf]
        %v2293 = vld [vmem:[%s652 + $0x340] sm:$0xf]
        %v2294 = vld [vmem:[%s652 + $0x344] sm:$0xf]
        %v2295 = vld [vmem:[%s652 + $0x348] sm:$0xf]
        %v2296 = vld [vmem:[%s652 + $0x34c] sm:$0xf]
        %v2297 = vld [vmem:[%s652 + $0x350] sm:$0xf]
        %v2298 = vld [vmem:[%s652 + $0x354] sm:$0xf]
        %v2299 = vld [vmem:[%s652 + $0x358] sm:$0xf]
        %v2300 = vld [vmem:[%s652 + $0x35c] sm:$0xf]
        %v2301 = vld [vmem:[%s652 + $0x360] sm:$0xf]
        %v2302 = vld [vmem:[%s652 + $0x364] sm:$0xf]
        %v2303 = vld [vmem:[%s652 + $0x368] sm:$0xf]
        %v2304 = vld [vmem:[%s652 + $0x36c] sm:$0xf]
        %v2305 = vld [vmem:[%s652 + $0x370] sm:$0xf]
        %v2306 = vld [vmem:[%s652 + $0x374] sm:$0xf]
        %v2307 = vld [vmem:[%s652 + $0x378] sm:$0xf]
        %v2308 = vld [vmem:[%s652 + $0x37c] sm:$0xf]
        %v2309 = vld [vmem:[%s652 + $0x380] sm:$0xf]
        %v2310 = vld [vmem:[%s652 + $0x384] sm:$0xf]
        %v2311 = vld [vmem:[%s652 + $0x388] sm:$0xf]
        %v2312 = vld [vmem:[%s652 + $0x38c] sm:$0xf]
        %v2313 = vld [vmem:[%s652 + $0x390] sm:$0xf]
        %v2314 = vld [vmem:[%s652 + $0x394] sm:$0xf]
        %v2315 = vld [vmem:[%s652 + $0x398] sm:$0xf]
        %v2316 = vld [vmem:[%s652 + $0x39c] sm:$0xf]
        %v2317 = vld [vmem:[%s652 + $0x3a0] sm:$0xf]
        %v2318 = vld [vmem:[%s652 + $0x3a4] sm:$0xf]
        %v2319 = vld [vmem:[%s652 + $0x3a8] sm:$0xf]
        %v2320 = vld [vmem:[%s652 + $0x3ac] sm:$0xf]
        %v2321 = vld [vmem:[%s652 + $0x3b0] sm:$0xf]
        %v2322 = vld [vmem:[%s652 + $0x3b4] sm:$0xf]
        %v2323 = vld [vmem:[%s652 + $0x3b8] sm:$0xf]
        %v2324 = vld [vmem:[%s652 + $0x3bc] sm:$0xf]
        %v2325 = vld [vmem:[%s652 + $0x3c0] sm:$0xf]
        %v2326 = vld [vmem:[%s652 + $0x3c4] sm:$0xf]
        %v2327 = vld [vmem:[%s652 + $0x3c8] sm:$0xf]
        %v2328 = vld [vmem:[%s652 + $0x3cc] sm:$0xf]
        %v2329 = vld [vmem:[%s652 + $0x3d0] sm:$0xf]
        %v2330 = vld [vmem:[%s652 + $0x3d4] sm:$0xf]
        %v2331 = vld [vmem:[%s652 + $0x3d8] sm:$0xf]
        %v2332 = vld [vmem:[%s652 + $0x3dc] sm:$0xf]
        %v2333 = vld [vmem:[%s652 + $0x3e0] sm:$0xf]
        %v2334 = vld [vmem:[%s652 + $0x3e4] sm:$0xf]
        %v2335 = vld [vmem:[%s652 + $0x3e8] sm:$0xf]
        %v2336 = vld [vmem:[%s652 + $0x3ec] sm:$0xf]
        %v2337 = vld [vmem:[%s652 + $0x3f0] sm:$0xf]
        %v2338 = vld [vmem:[%s652 + $0x3f4] sm:$0xf]
        %v2339 = vld [vmem:[%s652 + $0x3f8] sm:$0xf]
        %v2340 = vld [vmem:[%s652 + $0x3fc] sm:$0xf]
        %v2341 = vld [vmem:[%s655] sm:$0x1]
        %v2343 = vperm.slane %v2341, 0
        %v2601 = vunpack.c.l.b16 %v2085
        %v2602 = vunpack.c.l.b16 %v2086
        %v2603 = vunpack.c.l.b16 %v2087
        %v2604 = vunpack.c.l.b16 %v2088
        %v2605 = vunpack.c.l.b16 %v2089
        %v2606 = vunpack.c.l.b16 %v2090
        %v2607 = vunpack.c.l.b16 %v2091
        %v2608 = vunpack.c.l.b16 %v2092
        %v2609 = vunpack.c.l.b16 %v2093
        %v2610 = vunpack.c.l.b16 %v2094
        %v2611 = vunpack.c.l.b16 %v2095
        %v2612 = vunpack.c.l.b16 %v2096
        %v2613 = vunpack.c.l.b16 %v2097
        %v2614 = vunpack.c.l.b16 %v2098
        %v2615 = vunpack.c.l.b16 %v2099
        %v2616 = vunpack.c.l.b16 %v2100
        %v2617 = vunpack.c.l.b16 %v2101
        %v2618 = vunpack.c.l.b16 %v2102
        %v2619 = vunpack.c.l.b16 %v2103
        %v2620 = vunpack.c.l.b16 %v2104
        %v2621 = vunpack.c.l.b16 %v2105
        %v2622 = vunpack.c.l.b16 %v2106
        %v2623 = vunpack.c.l.b16 %v2107
        %v2624 = vunpack.c.l.b16 %v2108
        %v2625 = vunpack.c.l.b16 %v2109
        %v2626 = vunpack.c.l.b16 %v2110
        %v2627 = vunpack.c.l.b16 %v2111
        %v2628 = vunpack.c.l.b16 %v2112
        %v2629 = vunpack.c.l.b16 %v2113
        %v2630 = vunpack.c.l.b16 %v2114
        %v2631 = vunpack.c.l.b16 %v2115
        %v2632 = vunpack.c.l.b16 %v2116
        %v2633 = vunpack.c.l.b16 %v2117
        %v2634 = vunpack.c.l.b16 %v2118
        %v2635 = vunpack.c.l.b16 %v2119
        %v2636 = vunpack.c.l.b16 %v2120
        %v2637 = vunpack.c.l.b16 %v2121
        %v2638 = vunpack.c.l.b16 %v2122
        %v2639 = vunpack.c.l.b16 %v2123
        %v2640 = vunpack.c.l.b16 %v2124
        %v2641 = vunpack.c.l.b16 %v2125
        %v2642 = vunpack.c.l.b16 %v2126
        %v2643 = vunpack.c.l.b16 %v2127
        %v2644 = vunpack.c.l.b16 %v2128
        %v2645 = vunpack.c.l.b16 %v2129
        %v2646 = vunpack.c.l.b16 %v2130
        %v2647 = vunpack.c.l.b16 %v2131
        %v2648 = vunpack.c.l.b16 %v2132
        %v2649 = vunpack.c.l.b16 %v2133
        %v2650 = vunpack.c.l.b16 %v2134
        %v2651 = vunpack.c.l.b16 %v2135
        %v2652 = vunpack.c.l.b16 %v2136
        %v2653 = vunpack.c.l.b16 %v2137
        %v2654 = vunpack.c.l.b16 %v2138
        %v2655 = vunpack.c.l.b16 %v2139
        %v2656 = vunpack.c.l.b16 %v2140
        %v2657 = vunpack.c.l.b16 %v2141
        %v2658 = vunpack.c.l.b16 %v2142
        %v2659 = vunpack.c.l.b16 %v2143
        %v2660 = vunpack.c.l.b16 %v2144
        %v2661 = vunpack.c.l.b16 %v2145
        %v2662 = vunpack.c.l.b16 %v2146
        %v2663 = vunpack.c.l.b16 %v2147
        %v2664 = vunpack.c.l.b16 %v2148
        %v2665 = vunpack.c.l.b16 %v2149
        %v2666 = vunpack.c.l.b16 %v2150
        %v2667 = vunpack.c.l.b16 %v2151
        %v2668 = vunpack.c.l.b16 %v2152
        %v2669 = vunpack.c.l.b16 %v2153
        %v2670 = vunpack.c.l.b16 %v2154
        %v2671 = vunpack.c.l.b16 %v2155
        %v2672 = vunpack.c.l.b16 %v2156
        %v2673 = vunpack.c.l.b16 %v2157
        %v2674 = vunpack.c.l.b16 %v2158
        %v2675 = vunpack.c.l.b16 %v2159
        %v2676 = vunpack.c.l.b16 %v2160
        %v2677 = vunpack.c.l.b16 %v2161
        %v2678 = vunpack.c.l.b16 %v2162
        %v2679 = vunpack.c.l.b16 %v2163
        %v2680 = vunpack.c.l.b16 %v2164
        %v2681 = vunpack.c.l.b16 %v2165
        %v2682 = vunpack.c.l.b16 %v2166
        %v2683 = vunpack.c.l.b16 %v2167
        %v2684 = vunpack.c.l.b16 %v2168
        %v2685 = vunpack.c.l.b16 %v2169
        %v2686 = vunpack.c.l.b16 %v2170
        %v2687 = vunpack.c.l.b16 %v2171
        %v2688 = vunpack.c.l.b16 %v2172
        %v2689 = vunpack.c.l.b16 %v2173
        %v2690 = vunpack.c.l.b16 %v2174
        %v2691 = vunpack.c.l.b16 %v2175
        %v2692 = vunpack.c.l.b16 %v2176
        %v2693 = vunpack.c.l.b16 %v2177
        %v2694 = vunpack.c.l.b16 %v2178
        %v2695 = vunpack.c.l.b16 %v2179
        %v2696 = vunpack.c.l.b16 %v2180
        %v2697 = vunpack.c.l.b16 %v2181
        %v2698 = vunpack.c.l.b16 %v2182
        %v2699 = vunpack.c.l.b16 %v2183
        %v2700 = vunpack.c.l.b16 %v2184
        %v2701 = vunpack.c.l.b16 %v2185
        %v2702 = vunpack.c.l.b16 %v2186
        %v2703 = vunpack.c.l.b16 %v2187
        %v2704 = vunpack.c.l.b16 %v2188
        %v2705 = vunpack.c.l.b16 %v2189
        %v2706 = vunpack.c.l.b16 %v2190
        %v2707 = vunpack.c.l.b16 %v2191
        %v2708 = vunpack.c.l.b16 %v2192
        %v2709 = vunpack.c.l.b16 %v2193
        %v2710 = vunpack.c.l.b16 %v2194
        %v2711 = vunpack.c.l.b16 %v2195
        %v2712 = vunpack.c.l.b16 %v2196
        %v2713 = vunpack.c.l.b16 %v2197
        %v2714 = vunpack.c.l.b16 %v2198
        %v2715 = vunpack.c.l.b16 %v2199
        %v2716 = vunpack.c.l.b16 %v2200
        %v2717 = vunpack.c.l.b16 %v2201
        %v2718 = vunpack.c.l.b16 %v2202
        %v2719 = vunpack.c.l.b16 %v2203
        %v2720 = vunpack.c.l.b16 %v2204
        %v2721 = vunpack.c.l.b16 %v2205
        %v2722 = vunpack.c.l.b16 %v2206
        %v2723 = vunpack.c.l.b16 %v2207
        %v2724 = vunpack.c.l.b16 %v2208
        %v2725 = vunpack.c.l.b16 %v2209
        %v2726 = vunpack.c.l.b16 %v2210
        %v2727 = vunpack.c.l.b16 %v2211
        %v2728 = vunpack.c.l.b16 %v2212
        %v2729 = vunpack.c.l.b16 %v2213
        %v2730 = vunpack.c.l.b16 %v2214
        %v2731 = vunpack.c.l.b16 %v2215
        %v2732 = vunpack.c.l.b16 %v2216
        %v2733 = vunpack.c.l.b16 %v2217
        %v2734 = vunpack.c.l.b16 %v2218
        %v2735 = vunpack.c.l.b16 %v2219
        %v2736 = vunpack.c.l.b16 %v2220
        %v2737 = vunpack.c.l.b16 %v2221
        %v2738 = vunpack.c.l.b16 %v2222
        %v2739 = vunpack.c.l.b16 %v2223
        %v2740 = vunpack.c.l.b16 %v2224
        %v2741 = vunpack.c.l.b16 %v2225
        %v2742 = vunpack.c.l.b16 %v2226
        %v2743 = vunpack.c.l.b16 %v2227
        %v2744 = vunpack.c.l.b16 %v2228
        %v2745 = vunpack.c.l.b16 %v2229
        %v2746 = vunpack.c.l.b16 %v2230
        %v2747 = vunpack.c.l.b16 %v2231
        %v2748 = vunpack.c.l.b16 %v2232
        %v2749 = vunpack.c.l.b16 %v2233
        %v2750 = vunpack.c.l.b16 %v2234
        %v2751 = vunpack.c.l.b16 %v2235
        %v2752 = vunpack.c.l.b16 %v2236
        %v2753 = vunpack.c.l.b16 %v2237
        %v2754 = vunpack.c.l.b16 %v2238
        %v2755 = vunpack.c.l.b16 %v2239
        %v2756 = vunpack.c.l.b16 %v2240
        %v2757 = vunpack.c.l.b16 %v2241
        %v2758 = vunpack.c.l.b16 %v2242
        %v2759 = vunpack.c.l.b16 %v2243
        %v2760 = vunpack.c.l.b16 %v2244
        %v2761 = vunpack.c.l.b16 %v2245
        %v2762 = vunpack.c.l.b16 %v2246
        %v2763 = vunpack.c.l.b16 %v2247
        %v2764 = vunpack.c.l.b16 %v2248
        %v2765 = vunpack.c.l.b16 %v2249
        %v2766 = vunpack.c.l.b16 %v2250
        %v2767 = vunpack.c.l.b16 %v2251
        %v2768 = vunpack.c.l.b16 %v2252
        %v2769 = vunpack.c.l.b16 %v2253
        %v2770 = vunpack.c.l.b16 %v2254
        %v2771 = vunpack.c.l.b16 %v2255
        %v2772 = vunpack.c.l.b16 %v2256
        %v2773 = vunpack.c.l.b16 %v2257
        %v2774 = vunpack.c.l.b16 %v2258
        %v2775 = vunpack.c.l.b16 %v2259
        %v2776 = vunpack.c.l.b16 %v2260
        %v2777 = vunpack.c.l.b16 %v2261
        %v2778 = vunpack.c.l.b16 %v2262
        %v2779 = vunpack.c.l.b16 %v2263
        %v2780 = vunpack.c.l.b16 %v2264
        %v2781 = vunpack.c.l.b16 %v2265
        %v2782 = vunpack.c.l.b16 %v2266
        %v2783 = vunpack.c.l.b16 %v2267
        %v2784 = vunpack.c.l.b16 %v2268
        %v2785 = vunpack.c.l.b16 %v2269
        %v2786 = vunpack.c.l.b16 %v2270
        %v2787 = vunpack.c.l.b16 %v2271
        %v2788 = vunpack.c.l.b16 %v2272
        %v2789 = vunpack.c.l.b16 %v2273
        %v2790 = vunpack.c.l.b16 %v2274
        %v2791 = vunpack.c.l.b16 %v2275
        %v2792 = vunpack.c.l.b16 %v2276
        %v2793 = vunpack.c.l.b16 %v2277
        %v2794 = vunpack.c.l.b16 %v2278
        %v2795 = vunpack.c.l.b16 %v2279
        %v2796 = vunpack.c.l.b16 %v2280
        %v2797 = vunpack.c.l.b16 %v2281
        %v2798 = vunpack.c.l.b16 %v2282
        %v2799 = vunpack.c.l.b16 %v2283
        %v2800 = vunpack.c.l.b16 %v2284
        %v2801 = vunpack.c.l.b16 %v2285
        %v2802 = vunpack.c.l.b16 %v2286
        %v2803 = vunpack.c.l.b16 %v2287
        %v2804 = vunpack.c.l.b16 %v2288
        %v2805 = vunpack.c.l.b16 %v2289
        %v2806 = vunpack.c.l.b16 %v2290
        %v2807 = vunpack.c.l.b16 %v2291
        %v2808 = vunpack.c.l.b16 %v2292
        %v2809 = vunpack.c.l.b16 %v2293
        %v2810 = vunpack.c.l.b16 %v2294
        %v2811 = vunpack.c.l.b16 %v2295
        %v2812 = vunpack.c.l.b16 %v2296
        %v2813 = vunpack.c.l.b16 %v2297
        %v2814 = vunpack.c.l.b16 %v2298
        %v2815 = vunpack.c.l.b16 %v2299
        %v2816 = vunpack.c.l.b16 %v2300
        %v2817 = vunpack.c.l.b16 %v2301
        %v2818 = vunpack.c.l.b16 %v2302
        %v2819 = vunpack.c.l.b16 %v2303
        %v2820 = vunpack.c.l.b16 %v2304
        %v2821 = vunpack.c.l.b16 %v2305
        %v2822 = vunpack.c.l.b16 %v2306
        %v2823 = vunpack.c.l.b16 %v2307
        %v2824 = vunpack.c.l.b16 %v2308
        %v2825 = vunpack.c.l.b16 %v2309
        %v2826 = vunpack.c.l.b16 %v2310
        %v2827 = vunpack.c.l.b16 %v2311
        %v2828 = vunpack.c.l.b16 %v2312
        %v2829 = vunpack.c.l.b16 %v2313
        %v2830 = vunpack.c.l.b16 %v2314
        %v2831 = vunpack.c.l.b16 %v2315
        %v2832 = vunpack.c.l.b16 %v2316
        %v2833 = vunpack.c.l.b16 %v2317
        %v2834 = vunpack.c.l.b16 %v2318
        %v2835 = vunpack.c.l.b16 %v2319
        %v2836 = vunpack.c.l.b16 %v2320
        %v2837 = vunpack.c.l.b16 %v2321
        %v2838 = vunpack.c.l.b16 %v2322
        %v2839 = vunpack.c.l.b16 %v2323
        %v2840 = vunpack.c.l.b16 %v2324
        %v2841 = vunpack.c.l.b16 %v2325
        %v2842 = vunpack.c.l.b16 %v2326
        %v2843 = vunpack.c.l.b16 %v2327
        %v2844 = vunpack.c.l.b16 %v2328
        %v2845 = vunpack.c.l.b16 %v2329
        %v2846 = vunpack.c.l.b16 %v2330
        %v2847 = vunpack.c.l.b16 %v2331
        %v2848 = vunpack.c.l.b16 %v2332
        %v2849 = vunpack.c.l.b16 %v2333
        %v2850 = vunpack.c.l.b16 %v2334
        %v2851 = vunpack.c.l.b16 %v2335
        %v2852 = vunpack.c.l.b16 %v2336
        %v2853 = vunpack.c.l.b16 %v2337
        %v2854 = vunpack.c.l.b16 %v2338
        %v2855 = vunpack.c.l.b16 %v2339
        %v2856 = vunpack.c.l.b16 %v2340
        %v2857 = vpack.c.b16 %v2602, %v2601
        %v2858 = vpack.c.b16 %v2604, %v2603
        %v2859 = vpack.c.b16 %v2606, %v2605
        %v2860 = vpack.c.b16 %v2608, %v2607
        %v2861 = vpack.c.b16 %v2610, %v2609
        %v2862 = vpack.c.b16 %v2612, %v2611
        %v2863 = vpack.c.b16 %v2614, %v2613
        %v2864 = vpack.c.b16 %v2616, %v2615
        %v2865 = vpack.c.b16 %v2618, %v2617
        %v2866 = vpack.c.b16 %v2620, %v2619
        %v2867 = vpack.c.b16 %v2622, %v2621
        %v2868 = vpack.c.b16 %v2624, %v2623
        %v2869 = vpack.c.b16 %v2626, %v2625
        %v2870 = vpack.c.b16 %v2628, %v2627
        %v2871 = vpack.c.b16 %v2630, %v2629
        %v2872 = vpack.c.b16 %v2632, %v2631
        %v2873 = vpack.c.b16 %v2634, %v2633
        %v2874 = vpack.c.b16 %v2636, %v2635
        %v2875 = vpack.c.b16 %v2638, %v2637
        %v2876 = vpack.c.b16 %v2640, %v2639
        %v2877 = vpack.c.b16 %v2642, %v2641
        %v2878 = vpack.c.b16 %v2644, %v2643
        %v2879 = vpack.c.b16 %v2646, %v2645
        %v2880 = vpack.c.b16 %v2648, %v2647
        %v2881 = vpack.c.b16 %v2650, %v2649
        %v2882 = vpack.c.b16 %v2652, %v2651
        %v2883 = vpack.c.b16 %v2654, %v2653
        %v2884 = vpack.c.b16 %v2656, %v2655
        %v2885 = vpack.c.b16 %v2658, %v2657
        %v2886 = vpack.c.b16 %v2660, %v2659
        %v2887 = vpack.c.b16 %v2662, %v2661
        %v2888 = vpack.c.b16 %v2664, %v2663
        %v2889 = vpack.c.b16 %v2666, %v2665
        %v2890 = vpack.c.b16 %v2668, %v2667
        %v2891 = vpack.c.b16 %v2670, %v2669
        %v2892 = vpack.c.b16 %v2672, %v2671
        %v2893 = vpack.c.b16 %v2674, %v2673
        %v2894 = vpack.c.b16 %v2676, %v2675
        %v2895 = vpack.c.b16 %v2678, %v2677
        %v2896 = vpack.c.b16 %v2680, %v2679
        %v2897 = vpack.c.b16 %v2682, %v2681
        %v2898 = vpack.c.b16 %v2684, %v2683
        %v2899 = vpack.c.b16 %v2686, %v2685
        %v2900 = vpack.c.b16 %v2688, %v2687
        %v2901 = vpack.c.b16 %v2690, %v2689
        %v2902 = vpack.c.b16 %v2692, %v2691
        %v2903 = vpack.c.b16 %v2694, %v2693
        %v2904 = vpack.c.b16 %v2696, %v2695
        %v2905 = vpack.c.b16 %v2698, %v2697
        %v2906 = vpack.c.b16 %v2700, %v2699
        %v2907 = vpack.c.b16 %v2702, %v2701
        %v2908 = vpack.c.b16 %v2704, %v2703
        %v2909 = vpack.c.b16 %v2706, %v2705
        %v2910 = vpack.c.b16 %v2708, %v2707
        %v2911 = vpack.c.b16 %v2710, %v2709
        %v2912 = vpack.c.b16 %v2712, %v2711
        %v2913 = vpack.c.b16 %v2714, %v2713
        %v2914 = vpack.c.b16 %v2716, %v2715
        %v2915 = vpack.c.b16 %v2718, %v2717
        %v2916 = vpack.c.b16 %v2720, %v2719
        %v2917 = vpack.c.b16 %v2722, %v2721
        %v2918 = vpack.c.b16 %v2724, %v2723
        %v2919 = vpack.c.b16 %v2726, %v2725
        %v2920 = vpack.c.b16 %v2728, %v2727
        %v2921 = vpack.c.b16 %v2730, %v2729
        %v2922 = vpack.c.b16 %v2732, %v2731
        %v2923 = vpack.c.b16 %v2734, %v2733
        %v2924 = vpack.c.b16 %v2736, %v2735
        %v2925 = vpack.c.b16 %v2738, %v2737
        %v2926 = vpack.c.b16 %v2740, %v2739
        %v2927 = vpack.c.b16 %v2742, %v2741
        %v2928 = vpack.c.b16 %v2744, %v2743
        %v2929 = vpack.c.b16 %v2746, %v2745
        %v2930 = vpack.c.b16 %v2748, %v2747
        %v2931 = vpack.c.b16 %v2750, %v2749
        %v2932 = vpack.c.b16 %v2752, %v2751
        %v2933 = vpack.c.b16 %v2754, %v2753
        %v2934 = vpack.c.b16 %v2756, %v2755
        %v2935 = vpack.c.b16 %v2758, %v2757
        %v2936 = vpack.c.b16 %v2760, %v2759
        %v2937 = vpack.c.b16 %v2762, %v2761
        %v2938 = vpack.c.b16 %v2764, %v2763
        %v2939 = vpack.c.b16 %v2766, %v2765
        %v2940 = vpack.c.b16 %v2768, %v2767
        %v2941 = vpack.c.b16 %v2770, %v2769
        %v2942 = vpack.c.b16 %v2772, %v2771
        %v2943 = vpack.c.b16 %v2774, %v2773
        %v2944 = vpack.c.b16 %v2776, %v2775
        %v2945 = vpack.c.b16 %v2778, %v2777
        %v2946 = vpack.c.b16 %v2780, %v2779
        %v2947 = vpack.c.b16 %v2782, %v2781
        %v2948 = vpack.c.b16 %v2784, %v2783
        %v2949 = vpack.c.b16 %v2786, %v2785
        %v2950 = vpack.c.b16 %v2788, %v2787
        %v2951 = vpack.c.b16 %v2790, %v2789
        %v2952 = vpack.c.b16 %v2792, %v2791
        %v2953 = vpack.c.b16 %v2794, %v2793
        %v2954 = vpack.c.b16 %v2796, %v2795
        %v2955 = vpack.c.b16 %v2798, %v2797
        %v2956 = vpack.c.b16 %v2800, %v2799
        %v2957 = vpack.c.b16 %v2802, %v2801
        %v2958 = vpack.c.b16 %v2804, %v2803
        %v2959 = vpack.c.b16 %v2806, %v2805
        %v2960 = vpack.c.b16 %v2808, %v2807
        %v2961 = vpack.c.b16 %v2810, %v2809
        %v2962 = vpack.c.b16 %v2812, %v2811
        %v2963 = vpack.c.b16 %v2814, %v2813
        %v2964 = vpack.c.b16 %v2816, %v2815
        %v2965 = vpack.c.b16 %v2818, %v2817
        %v2966 = vpack.c.b16 %v2820, %v2819
        %v2967 = vpack.c.b16 %v2822, %v2821
        %v2968 = vpack.c.b16 %v2824, %v2823
        %v2969 = vpack.c.b16 %v2826, %v2825
        %v2970 = vpack.c.b16 %v2828, %v2827
        %v2971 = vpack.c.b16 %v2830, %v2829
        %v2972 = vpack.c.b16 %v2832, %v2831
        %v2973 = vpack.c.b16 %v2834, %v2833
        %v2974 = vpack.c.b16 %v2836, %v2835
        %v2975 = vpack.c.b16 %v2838, %v2837
        %v2976 = vpack.c.b16 %v2840, %v2839
        %v2977 = vpack.c.b16 %v2842, %v2841
        %v2978 = vpack.c.b16 %v2844, %v2843
        %v2979 = vpack.c.b16 %v2846, %v2845
        %v2980 = vpack.c.b16 %v2848, %v2847
        %v2981 = vpack.c.b16 %v2850, %v2849
        %v2982 = vpack.c.b16 %v2852, %v2851
        %v2983 = vpack.c.b16 %v2854, %v2853
        %v2984 = vpack.c.b16 %v2856, %v2855
        %3113 = vmatpush.bf16.msra.mxu0 %v2864
        %3114 = vmatpush.bf16.msra.mxu0 %v2863
        %3115 = vmatpush.bf16.msra.mxu0 %v2862
        %3116 = vmatpush.bf16.msra.mxu0 %v2861
        %3117 = vmatpush.bf16.msra.mxu0 %v2860
        %3118 = vmatpush.bf16.msra.mxu0 %v2859
        %3119 = vmatpush.bf16.msra.mxu0 %v2858
        %3120 = vmatpush.bf16.msra.mxu0 %v2857
        %3121 = vmatmul.bf16.gmra.mxu0 %v2069
        %v3122 = vpop.f32.mrf.mxu0
        %v3123 = vadd.f32 %v2343, %v3122
        %v3124 = vpop.f32.mrf.mxu0
        %v3125 = vadd.f32 %v2343, %v3124
        %3126 = vdwg.mxu0
        %3127 = vmatpush.bf16.msra.mxu0 %v2872
        %3128 = vmatpush.bf16.msra.mxu0 %v2871
        %3129 = vmatpush.bf16.msra.mxu0 %v2870
        %3130 = vmatpush.bf16.msra.mxu0 %v2869
        %3131 = vmatpush.bf16.msra.mxu0 %v2868
        %3132 = vmatpush.bf16.msra.mxu0 %v2867
        %3133 = vmatpush.bf16.msra.mxu0 %v2866
        %3134 = vmatpush.bf16.msra.mxu0 %v2865
        %3135 = vmatmul.bf16.gmra.mxu0 %v2070
        %v3136 = vpop.f32.mrf.mxu0
        %v3137 = vadd.f32 %v3123, %v3136
        %v3138 = vpop.f32.mrf.mxu0
        %v3139 = vadd.f32 %v3125, %v3138
        %3140 = vdwg.mxu0
        %3141 = vmatpush.bf16.msra.mxu0 %v2880
        %3142 = vmatpush.bf16.msra.mxu0 %v2879
        %3143 = vmatpush.bf16.msra.mxu0 %v2878
        %3144 = vmatpush.bf16.msra.mxu0 %v2877
        %3145 = vmatpush.bf16.msra.mxu0 %v2876
        %3146 = vmatpush.bf16.msra.mxu0 %v2875
        %3147 = vmatpush.bf16.msra.mxu0 %v2874
        %3148 = vmatpush.bf16.msra.mxu0 %v2873
        %3149 = vmatmul.bf16.gmra.mxu0 %v2071
        %v3150 = vpop.f32.mrf.mxu0
        %v3151 = vadd.f32 %v3137, %v3150
        %v3152 = vpop.f32.mrf.mxu0
        %v3153 = vadd.f32 %v3139, %v3152
        %3154 = vdwg.mxu0
        %3155 = vmatpush.bf16.msra.mxu0 %v2888
        %3156 = vmatpush.bf16.msra.mxu0 %v2887
        %3157 = vmatpush.bf16.msra.mxu0 %v2886
        %3158 = vmatpush.bf16.msra.mxu0 %v2885
        %3159 = vmatpush.bf16.msra.mxu0 %v2884
        %3160 = vmatpush.bf16.msra.mxu0 %v2883
        %3161 = vmatpush.bf16.msra.mxu0 %v2882
        %3162 = vmatpush.bf16.msra.mxu0 %v2881
        %3163 = vmatmul.bf16.gmra.mxu0 %v2072
        %v3164 = vpop.f32.mrf.mxu0
        %v3165 = vadd.f32 %v3151, %v3164
        %v3166 = vpop.f32.mrf.mxu0
        %v3167 = vadd.f32 %v3153, %v3166
        %3168 = vdwg.mxu0
        %3169 = vmatpush.bf16.msra.mxu0 %v2896
        %3170 = vmatpush.bf16.msra.mxu0 %v2895
        %3171 = vmatpush.bf16.msra.mxu0 %v2894
        %3172 = vmatpush.bf16.msra.mxu0 %v2893
        %3173 = vmatpush.bf16.msra.mxu0 %v2892
        %3174 = vmatpush.bf16.msra.mxu0 %v2891
        %3175 = vmatpush.bf16.msra.mxu0 %v2890
        %3176 = vmatpush.bf16.msra.mxu0 %v2889
        %3177 = vmatmul.bf16.gmra.mxu0 %v2073
        %v3178 = vpop.f32.mrf.mxu0
        %v3179 = vadd.f32 %v3165, %v3178
        %v3180 = vpop.f32.mrf.mxu0
        %v3181 = vadd.f32 %v3167, %v3180
        %3182 = vdwg.mxu0
        %3183 = vmatpush.bf16.msra.mxu0 %v2904
        %3184 = vmatpush.bf16.msra.mxu0 %v2903
        %3185 = vmatpush.bf16.msra.mxu0 %v2902
        %3186 = vmatpush.bf16.msra.mxu0 %v2901
        %3187 = vmatpush.bf16.msra.mxu0 %v2900
        %3188 = vmatpush.bf16.msra.mxu0 %v2899
        %3189 = vmatpush.bf16.msra.mxu0 %v2898
        %3190 = vmatpush.bf16.msra.mxu0 %v2897
        %3191 = vmatmul.bf16.gmra.mxu0 %v2074
        %v3192 = vpop.f32.mrf.mxu0
        %v3193 = vadd.f32 %v3179, %v3192
        %v3194 = vpop.f32.mrf.mxu0
        %v3195 = vadd.f32 %v3181, %v3194
        %3196 = vdwg.mxu0
        %3197 = vmatpush.bf16.msra.mxu0 %v2912
        %3198 = vmatpush.bf16.msra.mxu0 %v2911
        %3199 = vmatpush.bf16.msra.mxu0 %v2910
        %3200 = vmatpush.bf16.msra.mxu0 %v2909
        %3201 = vmatpush.bf16.msra.mxu0 %v2908
        %3202 = vmatpush.bf16.msra.mxu0 %v2907
        %3203 = vmatpush.bf16.msra.mxu0 %v2906
        %3204 = vmatpush.bf16.msra.mxu0 %v2905
        %3205 = vmatmul.bf16.gmra.mxu0 %v2075
        %v3206 = vpop.f32.mrf.mxu0
        %v3207 = vadd.f32 %v3193, %v3206
        %v3208 = vpop.f32.mrf.mxu0
        %v3209 = vadd.f32 %v3195, %v3208
        %3210 = vdwg.mxu0
        %3211 = vmatpush.bf16.msra.mxu0 %v2920
        %3212 = vmatpush.bf16.msra.mxu0 %v2919
        %3213 = vmatpush.bf16.msra.mxu0 %v2918
        %3214 = vmatpush.bf16.msra.mxu0 %v2917
        %3215 = vmatpush.bf16.msra.mxu0 %v2916
        %3216 = vmatpush.bf16.msra.mxu0 %v2915
        %3217 = vmatpush.bf16.msra.mxu0 %v2914
        %3218 = vmatpush.bf16.msra.mxu0 %v2913
        %3219 = vmatmul.bf16.gmra.mxu0 %v2076
        %v3220 = vpop.f32.mrf.mxu0
        %v3221 = vadd.f32 %v3207, %v3220
        %v3222 = vpop.f32.mrf.mxu0
        %v3223 = vadd.f32 %v3209, %v3222
        %3224 = vdwg.mxu0
        %3225 = vmatpush.bf16.msra.mxu0 %v2928
        %3226 = vmatpush.bf16.msra.mxu0 %v2927
        %3227 = vmatpush.bf16.msra.mxu0 %v2926
        %3228 = vmatpush.bf16.msra.mxu0 %v2925
        %3229 = vmatpush.bf16.msra.mxu0 %v2924
        %3230 = vmatpush.bf16.msra.mxu0 %v2923
        %3231 = vmatpush.bf16.msra.mxu0 %v2922
        %3232 = vmatpush.bf16.msra.mxu0 %v2921
        %3233 = vmatmul.bf16.gmra.mxu0 %v2077
        %v3234 = vpop.f32.mrf.mxu0
        %v3235 = vadd.f32 %v3221, %v3234
        %v3236 = vpop.f32.mrf.mxu0
        %v3237 = vadd.f32 %v3223, %v3236
        %3238 = vdwg.mxu0
        %3239 = vmatpush.bf16.msra.mxu0 %v2936
        %3240 = vmatpush.bf16.msra.mxu0 %v2935
        %3241 = vmatpush.bf16.msra.mxu0 %v2934
        %3242 = vmatpush.bf16.msra.mxu0 %v2933
        %3243 = vmatpush.bf16.msra.mxu0 %v2932
        %3244 = vmatpush.bf16.msra.mxu0 %v2931
        %3245 = vmatpush.bf16.msra.mxu0 %v2930
        %3246 = vmatpush.bf16.msra.mxu0 %v2929
        %3247 = vmatmul.bf16.gmra.mxu0 %v2078
        %v3248 = vpop.f32.mrf.mxu0
        %v3249 = vadd.f32 %v3235, %v3248
        %v3250 = vpop.f32.mrf.mxu0
        %v3251 = vadd.f32 %v3237, %v3250
        %3252 = vdwg.mxu0
        %3253 = vmatpush.bf16.msra.mxu0 %v2944
        %3254 = vmatpush.bf16.msra.mxu0 %v2943
        %3255 = vmatpush.bf16.msra.mxu0 %v2942
        %3256 = vmatpush.bf16.msra.mxu0 %v2941
        %3257 = vmatpush.bf16.msra.mxu0 %v2940
        %3258 = vmatpush.bf16.msra.mxu0 %v2939
        %3259 = vmatpush.bf16.msra.mxu0 %v2938
        %3260 = vmatpush.bf16.msra.mxu0 %v2937
        %3261 = vmatmul.bf16.gmra.mxu0 %v2079
        %v3262 = vpop.f32.mrf.mxu0
        %v3263 = vadd.f32 %v3249, %v3262
        %v3264 = vpop.f32.mrf.mxu0
        %v3265 = vadd.f32 %v3251, %v3264
        %3266 = vdwg.mxu0
        %3267 = vmatpush.bf16.msra.mxu0 %v2952
        %3268 = vmatpush.bf16.msra.mxu0 %v2951
        %3269 = vmatpush.bf16.msra.mxu0 %v2950
        %3270 = vmatpush.bf16.msra.mxu0 %v2949
        %3271 = vmatpush.bf16.msra.mxu0 %v2948
        %3272 = vmatpush.bf16.msra.mxu0 %v2947
        %3273 = vmatpush.bf16.msra.mxu0 %v2946
        %3274 = vmatpush.bf16.msra.mxu0 %v2945
        %3275 = vmatmul.bf16.gmra.mxu0 %v2080
        %v3276 = vpop.f32.mrf.mxu0
        %v3277 = vadd.f32 %v3263, %v3276
        %v3278 = vpop.f32.mrf.mxu0
        %v3279 = vadd.f32 %v3265, %v3278
        %3280 = vdwg.mxu0
        %3281 = vmatpush.bf16.msra.mxu0 %v2960
        %3282 = vmatpush.bf16.msra.mxu0 %v2959
        %3283 = vmatpush.bf16.msra.mxu0 %v2958
        %3284 = vmatpush.bf16.msra.mxu0 %v2957
        %3285 = vmatpush.bf16.msra.mxu0 %v2956
        %3286 = vmatpush.bf16.msra.mxu0 %v2955
        %3287 = vmatpush.bf16.msra.mxu0 %v2954
        %3288 = vmatpush.bf16.msra.mxu0 %v2953
        %3289 = vmatmul.bf16.gmra.mxu0 %v2081
        %v3290 = vpop.f32.mrf.mxu0
        %v3291 = vadd.f32 %v3277, %v3290
        %v3292 = vpop.f32.mrf.mxu0
        %v3293 = vadd.f32 %v3279, %v3292
        %3294 = vdwg.mxu0
        %3295 = vmatpush.bf16.msra.mxu0 %v2968
        %3296 = vmatpush.bf16.msra.mxu0 %v2967
        %3297 = vmatpush.bf16.msra.mxu0 %v2966
        %3298 = vmatpush.bf16.msra.mxu0 %v2965
        %3299 = vmatpush.bf16.msra.mxu0 %v2964
        %3300 = vmatpush.bf16.msra.mxu0 %v2963
        %3301 = vmatpush.bf16.msra.mxu0 %v2962
        %3302 = vmatpush.bf16.msra.mxu0 %v2961
        %3303 = vmatmul.bf16.gmra.mxu0 %v2082
        %v3304 = vpop.f32.mrf.mxu0
        %v3305 = vadd.f32 %v3291, %v3304
        %v3306 = vpop.f32.mrf.mxu0
        %v3307 = vadd.f32 %v3293, %v3306
        %3308 = vdwg.mxu0
        %3309 = vmatpush.bf16.msra.mxu0 %v2976
        %3310 = vmatpush.bf16.msra.mxu0 %v2975
        %3311 = vmatpush.bf16.msra.mxu0 %v2974
        %3312 = vmatpush.bf16.msra.mxu0 %v2973
        %3313 = vmatpush.bf16.msra.mxu0 %v2972
        %3314 = vmatpush.bf16.msra.mxu0 %v2971
        %3315 = vmatpush.bf16.msra.mxu0 %v2970
        %3316 = vmatpush.bf16.msra.mxu0 %v2969
        %3317 = vmatmul.bf16.gmra.mxu0 %v2083
        %v3318 = vpop.f32.mrf.mxu0
        %v3319 = vadd.f32 %v3305, %v3318
        %v3320 = vpop.f32.mrf.mxu0
        %v3321 = vadd.f32 %v3307, %v3320
        %3322 = vdwg.mxu0
        %3323 = vmatpush.bf16.msra.mxu0 %v2984
        %3324 = vmatpush.bf16.msra.mxu0 %v2983
        %3325 = vmatpush.bf16.msra.mxu0 %v2982
        %3326 = vmatpush.bf16.msra.mxu0 %v2981
        %3327 = vmatpush.bf16.msra.mxu0 %v2980
        %3328 = vmatpush.bf16.msra.mxu0 %v2979
        %3329 = vmatpush.bf16.msra.mxu0 %v2978
        %3330 = vmatpush.bf16.msra.mxu0 %v2977
        %3331 = vmatmul.bf16.gmra.mxu0 %v2084
        %v3332 = vpop.f32.mrf.mxu0
        %v3333 = vadd.f32 %v3319, %v3332
        %v3334 = vpop.f32.mrf.mxu0
        %v3335 = vadd.f32 %v3321, %v3334
        %3336 = vdwg.mxu0
        %v3337 = vadd.f32 %v1523, %v3333
        %v3338 = vadd.f32 %v1524, %v3335
        %p3339 = scmp.lt.s32.totalorder %s27, 1
        // Predicated region
        $region85: #{transformer_encoder_forward.1} parent=79 // pred_check
          %p3340 = pneg %p3339
        $region86: #{transformer_encoder_forward.1} parent=79 // pred_check_branch
          %3342 = sbr.rel (%p3340) target = $region88
        $region87: #{transformer_encoder_forward.1} parent=79 // pred_region
          %3343 = vst.msk [vmem:[#allocation2] sm:$0xff] %vm670, %v3337
          %3344 = vst.msk [vmem:[#allocation2 + $0x8] sm:$0xff] %vm670, %v3338
        $region88: #{transformer_encoder_forward.1} parent=79 // pred_fallthru
          _
        %p3345 = scmp.eq.s32.totalorder %s27, 1
        // Predicated region
        $region89: #{transformer_encoder_forward.1} parent=79 // pred_check
          %p3346 = pneg %p3345
        $region90: #{transformer_encoder_forward.1} parent=79 // pred_check_branch
          %3348 = sbr.rel (%p3346) target = $region92
        $region91: #{transformer_encoder_forward.1} parent=79 // pred_region
          %v3349 = vld [vmem:[%s13] sm:$0x1]
          %v3350 = vld [vmem:[%s14] sm:$0x1]
          %v3351 = vsel %vm670, %v3337, 0.0
          %3352 = vadd.xlane.f32.xlu0 %v3351
          %v3353 = vpop.xlane.xlu0 %3352
          %v3354 = vsel %vm670, %v3338, 0.0
          %3355 = vadd.xlane.f32.xlu0 %v3354
          %v3356 = vpop.xlane.xlu0 %3355
          %v3357 = vmul.f32 %v3353, %v683
          %v3358 = vmul.f32 %v3356, %v683
          %v3359 = vsub.f32 %v3337, %v3357
          %v3360 = vsub.f32 %v3338, %v3358
          %v3361 = vmul.f32 %v3359, %v3359
          %v3362 = vmul.f32 %v3360, %v3360
          %v3363 = vsel %vm670, %v3361, 0.0
          %3364 = vadd.xlane.f32.xlu0 %v3363
          %v3365 = vpop.xlane.xlu0 %3364
          %v3366 = vsel %vm670, %v3362, 0.0
          %3367 = vadd.xlane.f32.xlu0 %v3366
          %v3368 = vpop.xlane.xlu0 %3367
          %v3369 = vmul.f32 %v3365, %v683
          %v3370 = vmul.f32 %v3368, %v683
          %v3371 = vadd.f32 %v3369, 1e-05
          %v3372 = vadd.f32 %v3370, 1e-05
          %v3373 = vrsqrt.pop %v3371
          %v3374 = vmul.f32 %v3373, %v3371
          %v3375 = vmul.f32 %v3374, %v3373
          %v3376 = vmul.f32 0.5, %v3375
          %v3377 = vsub.f32 1.5, %v3376
          %v3378 = vmul.f32 %v3373, %v3377
          %vm3379 = vweird.f32 %v3371
          %vm3380 = vweird.f32 %v3373
          %vm3381 = vmor %vm3379, %vm3380
          %v3382 = vsel %vm3381, %v3373, %v3378
          %v3383 = vrsqrt.pop %v3372
          %v3384 = vmul.f32 %v3383, %v3372
          %v3385 = vmul.f32 %v3384, %v3383
          %v3386 = vmul.f32 0.5, %v3385
          %v3387 = vsub.f32 1.5, %v3386
          %v3388 = vmul.f32 %v3383, %v3387
          %vm3389 = vweird.f32 %v3372
          %vm3390 = vweird.f32 %v3383
          %vm3391 = vmor %vm3389, %vm3390
          %v3392 = vsel %vm3391, %v3383, %v3388
          %v3393 = vmul.f32 %v3359, %v3382
          %v3394 = vmul.f32 %v3360, %v3392
          %v3396 = vperm.slane %v3349, 0
          %v3398 = vmul.f32 %v3393, %v3396
          %v3399 = vmul.f32 %v3394, %v3396
          %v3401 = vperm.slane %v3350, 0
          %v3403 = vadd.f32 %v3398, %v3401
          %v3404 = vadd.f32 %v3399, %v3401
          %3405 = vst.msk [vmem:[#allocation2] sm:$0xff] %vm670, %v3403
          %3406 = vst.msk [vmem:[#allocation2 + $0x8] sm:$0xff] %vm670, %v3404
        $region92: #{transformer_encoder_forward.1} parent=79 // pred_fallthru
          _
        // Predicated region
        $region93: #{transformer_encoder_forward.1} parent=79 // pred_check
          %p3407 = pneg %p415
        $region94: #{transformer_encoder_forward.1} parent=79 // pred_check_branch
          %3409 = sbr.rel (%p3407) target = $region96
        $region95: #{transformer_encoder_forward.1} parent=79 // pred_region
          %3411 = vsyncadd [#allocation3], 0
          %s3412 = sshll.u32 [#allocation2], 4
          %s3413 = int_to_ptr.vmem [resolvable:$true] %s3412
          %s3414 = sshll.u32 %s15, 4
          %s3415 = int_to_ptr.hbm [resolvable:$true] %s3414
          %3420 = dma.vmem_to_hbm [thread:$0]  %s3413, 256, %s3415, [#allocation3], 128, 128, 8
        $region96: #{transformer_encoder_forward.1} parent=79 // pred_fallthru
          _
        // Predicated region
        $region97: #{transformer_encoder_forward.1} parent=79 // pred_check
          %p3421 = pneg %p415
        $region98: #{transformer_encoder_forward.1} parent=79 // pred_check_branch
          %3423 = sbr.rel (%p3421) target = $region100
        $region99: #{transformer_encoder_forward.1} parent=79 // pred_region
          %3425 = dma.done [#allocation3], 256
        $region100: #{transformer_encoder_forward.1} parent=79 // pred_fallthru
          _
      $region80: #{transformer_encoder_forward.1} parent=5 // pred_fallthru
        _
      %p3426 = scmp.le.s32.totalorder 2, %s22
      // Predicated region
      $region101: #{transformer_encoder_forward.1} parent=5 // pred_check
        %p3427 = pneg %p3426
      $region102: #{transformer_encoder_forward.1} parent=5 // pred_check_branch
        %3429 = sbr.rel (%p3427) target = $region104
      $region103: #{transformer_encoder_forward.1} parent=5 // pred_region
        %s3430 = ssub.s32 %s22, 2
      $region104: #{transformer_encoder_forward.1} parent=5 // pred_fallthru
        _
    $region6: #{transformer_encoder_forward.1} parent=1 // loop_footer
      %s26 = sadd.s32 1, %s22
    $region7: #{transformer_encoder_forward.1} parent=1 // loop_footer_branch
      %21 = sbr.rel target = $region3
    $region8: #{transformer_encoder_forward.1} parent=1 // loop_exit
      _
    %3431 = vsyncpa [#allocation3], 1
    %s3432 = scalar_lea.sflag [#allocation3], 1
    %3433 = vsyncpa %s3432, 1

</llo_original>
